<compile_context>
chip_gen: v6e
topology: v6e:2x2x1
jax: 0.10.0
libtpu: 0.0.40
codegen_flags: <defaults>
</compile_context>

<pallas_src>
import functools

import jax
import jax.numpy as jnp
from jax import lax
from jax.experimental import pallas as pl
from jax.experimental.pallas import tpu as pltpu


# ----------------------------------------------------------------------------- kernel

def stacked_lstm_kernel(
    x_ref,       # (T*B, I)          bf16, time-major rows [t0b0, t0b1, t1b0, ...]
    wih1_ref,    # (I,      4*H1p)   bf16, gate order [i,f,o,g], per-gate zero-pad to H1p
    whh1_ref,    # (H1p,    4*H1p)   bf16
    w2_ref,      # (H1p+H2p,4*H2p)   bf16, stacked [wih2; whh2]
    fc1w_ref,    # (H2p, D)          bf16
    sp_ref,      # (9, W)            f32 packed small params (biases / LN affine / fc2)
    out_ref,     # (B, 1)            f32
    *,
    T, B, H1, H2,                    # static
):
    H1p = whh1_ref.shape[0]
    H2p = w2_ref.shape[0] - H1p
    G1 = 4 * H1p
    G2 = 4 * H2p
    D = fc1w_ref.shape[1]
    f32 = jnp.float32
    bf16 = jnp.bfloat16

    # --- unpack the small-parameter block (one DMA for 9 tiny tensors) -----------------
    b1    = sp_ref[0:1, 0:G1]      # (1, 4*H1p)   b_ih + b_hh, gate blocks zero-padded
    b2    = sp_ref[1:2, 0:G2]      # (1, 4*H2p)
    ln1_g = sp_ref[2:3, 0:H1p]     # (1, H1p)     gamma zero-padded beyond H1
    ln1_b = sp_ref[3:4, 0:H1p]
    ln2_g = sp_ref[4:5, 0:H2p]
    ln2_b = sp_ref[5:6, 0:H2p]
    fc1_b = sp_ref[6:7, 0:D]       # (1, D)
    fc2_w = sp_ref[7:8, 0:D]       # (1, D)       fc2 weight row (for lane-reduction)
    fc2_b = sp_ref[8:9, 0:1]       # (1, 1)

    def lstm_cell(gates, c, Hp):
        # Gate order [i, f, o, g]: ONE sigmoid over the contiguous 3*Hp block (single EUP
        # stream) + one tanh, instead of three separate sigmoids.  Every block is
        # lane-aligned (Hp % 128 == 0).  Padded lanes: gates==0 -> sigmoid=0.5, tanh=0,
        # so c/h stay exactly 0 beyond the real hidden size.
        sig = jax.nn.sigmoid(gates[:, 0:3 * Hp])
        i_g = sig[:, 0 * Hp:1 * Hp]
        f_g = sig[:, 1 * Hp:2 * Hp]
        o_g = sig[:, 2 * Hp:3 * Hp]
        g_g = jnp.tanh(gates[:, 3 * Hp:4 * Hp])
        c_new = f_g * c + i_g * g_g
        h_new = o_g * jnp.tanh(c_new)
        return h_new, c_new

    def layer_norm(h, gamma, beta, n_real, n_pad):
        # h is exactly zero beyond n_real lanes; gamma/beta are zero-padded.  Two-pass
        # variance; each of the (n_pad - n_real) zero lanes contributes mu^2 to
        # sum((h - mu)^2), so subtract that analytically instead of masking.
        inv_n = 1.0 / float(n_real)
        mu = jnp.sum(h, axis=-1, keepdims=True) * inv_n
        d = h - mu
        var = (jnp.sum(d * d, axis=-1, keepdims=True)
               - float(n_pad - n_real) * (mu * mu)) * inv_n
        # Padded lanes of the result: d = -mu, gamma = beta = 0 -> output 0 (invariant kept).
        return d * lax.rsqrt(var + 1e-5) * gamma + beta

    # --- hoisted, batched layer-1 input projection (off the recurrence chain) ----------
    gx1_all = jnp.dot(x_ref[...], wih1_ref[...], preferred_element_type=f32) + b1  # (T*B, G1)

    # --- fused recurrence: layer-2 step t runs right after layer-1 step t ---------------
    h1 = jnp.zeros((B, H1p), f32)
    c1 = jnp.zeros((B, H1p), f32)
    h2 = jnp.zeros((B, H2p), f32)
    c2 = jnp.zeros((B, H2p), f32)
    for t in range(T):                                   # T small & static: fully unrolled
        g1 = gx1_all[t * B:(t + 1) * B, :] + jnp.dot(
            h1.astype(bf16), whh1_ref[...], preferred_element_type=f32)
        h1, c1 = lstm_cell(g1, c1, H1p)
        n1 = layer_norm(h1, ln1_g, ln1_b, H1, H1p)
        # Single merged K=(H1p+H2p) dot for layer-2: [n1_t, h2_{t-1}] @ [wih2; whh2]
        cat = jnp.concatenate([n1.astype(bf16), h2.astype(bf16)], axis=-1)
        g2 = jnp.dot(cat, w2_ref[...], preferred_element_type=f32) + b2
        h2, c2 = lstm_cell(g2, c2, H2p)

    # --- epilogue: LN2 on last step, fc1, fc2 as a lane reduction ------------------------
    n2 = layer_norm(h2, ln2_g, ln2_b, H2, H2p)
    d1 = jnp.dot(n2.astype(bf16), fc1w_ref[...], preferred_element_type=f32) + fc1_b  # (B, D)
    out = jnp.sum(d1 * fc2_w, axis=-1, keepdims=True) + fc2_b                         # (B, 1)
    out_ref[...] = out.astype(out_ref.dtype)


# ----------------------------------------------------------------------------- wrapper

def _round_up(n, m):
    return ((n + m - 1) // m) * m


_GATE_PERM = (0, 1, 3, 2)   # PyTorch [i, f, g, o] -> kernel [i, f, o, g]


def _prep_gate_cols(w, H, Hp):
    """(..., 4*H) PyTorch gate order -> (..., 4*Hp) kernel order, each gate zero-padded."""
    lead = w.shape[:-1]
    w4 = w.reshape(lead + (4, H))
    w4 = jnp.take(w4, jnp.array(_GATE_PERM), axis=-2)
    w4 = jnp.pad(w4, [(0, 0)] * len(lead) + [(0, 0), (0, Hp - H)])
    return w4.reshape(lead + (4 * Hp,))


def _pad_rows(w, n, npad):
    return jnp.pad(w, [(0, npad - n)] + [(0, 0)] * (w.ndim - 1))


def stacked_lstm_forward(x, params):
    """x: (B, T, I) float32, batch_first like the PyTorch module (eval mode)."""
    B, T, I = x.shape
    H1 = params["whh1"].shape[0]
    H2 = params["whh2"].shape[0]
    D = params["fc1_w"].shape[1]
    H1p = _round_up(H1, 128)
    H2p = _round_up(H2, 128)
    bf16 = jnp.bfloat16

    # Pad gate blocks / rows to lane-aligned sizes, reorder gates, cast matmul weights bf16.
    wih1_p = _prep_gate_cols(params["wih1"], H1, H1p).astype(bf16)                        # (I,   4H1p)
    whh1_p = _pad_rows(_prep_gate_cols(params["whh1"], H1, H1p), H1, H1p).astype(bf16)    # (H1p, 4H1p)
    b1_p   = _prep_gate_cols(params["b1"], H1, H1p)                                       # (4H1p,)
    wih2_p = _pad_rows(_prep_gate_cols(params["wih2"], H2, H2p), H1, H1p)                 # (H1p, 4H2p)
    whh2_p = _pad_rows(_prep_gate_cols(params["whh2"], H2, H2p), H2, H2p)                 # (H2p, 4H2p)
    w2_p   = jnp.concatenate([wih2_p, whh2_p], axis=0).astype(bf16)                       # (H1p+H2p, 4H2p)
    b2_p   = _prep_gate_cols(params["b2"], H2, H2p)                                       # (4H2p,)
    ln1_g_p = jnp.pad(params["ln1_g"], (0, H1p - H1))   # zero-pad -> padded lanes zeroed
    ln1_b_p = jnp.pad(params["ln1_b"], (0, H1p - H1))
    ln2_g_p = jnp.pad(params["ln2_g"], (0, H2p - H2))
    ln2_b_p = jnp.pad(params["ln2_b"], (0, H2p - H2))
    fc1w_p = _pad_rows(params["fc1_w"], H2, H2p).astype(bf16)                             # (H2p, D)

    # Pack the nine tiny parameter tensors into one VMEM input (stay f32 for VPU math).
    W = max(4 * H1p, 4 * H2p)

    def row(v):
        v = v.reshape(-1)
        return jnp.pad(v, (0, W - v.shape[0]))

    sp = jnp.stack([
        row(b1_p), row(b2_p),
        row(ln1_g_p), row(ln1_b_p), row(ln2_g_p), row(ln2_b_p),
        row(params["fc1_b"]), row(params["fc2_w"].reshape(-1)), row(params["fc2_b"]),
    ])                                                                                    # (9, W)

    # Time-major, flattened to (T*B, I) for the single batched input projection.
    x_tm = jnp.transpose(x, (1, 0, 2)).reshape(T * B, I).astype(bf16)

    vmem = pl.BlockSpec(memory_space=pltpu.MemorySpace.VMEM)
    kernel = functools.partial(stacked_lstm_kernel, T=T, B=B, H1=H1, H2=H2)
    return pl.pallas_call(
        kernel,
        out_shape=jax.ShapeDtypeStruct((B, 1), jnp.float32),
        in_specs=[vmem] * 6,
        out_specs=vmem,
    )(x_tm, wih1_p, whh1_p, w2_p, fc1w_p, sp)


# ----------------------------------------------------------------------------- reference

def reference_forward(x, params):
    """Pure-JAX mirror of the PyTorch StackedLSTMModel in eval mode (f32, gate order [i,f,g,o])."""
    B, T, _ = x.shape
    H1 = params["whh1"].shape[0]
    H2 = params["whh2"].shape[0]

    def run_lstm(x_seq, wih, whh, b, H):
        h = jnp.zeros((B, H), jnp.float32)
        c = jnp.zeros((B, H), jnp.float32)
        outs = []
        for t in range(T):
            g = x_seq[:, t, :] @ wih + h @ whh + b
            i_g = jax.nn.sigmoid(g[:, 0 * H:1 * H])
            f_g = jax.nn.sigmoid(g[:, 1 * H:2 * H])
            g_g = jnp.tanh(g[:, 2 * H:3 * H])
            o_g = jax.nn.sigmoid(g[:, 3 * H:4 * H])
            c = f_g * c + i_g * g_g
            h = o_g * jnp.tanh(c)
            outs.append(h)
        return jnp.stack(outs, axis=1)                      # (B, T, H)

    def layer_norm(h, g, b):
        mu = jnp.mean(h, axis=-1, keepdims=True)
        var = jnp.mean((h - mu) ** 2, axis=-1, keepdims=True)
        return (h - mu) / jnp.sqrt(var + 1e-5) * g + b

    o1 = run_lstm(x, params["wih1"], params["whh1"], params["b1"], H1)
    o1 = layer_norm(o1, params["ln1_g"], params["ln1_b"])   # dropout1: identity
    o2 = run_lstm(o1, params["wih2"], params["whh2"], params["b2"], H2)
    o2 = layer_norm(o2, params["ln2_g"], params["ln2_b"])   # dropout2: identity
    last = o2[:, -1, :]
    d1 = last @ params["fc1_w"] + params["fc1_b"]           # dropout3: identity
    return d1 @ params["fc2_w"] + params["fc2_b"]


# ----------------------------------------------------------------------------- params

def init_params(key, input_size, h1, h2, dense_units):
    ks = jax.random.split(key, 12)
    u = lambda k, shape, s: jax.random.uniform(k, shape, jnp.float32, -s, s)
    s1 = 1.0 / jnp.sqrt(jnp.float32(h1))
    s2 = 1.0 / jnp.sqrt(jnp.float32(h2))
    sd = 1.0 / jnp.sqrt(jnp.float32(dense_units))
    return {
        # LSTM weights stored transposed for right-multiplication; gate order [i, f, g, o];
        # b_ih + b_hh folded into a single bias per layer.
        "wih1": u(ks[0], (input_size, 4 * h1), s1),
        "whh1": u(ks[1], (h1, 4 * h1), s1),
        "b1":   u(ks[2], (4 * h1,), s1),
        "wih2": u(ks[3], (h1, 4 * h2), s2),
        "whh2": u(ks[4], (h2, 4 * h2), s2),
        "b2":   u(ks[5], (4 * h2,), s2),
        "ln1_g": jnp.ones((h1,), jnp.float32),
        "ln1_b": jnp.zeros((h1,), jnp.float32),
        "ln2_g": jnp.ones((h2,), jnp.float32),
        "ln2_b": jnp.zeros((h2,), jnp.float32),
        "fc1_w": u(ks[6], (h2, dense_units), s2),
        "fc1_b": u(ks[7], (dense_units,), s2),
        "fc2_w": u(ks[8], (dense_units, 1), sd),
        "fc2_b": u(ks[9], (1,), sd),
    }


if __name__ == "__main__":
    B, T, I = 2, 8, 4          # batch, seq_len, input_size
    H1, H2, D = 32, 32, 16     # lstm_units_1, lstm_units_2, dense_units

    key = jax.random.PRNGKey(0)
    kx, kp = jax.random.split(key)
    x = jax.random.normal(kx, (B, T, I), jnp.float32)
    params = init_params(kp, I, H1, H2, D)

    out = stacked_lstm_forward(x, params)
    out = jax.block_until_ready(out)

    ref = reference_forward(x, params)
    assert out.shape == (B, 1)
    # Tolerance loosened vs f32-only kernel: matmul operands are bf16 on the MXU
    # (accumulation f32), reference is pure f32.
    assert jnp.allclose(out, ref, atol=5e-2, rtol=5e-2), (out, ref)

    print("KERNEL_OK")
</pallas_src>

<mosaic_0001>
module attributes {stable_mosaic.version = 11 : i64} {
  func.func @stacked_lstm_kernel(%arg0: memref<16x4xbf16, #tpu.memory_space<vmem>>, %arg1: memref<4x512xbf16, #tpu.memory_space<vmem>>, %arg2: memref<128x512xbf16, #tpu.memory_space<vmem>>, %arg3: memref<256x512xbf16, #tpu.memory_space<vmem>>, %arg4: memref<128x16xbf16, #tpu.memory_space<vmem>>, %arg5: memref<9x512xf32, #tpu.memory_space<vmem>>, %arg6: memref<2x1xf32, #tpu.memory_space<vmem>>) attributes {dimension_semantics = [], scalar_prefetch = 0 : i64, scratch_operands = 0 : i64, tpu.core_type = #tpu.core_type<tc>} {
    %c0 = arith.constant 0 : index
    %c0_0 = arith.constant 0 : index
    %0 = vector.load %arg5[%c0, %c0_0] : memref<9x512xf32, #tpu.memory_space<vmem>>, vector<1x512xf32>
    %c1 = arith.constant 1 : index
    %c0_1 = arith.constant 0 : index
    %1 = vector.load %arg5[%c1, %c0_1] : memref<9x512xf32, #tpu.memory_space<vmem>>, vector<1x512xf32>
    %c2 = arith.constant 2 : index
    %c0_2 = arith.constant 0 : index
    %2 = vector.load %arg5[%c2, %c0_2] : memref<9x512xf32, #tpu.memory_space<vmem>>, vector<1x128xf32>
    %c3 = arith.constant 3 : index
    %c0_3 = arith.constant 0 : index
    %3 = vector.load %arg5[%c3, %c0_3] : memref<9x512xf32, #tpu.memory_space<vmem>>, vector<1x128xf32>
    %c4 = arith.constant 4 : index
    %c0_4 = arith.constant 0 : index
    %4 = vector.load %arg5[%c4, %c0_4] : memref<9x512xf32, #tpu.memory_space<vmem>>, vector<1x128xf32>
    %c5 = arith.constant 5 : index
    %c0_5 = arith.constant 0 : index
    %5 = vector.load %arg5[%c5, %c0_5] : memref<9x512xf32, #tpu.memory_space<vmem>>, vector<1x128xf32>
    %c6 = arith.constant 6 : index
    %c0_6 = arith.constant 0 : index
    %6 = vector.load %arg5[%c6, %c0_6] : memref<9x512xf32, #tpu.memory_space<vmem>>, vector<1x16xf32>
    %c7 = arith.constant 7 : index
    %c0_7 = arith.constant 0 : index
    %7 = vector.load %arg5[%c7, %c0_7] : memref<9x512xf32, #tpu.memory_space<vmem>>, vector<1x16xf32>
    %c8 = arith.constant 8 : index
    %c0_8 = arith.constant 0 : index
    %8 = vector.load %arg5[%c8, %c0_8] : memref<9x512xf32, #tpu.memory_space<vmem>>, vector<1x1xf32>
    %c0_9 = arith.constant 0 : index
    %c0_10 = arith.constant 0 : index
    %9 = vector.load %arg0[%c0_9, %c0_10] : memref<16x4xbf16, #tpu.memory_space<vmem>>, vector<16x4xbf16>
    %c0_11 = arith.constant 0 : index
    %c0_12 = arith.constant 0 : index
    %10 = vector.load %arg1[%c0_11, %c0_12] : memref<4x512xbf16, #tpu.memory_space<vmem>>, vector<4x512xbf16>
    %cst = arith.constant dense<0.000000e+00> : vector<16x512xf32>
    %11 = tpu.matmul %9, %10, %cst {dimension_numbers = #tpu.dot_dimension_numbers<[1], [0], [0], [1], [0, 0, 1, 1], [], []>} : vector<16x4xbf16>, vector<4x512xbf16>, vector<16x512xf32> -> vector<16x512xf32>
    %12 = vector.broadcast %0 : vector<1x512xf32> to vector<16x512xf32>
    %13 = arith.addf %11, %12 : vector<16x512xf32>
    %cst_13 = arith.constant 0.000000e+00 : f32
    %14 = vector.broadcast %cst_13 : f32 to vector<2x128xf32>
    %cst_14 = arith.constant 0.000000e+00 : f32
    %15 = vector.broadcast %cst_14 : f32 to vector<2x128xf32>
    %cst_15 = arith.constant 0.000000e+00 : f32
    %16 = vector.broadcast %cst_15 : f32 to vector<2x128xf32>
    %cst_16 = arith.constant 0.000000e+00 : f32
    %17 = vector.broadcast %cst_16 : f32 to vector<2x128xf32>
    %18 = vector.extract_strided_slice %13 {offsets = [0, 0], sizes = [2, 512], strides = [1, 1]} : vector<16x512xf32> to vector<2x512xf32>
    %19 = arith.truncf %14 : vector<2x128xf32> to vector<2x128xbf16>
    %c0_17 = arith.constant 0 : index
    %c0_18 = arith.constant 0 : index
    %20 = vector.load %arg2[%c0_17, %c0_18] : memref<128x512xbf16, #tpu.memory_space<vmem>>, vector<128x512xbf16>
    %cst_19 = arith.constant dense<0.000000e+00> : vector<2x512xf32>
    %21 = tpu.matmul %19, %20, %cst_19 {dimension_numbers = #tpu.dot_dimension_numbers<[1], [0], [0], [1], [0, 0, 1, 1], [], []>} : vector<2x128xbf16>, vector<128x512xbf16>, vector<2x512xf32> -> vector<2x512xf32>
    %22 = arith.addf %18, %21 : vector<2x512xf32>
    %23 = vector.extract_strided_slice %22 {offsets = [0, 0], sizes = [2, 384], strides = [1, 1]} : vector<2x512xf32> to vector<2x384xf32>
    %24 = arith.negf %23 : vector<2x384xf32>
    %25 = math.exp %24 : vector<2x384xf32>
    %cst_20 = arith.constant 1.000000e+00 : f32
    %26 = vector.broadcast %cst_20 : f32 to vector<2x384xf32>
    %27 = arith.addf %26, %25 : vector<2x384xf32>
    %28 = arith.divf %26, %27 : vector<2x384xf32>
    %29 = vector.extract_strided_slice %28 {offsets = [0, 0], sizes = [2, 128], strides = [1, 1]} : vector<2x384xf32> to vector<2x128xf32>
    %30 = vector.extract_strided_slice %28 {offsets = [0, 128], sizes = [2, 128], strides = [1, 1]} : vector<2x384xf32> to vector<2x128xf32>
    %31 = vector.extract_strided_slice %28 {offsets = [0, 256], sizes = [2, 128], strides = [1, 1]} : vector<2x384xf32> to vector<2x128xf32>
    %32 = vector.extract_strided_slice %22 {offsets = [0, 384], sizes = [2, 128], strides = [1, 1]} : vector<2x512xf32> to vector<2x128xf32>
    %33 = math.tanh %32 : vector<2x128xf32>
    %34 = arith.mulf %30, %15 : vector<2x128xf32>
    %35 = arith.mulf %29, %33 : vector<2x128xf32>
    %36 = arith.addf %34, %35 : vector<2x128xf32>
    %37 = math.tanh %36 : vector<2x128xf32>
    %38 = arith.mulf %31, %37 : vector<2x128xf32>
    %cst_21 = arith.constant dense<0.000000e+00> : vector<2xf32>
    %39 = vector.multi_reduction <add>, %38, %cst_21 [1] : vector<2x128xf32> to vector<2xf32>
    %40 = vector.shape_cast %39 : vector<2xf32> to vector<2x1xf32>
    %cst_22 = arith.constant 3.125000e-02 : f32
    %41 = vector.broadcast %cst_22 : f32 to vector<2x1xf32>
    %42 = arith.mulf %40, %41 : vector<2x1xf32>
    %43 = vector.broadcast %42 : vector<2x1xf32> to vector<2x128xf32>
    %44 = arith.subf %38, %43 : vector<2x128xf32>
    %45 = arith.mulf %44, %44 : vector<2x128xf32>
    %cst_23 = arith.constant dense<0.000000e+00> : vector<2xf32>
    %46 = vector.multi_reduction <add>, %45, %cst_23 [1] : vector<2x128xf32> to vector<2xf32>
    %47 = vector.shape_cast %46 : vector<2xf32> to vector<2x1xf32>
    %48 = arith.mulf %42, %42 : vector<2x1xf32>
    %cst_24 = arith.constant 9.600000e+01 : f32
    %49 = vector.broadcast %cst_24 : f32 to vector<2x1xf32>
    %50 = arith.mulf %49, %48 : vector<2x1xf32>
    %51 = arith.subf %47, %50 : vector<2x1xf32>
    %cst_25 = arith.constant 3.125000e-02 : f32
    %52 = vector.broadcast %cst_25 : f32 to vector<2x1xf32>
    %53 = arith.mulf %51, %52 : vector<2x1xf32>
    %cst_26 = arith.constant 9.99999974E-6 : f32
    %54 = vector.broadcast %cst_26 : f32 to vector<2x1xf32>
    %55 = arith.addf %53, %54 : vector<2x1xf32>
    %56 = math.rsqrt %55 : vector<2x1xf32>
    %57 = vector.broadcast %56 : vector<2x1xf32> to vector<2x128xf32>
    %58 = arith.mulf %44, %57 : vector<2x128xf32>
    %59 = vector.broadcast %2 : vector<1x128xf32> to vector<2x128xf32>
    %60 = arith.mulf %58, %59 : vector<2x128xf32>
    %61 = vector.broadcast %3 : vector<1x128xf32> to vector<2x128xf32>
    %62 = arith.addf %60, %61 : vector<2x128xf32>
    %63 = arith.truncf %62 : vector<2x128xf32> to vector<2x128xbf16>
    %64 = arith.truncf %16 : vector<2x128xf32> to vector<2x128xbf16>
    %65 = tpu.concatenate %63, %64 in 1 : vector<2x128xbf16>, vector<2x128xbf16> -> vector<2x256xbf16>
    %c0_27 = arith.constant 0 : index
    %c0_28 = arith.constant 0 : index
    %66 = vector.load %arg3[%c0_27, %c0_28] : memref<256x512xbf16, #tpu.memory_space<vmem>>, vector<256x512xbf16>
    %cst_29 = arith.constant dense<0.000000e+00> : vector<2x512xf32>
    %67 = tpu.matmul %65, %66, %cst_29 {dimension_numbers = #tpu.dot_dimension_numbers<[1], [0], [0], [1], [0, 0, 1, 1], [], []>} : vector<2x256xbf16>, vector<256x512xbf16>, vector<2x512xf32> -> vector<2x512xf32>
    %68 = vector.broadcast %1 : vector<1x512xf32> to vector<2x512xf32>
    %69 = arith.addf %67, %68 : vector<2x512xf32>
    %70 = vector.extract_strided_slice %69 {offsets = [0, 0], sizes = [2, 384], strides = [1, 1]} : vector<2x512xf32> to vector<2x384xf32>
    %71 = arith.negf %70 : vector<2x384xf32>
    %72 = math.exp %71 : vector<2x384xf32>
    %cst_30 = arith.constant 1.000000e+00 : f32
    %73 = vector.broadcast %cst_30 : f32 to vector<2x384xf32>
    %74 = arith.addf %73, %72 : vector<2x384xf32>
    %75 = arith.divf %73, %74 : vector<2x384xf32>
    %76 = vector.extract_strided_slice %75 {offsets = [0, 0], sizes = [2, 128], strides = [1, 1]} : vector<2x384xf32> to vector<2x128xf32>
    %77 = vector.extract_strided_slice %75 {offsets = [0, 128], sizes = [2, 128], strides = [1, 1]} : vector<2x384xf32> to vector<2x128xf32>
    %78 = vector.extract_strided_slice %75 {offsets = [0, 256], sizes = [2, 128], strides = [1, 1]} : vector<2x384xf32> to vector<2x128xf32>
    %79 = vector.extract_strided_slice %69 {offsets = [0, 384], sizes = [2, 128], strides = [1, 1]} : vector<2x512xf32> to vector<2x128xf32>
    %80 = math.tanh %79 : vector<2x128xf32>
    %81 = arith.mulf %77, %17 : vector<2x128xf32>
    %82 = arith.mulf %76, %80 : vector<2x128xf32>
    %83 = arith.addf %81, %82 : vector<2x128xf32>
    %84 = math.tanh %83 : vector<2x128xf32>
    %85 = arith.mulf %78, %84 : vector<2x128xf32>
    %86 = vector.extract_strided_slice %13 {offsets = [2, 0], sizes = [2, 512], strides = [1, 1]} : vector<16x512xf32> to vector<2x512xf32>
    %87 = arith.truncf %38 : vector<2x128xf32> to vector<2x128xbf16>
    %c0_31 = arith.constant 0 : index
    %c0_32 = arith.constant 0 : index
    %88 = vector.load %arg2[%c0_31, %c0_32] : memref<128x512xbf16, #tpu.memory_space<vmem>>, vector<128x512xbf16>
    %cst_33 = arith.constant dense<0.000000e+00> : vector<2x512xf32>
    %89 = tpu.matmul %87, %88, %cst_33 {dimension_numbers = #tpu.dot_dimension_numbers<[1], [0], [0], [1], [0, 0, 1, 1], [], []>} : vector<2x128xbf16>, vector<128x512xbf16>, vector<2x512xf32> -> vector<2x512xf32>
    %90 = arith.addf %86, %89 : vector<2x512xf32>
    %91 = vector.extract_strided_slice %90 {offsets = [0, 0], sizes = [2, 384], strides = [1, 1]} : vector<2x512xf32> to vector<2x384xf32>
    %92 = arith.negf %91 : vector<2x384xf32>
    %93 = math.exp %92 : vector<2x384xf32>
    %cst_34 = arith.constant 1.000000e+00 : f32
    %94 = vector.broadcast %cst_34 : f32 to vector<2x384xf32>
    %95 = arith.addf %94, %93 : vector<2x384xf32>
    %96 = arith.divf %94, %95 : vector<2x384xf32>
    %97 = vector.extract_strided_slice %96 {offsets = [0, 0], sizes = [2, 128], strides = [1, 1]} : vector<2x384xf32> to vector<2x128xf32>
    %98 = vector.extract_strided_slice %96 {offsets = [0, 128], sizes = [2, 128], strides = [1, 1]} : vector<2x384xf32> to vector<2x128xf32>
    %99 = vector.extract_strided_slice %96 {offsets = [0, 256], sizes = [2, 128], strides = [1, 1]} : vector<2x384xf32> to vector<2x128xf32>
    %100 = vector.extract_strided_slice %90 {offsets = [0, 384], sizes = [2, 128], strides = [1, 1]} : vector<2x512xf32> to vector<2x128xf32>
    %101 = math.tanh %100 : vector<2x128xf32>
    %102 = arith.mulf %98, %36 : vector<2x128xf32>
    %103 = arith.mulf %97, %101 : vector<2x128xf32>
    %104 = arith.addf %102, %103 : vector<2x128xf32>
    %105 = math.tanh %104 : vector<2x128xf32>
    %106 = arith.mulf %99, %105 : vector<2x128xf32>
    %cst_35 = arith.constant dense<0.000000e+00> : vector<2xf32>
    %107 = vector.multi_reduction <add>, %106, %cst_35 [1] : vector<2x128xf32> to vector<2xf32>
    %108 = vector.shape_cast %107 : vector<2xf32> to vector<2x1xf32>
    %cst_36 = arith.constant 3.125000e-02 : f32
    %109 = vector.broadcast %cst_36 : f32 to vector<2x1xf32>
    %110 = arith.mulf %108, %109 : vector<2x1xf32>
    %111 = vector.broadcast %110 : vector<2x1xf32> to vector<2x128xf32>
    %112 = arith.subf %106, %111 : vector<2x128xf32>
    %113 = arith.mulf %112, %112 : vector<2x128xf32>
    %cst_37 = arith.constant dense<0.000000e+00> : vector<2xf32>
    %114 = vector.multi_reduction <add>, %113, %cst_37 [1] : vector<2x128xf32> to vector<2xf32>
    %115 = vector.shape_cast %114 : vector<2xf32> to vector<2x1xf32>
    %116 = arith.mulf %110, %110 : vector<2x1xf32>
    %cst_38 = arith.constant 9.600000e+01 : f32
    %117 = vector.broadcast %cst_38 : f32 to vector<2x1xf32>
    %118 = arith.mulf %117, %116 : vector<2x1xf32>
    %119 = arith.subf %115, %118 : vector<2x1xf32>
    %cst_39 = arith.constant 3.125000e-02 : f32
    %120 = vector.broadcast %cst_39 : f32 to vector<2x1xf32>
    %121 = arith.mulf %119, %120 : vector<2x1xf32>
    %cst_40 = arith.constant 9.99999974E-6 : f32
    %122 = vector.broadcast %cst_40 : f32 to vector<2x1xf32>
    %123 = arith.addf %121, %122 : vector<2x1xf32>
    %124 = math.rsqrt %123 : vector<2x1xf32>
    %125 = vector.broadcast %124 : vector<2x1xf32> to vector<2x128xf32>
    %126 = arith.mulf %112, %125 : vector<2x128xf32>
    %127 = vector.broadcast %2 : vector<1x128xf32> to vector<2x128xf32>
    %128 = arith.mulf %126, %127 : vector<2x128xf32>
    %129 = vector.broadcast %3 : vector<1x128xf32> to vector<2x128xf32>
    %130 = arith.addf %128, %129 : vector<2x128xf32>
    %131 = arith.truncf %130 : vector<2x128xf32> to vector<2x128xbf16>
    %132 = arith.truncf %85 : vector<2x128xf32> to vector<2x128xbf16>
    %133 = tpu.concatenate %131, %132 in 1 : vector<2x128xbf16>, vector<2x128xbf16> -> vector<2x256xbf16>
    %c0_41 = arith.constant 0 : index
    %c0_42 = arith.constant 0 : index
    %134 = vector.load %arg3[%c0_41, %c0_42] : memref<256x512xbf16, #tpu.memory_space<vmem>>, vector<256x512xbf16>
    %cst_43 = arith.constant dense<0.000000e+00> : vector<2x512xf32>
    %135 = tpu.matmul %133, %134, %cst_43 {dimension_numbers = #tpu.dot_dimension_numbers<[1], [0], [0], [1], [0, 0, 1, 1], [], []>} : vector<2x256xbf16>, vector<256x512xbf16>, vector<2x512xf32> -> vector<2x512xf32>
    %136 = vector.broadcast %1 : vector<1x512xf32> to vector<2x512xf32>
    %137 = arith.addf %135, %136 : vector<2x512xf32>
    %138 = vector.extract_strided_slice %137 {offsets = [0, 0], sizes = [2, 384], strides = [1, 1]} : vector<2x512xf32> to vector<2x384xf32>
    %139 = arith.negf %138 : vector<2x384xf32>
    %140 = math.exp %139 : vector<2x384xf32>
    %cst_44 = arith.constant 1.000000e+00 : f32
    %141 = vector.broadcast %cst_44 : f32 to vector<2x384xf32>
    %142 = arith.addf %141, %140 : vector<2x384xf32>
    %143 = arith.divf %141, %142 : vector<2x384xf32>
    %144 = vector.extract_strided_slice %143 {offsets = [0, 0], sizes = [2, 128], strides = [1, 1]} : vector<2x384xf32> to vector<2x128xf32>
    %145 = vector.extract_strided_slice %143 {offsets = [0, 128], sizes = [2, 128], strides = [1, 1]} : vector<2x384xf32> to vector<2x128xf32>
    %146 = vector.extract_strided_slice %143 {offsets = [0, 256], sizes = [2, 128], strides = [1, 1]} : vector<2x384xf32> to vector<2x128xf32>
    %147 = vector.extract_strided_slice %137 {offsets = [0, 384], sizes = [2, 128], strides = [1, 1]} : vector<2x512xf32> to vector<2x128xf32>
    %148 = math.tanh %147 : vector<2x128xf32>
    %149 = arith.mulf %145, %83 : vector<2x128xf32>
    %150 = arith.mulf %144, %148 : vector<2x128xf32>
    %151 = arith.addf %149, %150 : vector<2x128xf32>
    %152 = math.tanh %151 : vector<2x128xf32>
    %153 = arith.mulf %146, %152 : vector<2x128xf32>
    %154 = vector.extract_strided_slice %13 {offsets = [4, 0], sizes = [2, 512], strides = [1, 1]} : vector<16x512xf32> to vector<2x512xf32>
    %155 = arith.truncf %106 : vector<2x128xf32> to vector<2x128xbf16>
    %c0_45 = arith.constant 0 : index
    %c0_46 = arith.constant 0 : index
    %156 = vector.load %arg2[%c0_45, %c0_46] : memref<128x512xbf16, #tpu.memory_space<vmem>>, vector<128x512xbf16>
    %cst_47 = arith.constant dense<0.000000e+00> : vector<2x512xf32>
    %157 = tpu.matmul %155, %156, %cst_47 {dimension_numbers = #tpu.dot_dimension_numbers<[1], [0], [0], [1], [0, 0, 1, 1], [], []>} : vector<2x128xbf16>, vector<128x512xbf16>, vector<2x512xf32> -> vector<2x512xf32>
    %158 = arith.addf %154, %157 : vector<2x512xf32>
    %159 = vector.extract_strided_slice %158 {offsets = [0, 0], sizes = [2, 384], strides = [1, 1]} : vector<2x512xf32> to vector<2x384xf32>
    %160 = arith.negf %159 : vector<2x384xf32>
    %161 = math.exp %160 : vector<2x384xf32>
    %cst_48 = arith.constant 1.000000e+00 : f32
    %162 = vector.broadcast %cst_48 : f32 to vector<2x384xf32>
    %163 = arith.addf %162, %161 : vector<2x384xf32>
    %164 = arith.divf %162, %163 : vector<2x384xf32>
    %165 = vector.extract_strided_slice %164 {offsets = [0, 0], sizes = [2, 128], strides = [1, 1]} : vector<2x384xf32> to vector<2x128xf32>
    %166 = vector.extract_strided_slice %164 {offsets = [0, 128], sizes = [2, 128], strides = [1, 1]} : vector<2x384xf32> to vector<2x128xf32>
    %167 = vector.extract_strided_slice %164 {offsets = [0, 256], sizes = [2, 128], strides = [1, 1]} : vector<2x384xf32> to vector<2x128xf32>
    %168 = vector.extract_strided_slice %158 {offsets = [0, 384], sizes = [2, 128], strides = [1, 1]} : vector<2x512xf32> to vector<2x128xf32>
    %169 = math.tanh %168 : vector<2x128xf32>
    %170 = arith.mulf %166, %104 : vector<2x128xf32>
    %171 = arith.mulf %165, %169 : vector<2x128xf32>
    %172 = arith.addf %170, %171 : vector<2x128xf32>
    %173 = math.tanh %172 : vector<2x128xf32>
    %174 = arith.mulf %167, %173 : vector<2x128xf32>
    %cst_49 = arith.constant dense<0.000000e+00> : vector<2xf32>
    %175 = vector.multi_reduction <add>, %174, %cst_49 [1] : vector<2x128xf32> to vector<2xf32>
    %176 = vector.shape_cast %175 : vector<2xf32> to vector<2x1xf32>
    %cst_50 = arith.constant 3.125000e-02 : f32
    %177 = vector.broadcast %cst_50 : f32 to vector<2x1xf32>
    %178 = arith.mulf %176, %177 : vector<2x1xf32>
    %179 = vector.broadcast %178 : vector<2x1xf32> to vector<2x128xf32>
    %180 = arith.subf %174, %179 : vector<2x128xf32>
    %181 = arith.mulf %180, %180 : vector<2x128xf32>
    %cst_51 = arith.constant dense<0.000000e+00> : vector<2xf32>
    %182 = vector.multi_reduction <add>, %181, %cst_51 [1] : vector<2x128xf32> to vector<2xf32>
    %183 = vector.shape_cast %182 : vector<2xf32> to vector<2x1xf32>
    %184 = arith.mulf %178, %178 : vector<2x1xf32>
    %cst_52 = arith.constant 9.600000e+01 : f32
    %185 = vector.broadcast %cst_52 : f32 to vector<2x1xf32>
    %186 = arith.mulf %185, %184 : vector<2x1xf32>
    %187 = arith.subf %183, %186 : vector<2x1xf32>
    %cst_53 = arith.constant 3.125000e-02 : f32
    %188 = vector.broadcast %cst_53 : f32 to vector<2x1xf32>
    %189 = arith.mulf %187, %188 : vector<2x1xf32>
    %cst_54 = arith.constant 9.99999974E-6 : f32
    %190 = vector.broadcast %cst_54 : f32 to vector<2x1xf32>
    %191 = arith.addf %189, %190 : vector<2x1xf32>
    %192 = math.rsqrt %191 : vector<2x1xf32>
    %193 = vector.broadcast %192 : vector<2x1xf32> to vector<2x128xf32>
    %194 = arith.mulf %180, %193 : vector<2x128xf32>
    %195 = vector.broadcast %2 : vector<1x128xf32> to vector<2x128xf32>
    %196 = arith.mulf %194, %195 : vector<2x128xf32>
    %197 = vector.broadcast %3 : vector<1x128xf32> to vector<2x128xf32>
    %198 = arith.addf %196, %197 : vector<2x128xf32>
    %199 = arith.truncf %198 : vector<2x128xf32> to vector<2x128xbf16>
    %200 = arith.truncf %153 : vector<2x128xf32> to vector<2x128xbf16>
    %201 = tpu.concatenate %199, %200 in 1 : vector<2x128xbf16>, vector<2x128xbf16> -> vector<2x256xbf16>
    %c0_55 = arith.constant 0 : index
    %c0_56 = arith.constant 0 : index
    %202 = vector.load %arg3[%c0_55, %c0_56] : memref<256x512xbf16, #tpu.memory_space<vmem>>, vector<256x512xbf16>
    %cst_57 = arith.constant dense<0.000000e+00> : vector<2x512xf32>
    %203 = tpu.matmul %201, %202, %cst_57 {dimension_numbers = #tpu.dot_dimension_numbers<[1], [0], [0], [1], [0, 0, 1, 1], [], []>} : vector<2x256xbf16>, vector<256x512xbf16>, vector<2x512xf32> -> vector<2x512xf32>
    %204 = vector.broadcast %1 : vector<1x512xf32> to vector<2x512xf32>
    %205 = arith.addf %203, %204 : vector<2x512xf32>
    %206 = vector.extract_strided_slice %205 {offsets = [0, 0], sizes = [2, 384], strides = [1, 1]} : vector<2x512xf32> to vector<2x384xf32>
    %207 = arith.negf %206 : vector<2x384xf32>
    %208 = math.exp %207 : vector<2x384xf32>
    %cst_58 = arith.constant 1.000000e+00 : f32
    %209 = vector.broadcast %cst_58 : f32 to vector<2x384xf32>
    %210 = arith.addf %209, %208 : vector<2x384xf32>
    %211 = arith.divf %209, %210 : vector<2x384xf32>
    %212 = vector.extract_strided_slice %211 {offsets = [0, 0], sizes = [2, 128], strides = [1, 1]} : vector<2x384xf32> to vector<2x128xf32>
    %213 = vector.extract_strided_slice %211 {offsets = [0, 128], sizes = [2, 128], strides = [1, 1]} : vector<2x384xf32> to vector<2x128xf32>
    %214 = vector.extract_strided_slice %211 {offsets = [0, 256], sizes = [2, 128], strides = [1, 1]} : vector<2x384xf32> to vector<2x128xf32>
    %215 = vector.extract_strided_slice %205 {offsets = [0, 384], sizes = [2, 128], strides = [1, 1]} : vector<2x512xf32> to vector<2x128xf32>
    %216 = math.tanh %215 : vector<2x128xf32>
    %217 = arith.mulf %213, %151 : vector<2x128xf32>
    %218 = arith.mulf %212, %216 : vector<2x128xf32>
    %219 = arith.addf %217, %218 : vector<2x128xf32>
    %220 = math.tanh %219 : vector<2x128xf32>
    %221 = arith.mulf %214, %220 : vector<2x128xf32>
    %222 = vector.extract_strided_slice %13 {offsets = [6, 0], sizes = [2, 512], strides = [1, 1]} : vector<16x512xf32> to vector<2x512xf32>
    %223 = arith.truncf %174 : vector<2x128xf32> to vector<2x128xbf16>
    %c0_59 = arith.constant 0 : index
    %c0_60 = arith.constant 0 : index
    %224 = vector.load %arg2[%c0_59, %c0_60] : memref<128x512xbf16, #tpu.memory_space<vmem>>, vector<128x512xbf16>
    %cst_61 = arith.constant dense<0.000000e+00> : vector<2x512xf32>
    %225 = tpu.matmul %223, %224, %cst_61 {dimension_numbers = #tpu.dot_dimension_numbers<[1], [0], [0], [1], [0, 0, 1, 1], [], []>} : vector<2x128xbf16>, vector<128x512xbf16>, vector<2x512xf32> -> vector<2x512xf32>
    %226 = arith.addf %222, %225 : vector<2x512xf32>
    %227 = vector.extract_strided_slice %226 {offsets = [0, 0], sizes = [2, 384], strides = [1, 1]} : vector<2x512xf32> to vector<2x384xf32>
    %228 = arith.negf %227 : vector<2x384xf32>
    %229 = math.exp %228 : vector<2x384xf32>
    %cst_62 = arith.constant 1.000000e+00 : f32
    %230 = vector.broadcast %cst_62 : f32 to vector<2x384xf32>
    %231 = arith.addf %230, %229 : vector<2x384xf32>
    %232 = arith.divf %230, %231 : vector<2x384xf32>
    %233 = vector.extract_strided_slice %232 {offsets = [0, 0], sizes = [2, 128], strides = [1, 1]} : vector<2x384xf32> to vector<2x128xf32>
    %234 = vector.extract_strided_slice %232 {offsets = [0, 128], sizes = [2, 128], strides = [1, 1]} : vector<2x384xf32> to vector<2x128xf32>
    %235 = vector.extract_strided_slice %232 {offsets = [0, 256], sizes = [2, 128], strides = [1, 1]} : vector<2x384xf32> to vector<2x128xf32>
    %236 = vector.extract_strided_slice %226 {offsets = [0, 384], sizes = [2, 128], strides = [1, 1]} : vector<2x512xf32> to vector<2x128xf32>
    %237 = math.tanh %236 : vector<2x128xf32>
    %238 = arith.mulf %234, %172 : vector<2x128xf32>
    %239 = arith.mulf %233, %237 : vector<2x128xf32>
    %240 = arith.addf %238, %239 : vector<2x128xf32>
    %241 = math.tanh %240 : vector<2x128xf32>
    %242 = arith.mulf %235, %241 : vector<2x128xf32>
    %cst_63 = arith.constant dense<0.000000e+00> : vector<2xf32>
    %243 = vector.multi_reduction <add>, %242, %cst_63 [1] : vector<2x128xf32> to vector<2xf32>
    %244 = vector.shape_cast %243 : vector<2xf32> to vector<2x1xf32>
    %cst_64 = arith.constant 3.125000e-02 : f32
    %245 = vector.broadcast %cst_64 : f32 to vector<2x1xf32>
    %246 = arith.mulf %244, %245 : vector<2x1xf32>
    %247 = vector.broadcast %246 : vector<2x1xf32> to vector<2x128xf32>
    %248 = arith.subf %242, %247 : vector<2x128xf32>
    %249 = arith.mulf %248, %248 : vector<2x128xf32>
    %cst_65 = arith.constant dense<0.000000e+00> : vector<2xf32>
    %250 = vector.multi_reduction <add>, %249, %cst_65 [1] : vector<2x128xf32> to vector<2xf32>
    %251 = vector.shape_cast %250 : vector<2xf32> to vector<2x1xf32>
    %252 = arith.mulf %246, %246 : vector<2x1xf32>
    %cst_66 = arith.constant 9.600000e+01 : f32
    %253 = vector.broadcast %cst_66 : f32 to vector<2x1xf32>
    %254 = arith.mulf %253, %252 : vector<2x1xf32>
    %255 = arith.subf %251, %254 : vector<2x1xf32>
    %cst_67 = arith.constant 3.125000e-02 : f32
    %256 = vector.broadcast %cst_67 : f32 to vector<2x1xf32>
    %257 = arith.mulf %255, %256 : vector<2x1xf32>
    %cst_68 = arith.constant 9.99999974E-6 : f32
    %258 = vector.broadcast %cst_68 : f32 to vector<2x1xf32>
    %259 = arith.addf %257, %258 : vector<2x1xf32>
    %260 = math.rsqrt %259 : vector<2x1xf32>
    %261 = vector.broadcast %260 : vector<2x1xf32> to vector<2x128xf32>
    %262 = arith.mulf %248, %261 : vector<2x128xf32>
    %263 = vector.broadcast %2 : vector<1x128xf32> to vector<2x128xf32>
    %264 = arith.mulf %262, %263 : vector<2x128xf32>
    %265 = vector.broadcast %3 : vector<1x128xf32> to vector<2x128xf32>
    %266 = arith.addf %264, %265 : vector<2x128xf32>
    %267 = arith.truncf %266 : vector<2x128xf32> to vector<2x128xbf16>
    %268 = arith.truncf %221 : vector<2x128xf32> to vector<2x128xbf16>
    %269 = tpu.concatenate %267, %268 in 1 : vector<2x128xbf16>, vector<2x128xbf16> -> vector<2x256xbf16>
    %c0_69 = arith.constant 0 : index
    %c0_70 = arith.constant 0 : index
    %270 = vector.load %arg3[%c0_69, %c0_70] : memref<256x512xbf16, #tpu.memory_space<vmem>>, vector<256x512xbf16>
    %cst_71 = arith.constant dense<0.000000e+00> : vector<2x512xf32>
    %271 = tpu.matmul %269, %270, %cst_71 {dimension_numbers = #tpu.dot_dimension_numbers<[1], [0], [0], [1], [0, 0, 1, 1], [], []>} : vector<2x256xbf16>, vector<256x512xbf16>, vector<2x512xf32> -> vector<2x512xf32>
    %272 = vector.broadcast %1 : vector<1x512xf32> to vector<2x512xf32>
    %273 = arith.addf %271, %272 : vector<2x512xf32>
    %274 = vector.extract_strided_slice %273 {offsets = [0, 0], sizes = [2, 384], strides = [1, 1]} : vector<2x512xf32> to vector<2x384xf32>
    %275 = arith.negf %274 : vector<2x384xf32>
    %276 = math.exp %275 : vector<2x384xf32>
    %cst_72 = arith.constant 1.000000e+00 : f32
    %277 = vector.broadcast %cst_72 : f32 to vector<2x384xf32>
    %278 = arith.addf %277, %276 : vector<2x384xf32>
    %279 = arith.divf %277, %278 : vector<2x384xf32>
    %280 = vector.extract_strided_slice %279 {offsets = [0, 0], sizes = [2, 128], strides = [1, 1]} : vector<2x384xf32> to vector<2x128xf32>
    %281 = vector.extract_strided_slice %279 {offsets = [0, 128], sizes = [2, 128], strides = [1, 1]} : vector<2x384xf32> to vector<2x128xf32>
    %282 = vector.extract_strided_slice %279 {offsets = [0, 256], sizes = [2, 128], strides = [1, 1]} : vector<2x384xf32> to vector<2x128xf32>
    %283 = vector.extract_strided_slice %273 {offsets = [0, 384], sizes = [2, 128], strides = [1, 1]} : vector<2x512xf32> to vector<2x128xf32>
    %284 = math.tanh %283 : vector<2x128xf32>
    %285 = arith.mulf %281, %219 : vector<2x128xf32>
    %286 = arith.mulf %280, %284 : vector<2x128xf32>
    %287 = arith.addf %285, %286 : vector<2x128xf32>
    %288 = math.tanh %287 : vector<2x128xf32>
    %289 = arith.mulf %282, %288 : vector<2x128xf32>
    %290 = vector.extract_strided_slice %13 {offsets = [8, 0], sizes = [2, 512], strides = [1, 1]} : vector<16x512xf32> to vector<2x512xf32>
    %291 = arith.truncf %242 : vector<2x128xf32> to vector<2x128xbf16>
    %c0_73 = arith.constant 0 : index
    %c0_74 = arith.constant 0 : index
    %292 = vector.load %arg2[%c0_73, %c0_74] : memref<128x512xbf16, #tpu.memory_space<vmem>>, vector<128x512xbf16>
    %cst_75 = arith.constant dense<0.000000e+00> : vector<2x512xf32>
    %293 = tpu.matmul %291, %292, %cst_75 {dimension_numbers = #tpu.dot_dimension_numbers<[1], [0], [0], [1], [0, 0, 1, 1], [], []>} : vector<2x128xbf16>, vector<128x512xbf16>, vector<2x512xf32> -> vector<2x512xf32>
    %294 = arith.addf %290, %293 : vector<2x512xf32>
    %295 = vector.extract_strided_slice %294 {offsets = [0, 0], sizes = [2, 384], strides = [1, 1]} : vector<2x512xf32> to vector<2x384xf32>
    %296 = arith.negf %295 : vector<2x384xf32>
    %297 = math.exp %296 : vector<2x384xf32>
    %cst_76 = arith.constant 1.000000e+00 : f32
    %298 = vector.broadcast %cst_76 : f32 to vector<2x384xf32>
    %299 = arith.addf %298, %297 : vector<2x384xf32>
    %300 = arith.divf %298, %299 : vector<2x384xf32>
    %301 = vector.extract_strided_slice %300 {offsets = [0, 0], sizes = [2, 128], strides = [1, 1]} : vector<2x384xf32> to vector<2x128xf32>
    %302 = vector.extract_strided_slice %300 {offsets = [0, 128], sizes = [2, 128], strides = [1, 1]} : vector<2x384xf32> to vector<2x128xf32>
    %303 = vector.extract_strided_slice %300 {offsets = [0, 256], sizes = [2, 128], strides = [1, 1]} : vector<2x384xf32> to vector<2x128xf32>
    %304 = vector.extract_strided_slice %294 {offsets = [0, 384], sizes = [2, 128], strides = [1, 1]} : vector<2x512xf32> to vector<2x128xf32>
    %305 = math.tanh %304 : vector<2x128xf32>
    %306 = arith.mulf %302, %240 : vector<2x128xf32>
    %307 = arith.mulf %301, %305 : vector<2x128xf32>
    %308 = arith.addf %306, %307 : vector<2x128xf32>
    %309 = math.tanh %308 : vector<2x128xf32>
    %310 = arith.mulf %303, %309 : vector<2x128xf32>
    %cst_77 = arith.constant dense<0.000000e+00> : vector<2xf32>
    %311 = vector.multi_reduction <add>, %310, %cst_77 [1] : vector<2x128xf32> to vector<2xf32>
    %312 = vector.shape_cast %311 : vector<2xf32> to vector<2x1xf32>
    %cst_78 = arith.constant 3.125000e-02 : f32
    %313 = vector.broadcast %cst_78 : f32 to vector<2x1xf32>
    %314 = arith.mulf %312, %313 : vector<2x1xf32>
    %315 = vector.broadcast %314 : vector<2x1xf32> to vector<2x128xf32>
    %316 = arith.subf %310, %315 : vector<2x128xf32>
    %317 = arith.mulf %316, %316 : vector<2x128xf32>
    %cst_79 = arith.constant dense<0.000000e+00> : vector<2xf32>
    %318 = vector.multi_reduction <add>, %317, %cst_79 [1] : vector<2x128xf32> to vector<2xf32>
    %319 = vector.shape_cast %318 : vector<2xf32> to vector<2x1xf32>
    %320 = arith.mulf %314, %314 : vector<2x1xf32>
    %cst_80 = arith.constant 9.600000e+01 : f32
    %321 = vector.broadcast %cst_80 : f32 to vector<2x1xf32>
    %322 = arith.mulf %321, %320 : vector<2x1xf32>
    %323 = arith.subf %319, %322 : vector<2x1xf32>
    %cst_81 = arith.constant 3.125000e-02 : f32
    %324 = vector.broadcast %cst_81 : f32 to vector<2x1xf32>
    %325 = arith.mulf %323, %324 : vector<2x1xf32>
    %cst_82 = arith.constant 9.99999974E-6 : f32
    %326 = vector.broadcast %cst_82 : f32 to vector<2x1xf32>
    %327 = arith.addf %325, %326 : vector<2x1xf32>
    %328 = math.rsqrt %327 : vector<2x1xf32>
    %329 = vector.broadcast %328 : vector<2x1xf32> to vector<2x128xf32>
    %330 = arith.mulf %316, %329 : vector<2x128xf32>
    %331 = vector.broadcast %2 : vector<1x128xf32> to vector<2x128xf32>
    %332 = arith.mulf %330, %331 : vector<2x128xf32>
    %333 = vector.broadcast %3 : vector<1x128xf32> to vector<2x128xf32>
    %334 = arith.addf %332, %333 : vector<2x128xf32>
    %335 = arith.truncf %334 : vector<2x128xf32> to vector<2x128xbf16>
    %336 = arith.truncf %289 : vector<2x128xf32> to vector<2x128xbf16>
    %337 = tpu.concatenate %335, %336 in 1 : vector<2x128xbf16>, vector<2x128xbf16> -> vector<2x256xbf16>
    %c0_83 = arith.constant 0 : index
    %c0_84 = arith.constant 0 : index
    %338 = vector.load %arg3[%c0_83, %c0_84] : memref<256x512xbf16, #tpu.memory_space<vmem>>, vector<256x512xbf16>
    %cst_85 = arith.constant dense<0.000000e+00> : vector<2x512xf32>
    %339 = tpu.matmul %337, %338, %cst_85 {dimension_numbers = #tpu.dot_dimension_numbers<[1], [0], [0], [1], [0, 0, 1, 1], [], []>} : vector<2x256xbf16>, vector<256x512xbf16>, vector<2x512xf32> -> vector<2x512xf32>
    %340 = vector.broadcast %1 : vector<1x512xf32> to vector<2x512xf32>
    %341 = arith.addf %339, %340 : vector<2x512xf32>
    %342 = vector.extract_strided_slice %341 {offsets = [0, 0], sizes = [2, 384], strides = [1, 1]} : vector<2x512xf32> to vector<2x384xf32>
    %343 = arith.negf %342 : vector<2x384xf32>
    %344 = math.exp %343 : vector<2x384xf32>
    %cst_86 = arith.constant 1.000000e+00 : f32
    %345 = vector.broadcast %cst_86 : f32 to vector<2x384xf32>
    %346 = arith.addf %345, %344 : vector<2x384xf32>
    %347 = arith.divf %345, %346 : vector<2x384xf32>
    %348 = vector.extract_strided_slice %347 {offsets = [0, 0], sizes = [2, 128], strides = [1, 1]} : vector<2x384xf32> to vector<2x128xf32>
    %349 = vector.extract_strided_slice %347 {offsets = [0, 128], sizes = [2, 128], strides = [1, 1]} : vector<2x384xf32> to vector<2x128xf32>
    %350 = vector.extract_strided_slice %347 {offsets = [0, 256], sizes = [2, 128], strides = [1, 1]} : vector<2x384xf32> to vector<2x128xf32>
    %351 = vector.extract_strided_slice %341 {offsets = [0, 384], sizes = [2, 128], strides = [1, 1]} : vector<2x512xf32> to vector<2x128xf32>
    %352 = math.tanh %351 : vector<2x128xf32>
    %353 = arith.mulf %349, %287 : vector<2x128xf32>
    %354 = arith.mulf %348, %352 : vector<2x128xf32>
    %355 = arith.addf %353, %354 : vector<2x128xf32>
    %356 = math.tanh %355 : vector<2x128xf32>
    %357 = arith.mulf %350, %356 : vector<2x128xf32>
    %358 = vector.extract_strided_slice %13 {offsets = [10, 0], sizes = [2, 512], strides = [1, 1]} : vector<16x512xf32> to vector<2x512xf32>
    %359 = arith.truncf %310 : vector<2x128xf32> to vector<2x128xbf16>
    %c0_87 = arith.constant 0 : index
    %c0_88 = arith.constant 0 : index
    %360 = vector.load %arg2[%c0_87, %c0_88] : memref<128x512xbf16, #tpu.memory_space<vmem>>, vector<128x512xbf16>
    %cst_89 = arith.constant dense<0.000000e+00> : vector<2x512xf32>
    %361 = tpu.matmul %359, %360, %cst_89 {dimension_numbers = #tpu.dot_dimension_numbers<[1], [0], [0], [1], [0, 0, 1, 1], [], []>} : vector<2x128xbf16>, vector<128x512xbf16>, vector<2x512xf32> -> vector<2x512xf32>
    %362 = arith.addf %358, %361 : vector<2x512xf32>
    %363 = vector.extract_strided_slice %362 {offsets = [0, 0], sizes = [2, 384], strides = [1, 1]} : vector<2x512xf32> to vector<2x384xf32>
    %364 = arith.negf %363 : vector<2x384xf32>
    %365 = math.exp %364 : vector<2x384xf32>
    %cst_90 = arith.constant 1.000000e+00 : f32
    %366 = vector.broadcast %cst_90 : f32 to vector<2x384xf32>
    %367 = arith.addf %366, %365 : vector<2x384xf32>
    %368 = arith.divf %366, %367 : vector<2x384xf32>
    %369 = vector.extract_strided_slice %368 {offsets = [0, 0], sizes = [2, 128], strides = [1, 1]} : vector<2x384xf32> to vector<2x128xf32>
    %370 = vector.extract_strided_slice %368 {offsets = [0, 128], sizes = [2, 128], strides = [1, 1]} : vector<2x384xf32> to vector<2x128xf32>
    %371 = vector.extract_strided_slice %368 {offsets = [0, 256], sizes = [2, 128], strides = [1, 1]} : vector<2x384xf32> to vector<2x128xf32>
    %372 = vector.extract_strided_slice %362 {offsets = [0, 384], sizes = [2, 128], strides = [1, 1]} : vector<2x512xf32> to vector<2x128xf32>
    %373 = math.tanh %372 : vector<2x128xf32>
    %374 = arith.mulf %370, %308 : vector<2x128xf32>
    %375 = arith.mulf %369, %373 : vector<2x128xf32>
    %376 = arith.addf %374, %375 : vector<2x128xf32>
    %377 = math.tanh %376 : vector<2x128xf32>
    %378 = arith.mulf %371, %377 : vector<2x128xf32>
    %cst_91 = arith.constant dense<0.000000e+00> : vector<2xf32>
    %379 = vector.multi_reduction <add>, %378, %cst_91 [1] : vector<2x128xf32> to vector<2xf32>
    %380 = vector.shape_cast %379 : vector<2xf32> to vector<2x1xf32>
    %cst_92 = arith.constant 3.125000e-02 : f32
    %381 = vector.broadcast %cst_92 : f32 to vector<2x1xf32>
    %382 = arith.mulf %380, %381 : vector<2x1xf32>
    %383 = vector.broadcast %382 : vector<2x1xf32> to vector<2x128xf32>
    %384 = arith.subf %378, %383 : vector<2x128xf32>
    %385 = arith.mulf %384, %384 : vector<2x128xf32>
    %cst_93 = arith.constant dense<0.000000e+00> : vector<2xf32>
    %386 = vector.multi_reduction <add>, %385, %cst_93 [1] : vector<2x128xf32> to vector<2xf32>
    %387 = vector.shape_cast %386 : vector<2xf32> to vector<2x1xf32>
    %388 = arith.mulf %382, %382 : vector<2x1xf32>
    %cst_94 = arith.constant 9.600000e+01 : f32
    %389 = vector.broadcast %cst_94 : f32 to vector<2x1xf32>
    %390 = arith.mulf %389, %388 : vector<2x1xf32>
    %391 = arith.subf %387, %390 : vector<2x1xf32>
    %cst_95 = arith.constant 3.125000e-02 : f32
    %392 = vector.broadcast %cst_95 : f32 to vector<2x1xf32>
    %393 = arith.mulf %391, %392 : vector<2x1xf32>
    %cst_96 = arith.constant 9.99999974E-6 : f32
    %394 = vector.broadcast %cst_96 : f32 to vector<2x1xf32>
    %395 = arith.addf %393, %394 : vector<2x1xf32>
    %396 = math.rsqrt %395 : vector<2x1xf32>
    %397 = vector.broadcast %396 : vector<2x1xf32> to vector<2x128xf32>
    %398 = arith.mulf %384, %397 : vector<2x128xf32>
    %399 = vector.broadcast %2 : vector<1x128xf32> to vector<2x128xf32>
    %400 = arith.mulf %398, %399 : vector<2x128xf32>
    %401 = vector.broadcast %3 : vector<1x128xf32> to vector<2x128xf32>
    %402 = arith.addf %400, %401 : vector<2x128xf32>
    %403 = arith.truncf %402 : vector<2x128xf32> to vector<2x128xbf16>
    %404 = arith.truncf %357 : vector<2x128xf32> to vector<2x128xbf16>
    %405 = tpu.concatenate %403, %404 in 1 : vector<2x128xbf16>, vector<2x128xbf16> -> vector<2x256xbf16>
    %c0_97 = arith.constant 0 : index
    %c0_98 = arith.constant 0 : index
    %406 = vector.load %arg3[%c0_97, %c0_98] : memref<256x512xbf16, #tpu.memory_space<vmem>>, vector<256x512xbf16>
    %cst_99 = arith.constant dense<0.000000e+00> : vector<2x512xf32>
    %407 = tpu.matmul %405, %406, %cst_99 {dimension_numbers = #tpu.dot_dimension_numbers<[1], [0], [0], [1], [0, 0, 1, 1], [], []>} : vector<2x256xbf16>, vector<256x512xbf16>, vector<2x512xf32> -> vector<2x512xf32>
    %408 = vector.broadcast %1 : vector<1x512xf32> to vector<2x512xf32>
    %409 = arith.addf %407, %408 : vector<2x512xf32>
    %410 = vector.extract_strided_slice %409 {offsets = [0, 0], sizes = [2, 384], strides = [1, 1]} : vector<2x512xf32> to vector<2x384xf32>
    %411 = arith.negf %410 : vector<2x384xf32>
    %412 = math.exp %411 : vector<2x384xf32>
    %cst_100 = arith.constant 1.000000e+00 : f32
    %413 = vector.broadcast %cst_100 : f32 to vector<2x384xf32>
    %414 = arith.addf %413, %412 : vector<2x384xf32>
    %415 = arith.divf %413, %414 : vector<2x384xf32>
    %416 = vector.extract_strided_slice %415 {offsets = [0, 0], sizes = [2, 128], strides = [1, 1]} : vector<2x384xf32> to vector<2x128xf32>
    %417 = vector.extract_strided_slice %415 {offsets = [0, 128], sizes = [2, 128], strides = [1, 1]} : vector<2x384xf32> to vector<2x128xf32>
    %418 = vector.extract_strided_slice %415 {offsets = [0, 256], sizes = [2, 128], strides = [1, 1]} : vector<2x384xf32> to vector<2x128xf32>
    %419 = vector.extract_strided_slice %409 {offsets = [0, 384], sizes = [2, 128], strides = [1, 1]} : vector<2x512xf32> to vector<2x128xf32>
    %420 = math.tanh %419 : vector<2x128xf32>
    %421 = arith.mulf %417, %355 : vector<2x128xf32>
    %422 = arith.mulf %416, %420 : vector<2x128xf32>
    %423 = arith.addf %421, %422 : vector<2x128xf32>
    %424 = math.tanh %423 : vector<2x128xf32>
    %425 = arith.mulf %418, %424 : vector<2x128xf32>
    %426 = vector.extract_strided_slice %13 {offsets = [12, 0], sizes = [2, 512], strides = [1, 1]} : vector<16x512xf32> to vector<2x512xf32>
    %427 = arith.truncf %378 : vector<2x128xf32> to vector<2x128xbf16>
    %c0_101 = arith.constant 0 : index
    %c0_102 = arith.constant 0 : index
    %428 = vector.load %arg2[%c0_101, %c0_102] : memref<128x512xbf16, #tpu.memory_space<vmem>>, vector<128x512xbf16>
    %cst_103 = arith.constant dense<0.000000e+00> : vector<2x512xf32>
    %429 = tpu.matmul %427, %428, %cst_103 {dimension_numbers = #tpu.dot_dimension_numbers<[1], [0], [0], [1], [0, 0, 1, 1], [], []>} : vector<2x128xbf16>, vector<128x512xbf16>, vector<2x512xf32> -> vector<2x512xf32>
    %430 = arith.addf %426, %429 : vector<2x512xf32>
    %431 = vector.extract_strided_slice %430 {offsets = [0, 0], sizes = [2, 384], strides = [1, 1]} : vector<2x512xf32> to vector<2x384xf32>
    %432 = arith.negf %431 : vector<2x384xf32>
    %433 = math.exp %432 : vector<2x384xf32>
    %cst_104 = arith.constant 1.000000e+00 : f32
    %434 = vector.broadcast %cst_104 : f32 to vector<2x384xf32>
    %435 = arith.addf %434, %433 : vector<2x384xf32>
    %436 = arith.divf %434, %435 : vector<2x384xf32>
    %437 = vector.extract_strided_slice %436 {offsets = [0, 0], sizes = [2, 128], strides = [1, 1]} : vector<2x384xf32> to vector<2x128xf32>
    %438 = vector.extract_strided_slice %436 {offsets = [0, 128], sizes = [2, 128], strides = [1, 1]} : vector<2x384xf32> to vector<2x128xf32>
    %439 = vector.extract_strided_slice %436 {offsets = [0, 256], sizes = [2, 128], strides = [1, 1]} : vector<2x384xf32> to vector<2x128xf32>
    %440 = vector.extract_strided_slice %430 {offsets = [0, 384], sizes = [2, 128], strides = [1, 1]} : vector<2x512xf32> to vector<2x128xf32>
    %441 = math.tanh %440 : vector<2x128xf32>
    %442 = arith.mulf %438, %376 : vector<2x128xf32>
    %443 = arith.mulf %437, %441 : vector<2x128xf32>
    %444 = arith.addf %442, %443 : vector<2x128xf32>
    %445 = math.tanh %444 : vector<2x128xf32>
    %446 = arith.mulf %439, %445 : vector<2x128xf32>
    %cst_105 = arith.constant dense<0.000000e+00> : vector<2xf32>
    %447 = vector.multi_reduction <add>, %446, %cst_105 [1] : vector<2x128xf32> to vector<2xf32>
    %448 = vector.shape_cast %447 : vector<2xf32> to vector<2x1xf32>
    %cst_106 = arith.constant 3.125000e-02 : f32
    %449 = vector.broadcast %cst_106 : f32 to vector<2x1xf32>
    %450 = arith.mulf %448, %449 : vector<2x1xf32>
    %451 = vector.broadcast %450 : vector<2x1xf32> to vector<2x128xf32>
    %452 = arith.subf %446, %451 : vector<2x128xf32>
    %453 = arith.mulf %452, %452 : vector<2x128xf32>
    %cst_107 = arith.constant dense<0.000000e+00> : vector<2xf32>
    %454 = vector.multi_reduction <add>, %453, %cst_107 [1] : vector<2x128xf32> to vector<2xf32>
    %455 = vector.shape_cast %454 : vector<2xf32> to vector<2x1xf32>
    %456 = arith.mulf %450, %450 : vector<2x1xf32>
    %cst_108 = arith.constant 9.600000e+01 : f32
    %457 = vector.broadcast %cst_108 : f32 to vector<2x1xf32>
    %458 = arith.mulf %457, %456 : vector<2x1xf32>
    %459 = arith.subf %455, %458 : vector<2x1xf32>
    %cst_109 = arith.constant 3.125000e-02 : f32
    %460 = vector.broadcast %cst_109 : f32 to vector<2x1xf32>
    %461 = arith.mulf %459, %460 : vector<2x1xf32>
    %cst_110 = arith.constant 9.99999974E-6 : f32
    %462 = vector.broadcast %cst_110 : f32 to vector<2x1xf32>
    %463 = arith.addf %461, %462 : vector<2x1xf32>
    %464 = math.rsqrt %463 : vector<2x1xf32>
    %465 = vector.broadcast %464 : vector<2x1xf32> to vector<2x128xf32>
    %466 = arith.mulf %452, %465 : vector<2x128xf32>
    %467 = vector.broadcast %2 : vector<1x128xf32> to vector<2x128xf32>
    %468 = arith.mulf %466, %467 : vector<2x128xf32>
    %469 = vector.broadcast %3 : vector<1x128xf32> to vector<2x128xf32>
    %470 = arith.addf %468, %469 : vector<2x128xf32>
    %471 = arith.truncf %470 : vector<2x128xf32> to vector<2x128xbf16>
    %472 = arith.truncf %425 : vector<2x128xf32> to vector<2x128xbf16>
    %473 = tpu.concatenate %471, %472 in 1 : vector<2x128xbf16>, vector<2x128xbf16> -> vector<2x256xbf16>
    %c0_111 = arith.constant 0 : index
    %c0_112 = arith.constant 0 : index
    %474 = vector.load %arg3[%c0_111, %c0_112] : memref<256x512xbf16, #tpu.memory_space<vmem>>, vector<256x512xbf16>
    %cst_113 = arith.constant dense<0.000000e+00> : vector<2x512xf32>
    %475 = tpu.matmul %473, %474, %cst_113 {dimension_numbers = #tpu.dot_dimension_numbers<[1], [0], [0], [1], [0, 0, 1, 1], [], []>} : vector<2x256xbf16>, vector<256x512xbf16>, vector<2x512xf32> -> vector<2x512xf32>
    %476 = vector.broadcast %1 : vector<1x512xf32> to vector<2x512xf32>
    %477 = arith.addf %475, %476 : vector<2x512xf32>
    %478 = vector.extract_strided_slice %477 {offsets = [0, 0], sizes = [2, 384], strides = [1, 1]} : vector<2x512xf32> to vector<2x384xf32>
    %479 = arith.negf %478 : vector<2x384xf32>
    %480 = math.exp %479 : vector<2x384xf32>
    %cst_114 = arith.constant 1.000000e+00 : f32
    %481 = vector.broadcast %cst_114 : f32 to vector<2x384xf32>
    %482 = arith.addf %481, %480 : vector<2x384xf32>
    %483 = arith.divf %481, %482 : vector<2x384xf32>
    %484 = vector.extract_strided_slice %483 {offsets = [0, 0], sizes = [2, 128], strides = [1, 1]} : vector<2x384xf32> to vector<2x128xf32>
    %485 = vector.extract_strided_slice %483 {offsets = [0, 128], sizes = [2, 128], strides = [1, 1]} : vector<2x384xf32> to vector<2x128xf32>
    %486 = vector.extract_strided_slice %483 {offsets = [0, 256], sizes = [2, 128], strides = [1, 1]} : vector<2x384xf32> to vector<2x128xf32>
    %487 = vector.extract_strided_slice %477 {offsets = [0, 384], sizes = [2, 128], strides = [1, 1]} : vector<2x512xf32> to vector<2x128xf32>
    %488 = math.tanh %487 : vector<2x128xf32>
    %489 = arith.mulf %485, %423 : vector<2x128xf32>
    %490 = arith.mulf %484, %488 : vector<2x128xf32>
    %491 = arith.addf %489, %490 : vector<2x128xf32>
    %492 = math.tanh %491 : vector<2x128xf32>
    %493 = arith.mulf %486, %492 : vector<2x128xf32>
    %494 = vector.extract_strided_slice %13 {offsets = [14, 0], sizes = [2, 512], strides = [1, 1]} : vector<16x512xf32> to vector<2x512xf32>
    %495 = arith.truncf %446 : vector<2x128xf32> to vector<2x128xbf16>
    %c0_115 = arith.constant 0 : index
    %c0_116 = arith.constant 0 : index
    %496 = vector.load %arg2[%c0_115, %c0_116] : memref<128x512xbf16, #tpu.memory_space<vmem>>, vector<128x512xbf16>
    %cst_117 = arith.constant dense<0.000000e+00> : vector<2x512xf32>
    %497 = tpu.matmul %495, %496, %cst_117 {dimension_numbers = #tpu.dot_dimension_numbers<[1], [0], [0], [1], [0, 0, 1, 1], [], []>} : vector<2x128xbf16>, vector<128x512xbf16>, vector<2x512xf32> -> vector<2x512xf32>
    %498 = arith.addf %494, %497 : vector<2x512xf32>
    %499 = vector.extract_strided_slice %498 {offsets = [0, 0], sizes = [2, 384], strides = [1, 1]} : vector<2x512xf32> to vector<2x384xf32>
    %500 = arith.negf %499 : vector<2x384xf32>
    %501 = math.exp %500 : vector<2x384xf32>
    %cst_118 = arith.constant 1.000000e+00 : f32
    %502 = vector.broadcast %cst_118 : f32 to vector<2x384xf32>
    %503 = arith.addf %502, %501 : vector<2x384xf32>
    %504 = arith.divf %502, %503 : vector<2x384xf32>
    %505 = vector.extract_strided_slice %504 {offsets = [0, 0], sizes = [2, 128], strides = [1, 1]} : vector<2x384xf32> to vector<2x128xf32>
    %506 = vector.extract_strided_slice %504 {offsets = [0, 128], sizes = [2, 128], strides = [1, 1]} : vector<2x384xf32> to vector<2x128xf32>
    %507 = vector.extract_strided_slice %504 {offsets = [0, 256], sizes = [2, 128], strides = [1, 1]} : vector<2x384xf32> to vector<2x128xf32>
    %508 = vector.extract_strided_slice %498 {offsets = [0, 384], sizes = [2, 128], strides = [1, 1]} : vector<2x512xf32> to vector<2x128xf32>
    %509 = math.tanh %508 : vector<2x128xf32>
    %510 = arith.mulf %506, %444 : vector<2x128xf32>
    %511 = arith.mulf %505, %509 : vector<2x128xf32>
    %512 = arith.addf %510, %511 : vector<2x128xf32>
    %513 = math.tanh %512 : vector<2x128xf32>
    %514 = arith.mulf %507, %513 : vector<2x128xf32>
    %cst_119 = arith.constant dense<0.000000e+00> : vector<2xf32>
    %515 = vector.multi_reduction <add>, %514, %cst_119 [1] : vector<2x128xf32> to vector<2xf32>
    %516 = vector.shape_cast %515 : vector<2xf32> to vector<2x1xf32>
    %cst_120 = arith.constant 3.125000e-02 : f32
    %517 = vector.broadcast %cst_120 : f32 to vector<2x1xf32>
    %518 = arith.mulf %516, %517 : vector<2x1xf32>
    %519 = vector.broadcast %518 : vector<2x1xf32> to vector<2x128xf32>
    %520 = arith.subf %514, %519 : vector<2x128xf32>
    %521 = arith.mulf %520, %520 : vector<2x128xf32>
    %cst_121 = arith.constant dense<0.000000e+00> : vector<2xf32>
    %522 = vector.multi_reduction <add>, %521, %cst_121 [1] : vector<2x128xf32> to vector<2xf32>
    %523 = vector.shape_cast %522 : vector<2xf32> to vector<2x1xf32>
    %524 = arith.mulf %518, %518 : vector<2x1xf32>
    %cst_122 = arith.constant 9.600000e+01 : f32
    %525 = vector.broadcast %cst_122 : f32 to vector<2x1xf32>
    %526 = arith.mulf %525, %524 : vector<2x1xf32>
    %527 = arith.subf %523, %526 : vector<2x1xf32>
    %cst_123 = arith.constant 3.125000e-02 : f32
    %528 = vector.broadcast %cst_123 : f32 to vector<2x1xf32>
    %529 = arith.mulf %527, %528 : vector<2x1xf32>
    %cst_124 = arith.constant 9.99999974E-6 : f32
    %530 = vector.broadcast %cst_124 : f32 to vector<2x1xf32>
    %531 = arith.addf %529, %530 : vector<2x1xf32>
    %532 = math.rsqrt %531 : vector<2x1xf32>
    %533 = vector.broadcast %532 : vector<2x1xf32> to vector<2x128xf32>
    %534 = arith.mulf %520, %533 : vector<2x128xf32>
    %535 = vector.broadcast %2 : vector<1x128xf32> to vector<2x128xf32>
    %536 = arith.mulf %534, %535 : vector<2x128xf32>
    %537 = vector.broadcast %3 : vector<1x128xf32> to vector<2x128xf32>
    %538 = arith.addf %536, %537 : vector<2x128xf32>
    %539 = arith.truncf %538 : vector<2x128xf32> to vector<2x128xbf16>
    %540 = arith.truncf %493 : vector<2x128xf32> to vector<2x128xbf16>
    %541 = tpu.concatenate %539, %540 in 1 : vector<2x128xbf16>, vector<2x128xbf16> -> vector<2x256xbf16>
    %c0_125 = arith.constant 0 : index
    %c0_126 = arith.constant 0 : index
    %542 = vector.load %arg3[%c0_125, %c0_126] : memref<256x512xbf16, #tpu.memory_space<vmem>>, vector<256x512xbf16>
    %cst_127 = arith.constant dense<0.000000e+00> : vector<2x512xf32>
    %543 = tpu.matmul %541, %542, %cst_127 {dimension_numbers = #tpu.dot_dimension_numbers<[1], [0], [0], [1], [0, 0, 1, 1], [], []>} : vector<2x256xbf16>, vector<256x512xbf16>, vector<2x512xf32> -> vector<2x512xf32>
    %544 = vector.broadcast %1 : vector<1x512xf32> to vector<2x512xf32>
    %545 = arith.addf %543, %544 : vector<2x512xf32>
    %546 = vector.extract_strided_slice %545 {offsets = [0, 0], sizes = [2, 384], strides = [1, 1]} : vector<2x512xf32> to vector<2x384xf32>
    %547 = arith.negf %546 : vector<2x384xf32>
    %548 = math.exp %547 : vector<2x384xf32>
    %cst_128 = arith.constant 1.000000e+00 : f32
    %549 = vector.broadcast %cst_128 : f32 to vector<2x384xf32>
    %550 = arith.addf %549, %548 : vector<2x384xf32>
    %551 = arith.divf %549, %550 : vector<2x384xf32>
    %552 = vector.extract_strided_slice %551 {offsets = [0, 0], sizes = [2, 128], strides = [1, 1]} : vector<2x384xf32> to vector<2x128xf32>
    %553 = vector.extract_strided_slice %551 {offsets = [0, 128], sizes = [2, 128], strides = [1, 1]} : vector<2x384xf32> to vector<2x128xf32>
    %554 = vector.extract_strided_slice %551 {offsets = [0, 256], sizes = [2, 128], strides = [1, 1]} : vector<2x384xf32> to vector<2x128xf32>
    %555 = vector.extract_strided_slice %545 {offsets = [0, 384], sizes = [2, 128], strides = [1, 1]} : vector<2x512xf32> to vector<2x128xf32>
    %556 = math.tanh %555 : vector<2x128xf32>
    %557 = arith.mulf %553, %491 : vector<2x128xf32>
    %558 = arith.mulf %552, %556 : vector<2x128xf32>
    %559 = arith.addf %557, %558 : vector<2x128xf32>
    %560 = math.tanh %559 : vector<2x128xf32>
    %561 = arith.mulf %554, %560 : vector<2x128xf32>
    %cst_129 = arith.constant dense<0.000000e+00> : vector<2xf32>
    %562 = vector.multi_reduction <add>, %561, %cst_129 [1] : vector<2x128xf32> to vector<2xf32>
    %563 = vector.shape_cast %562 : vector<2xf32> to vector<2x1xf32>
    %cst_130 = arith.constant 3.125000e-02 : f32
    %564 = vector.broadcast %cst_130 : f32 to vector<2x1xf32>
    %565 = arith.mulf %563, %564 : vector<2x1xf32>
    %566 = vector.broadcast %565 : vector<2x1xf32> to vector<2x128xf32>
    %567 = arith.subf %561, %566 : vector<2x128xf32>
    %568 = arith.mulf %567, %567 : vector<2x128xf32>
    %cst_131 = arith.constant dense<0.000000e+00> : vector<2xf32>
    %569 = vector.multi_reduction <add>, %568, %cst_131 [1] : vector<2x128xf32> to vector<2xf32>
    %570 = vector.shape_cast %569 : vector<2xf32> to vector<2x1xf32>
    %571 = arith.mulf %565, %565 : vector<2x1xf32>
    %cst_132 = arith.constant 9.600000e+01 : f32
    %572 = vector.broadcast %cst_132 : f32 to vector<2x1xf32>
    %573 = arith.mulf %572, %571 : vector<2x1xf32>
    %574 = arith.subf %570, %573 : vector<2x1xf32>
    %cst_133 = arith.constant 3.125000e-02 : f32
    %575 = vector.broadcast %cst_133 : f32 to vector<2x1xf32>
    %576 = arith.mulf %574, %575 : vector<2x1xf32>
    %cst_134 = arith.constant 9.99999974E-6 : f32
    %577 = vector.broadcast %cst_134 : f32 to vector<2x1xf32>
    %578 = arith.addf %576, %577 : vector<2x1xf32>
    %579 = math.rsqrt %578 : vector<2x1xf32>
    %580 = vector.broadcast %579 : vector<2x1xf32> to vector<2x128xf32>
    %581 = arith.mulf %567, %580 : vector<2x128xf32>
    %582 = vector.broadcast %4 : vector<1x128xf32> to vector<2x128xf32>
    %583 = arith.mulf %581, %582 : vector<2x128xf32>
    %584 = vector.broadcast %5 : vector<1x128xf32> to vector<2x128xf32>
    %585 = arith.addf %583, %584 : vector<2x128xf32>
    %586 = arith.truncf %585 : vector<2x128xf32> to vector<2x128xbf16>
    %c0_135 = arith.constant 0 : index
    %c0_136 = arith.constant 0 : index
    %587 = vector.load %arg4[%c0_135, %c0_136] : memref<128x16xbf16, #tpu.memory_space<vmem>>, vector<128x16xbf16>
    %cst_137 = arith.constant dense<0.000000e+00> : vector<2x16xf32>
    %588 = tpu.matmul %586, %587, %cst_137 {dimension_numbers = #tpu.dot_dimension_numbers<[1], [0], [0], [1], [0, 0, 1, 1], [], []>} : vector<2x128xbf16>, vector<128x16xbf16>, vector<2x16xf32> -> vector<2x16xf32>
    %589 = vector.broadcast %6 : vector<1x16xf32> to vector<2x16xf32>
    %590 = arith.addf %588, %589 : vector<2x16xf32>
    %591 = vector.broadcast %7 : vector<1x16xf32> to vector<2x16xf32>
    %592 = arith.mulf %590, %591 : vector<2x16xf32>
    %cst_138 = arith.constant dense<0.000000e+00> : vector<2xf32>
    %593 = vector.multi_reduction <add>, %592, %cst_138 [1] : vector<2x16xf32> to vector<2xf32>
    %594 = vector.shape_cast %593 : vector<2xf32> to vector<2x1xf32>
    %595 = vector.broadcast %8 : vector<1x1xf32> to vector<2x1xf32>
    %596 = arith.addf %594, %595 : vector<2x1xf32>
    %c0_139 = arith.constant 0 : index
    %c0_140 = arith.constant 0 : index
    %597 = vector.load %arg6[%c0_139, %c0_140] : memref<2x1xf32, #tpu.memory_space<vmem>>, vector<2x1xf32>
    tpu.vector_store %arg6[%c0_139, %c0_140], %596 {strides = array<i32>} : memref<2x1xf32, #tpu.memory_space<vmem>>, vector<2x1xf32>,
    return
  }
}

</mosaic_0001>

<llo_original>
// kernel: tpu_custom_call.1
$region0: #{tpu_custom_call.1}
  #allocation0 [shape = 'u32[]', space=smem, size = 0x4, offset = 0x4, fixed_abs, tag = 'smem constant byte address 0x4 - core index']
  #allocation1 [shape = 'u32[144,128]{1,0:T(1,128)}', space=vmem, size = 0x12000, scoped, tag = 'internal scratch']
  %s0 = inlined_call_operand.vmem [shape: bf16[16,4], index: 0, kind: input, shape index: {}]
  %s1 = inlined_call_operand.vmem [shape: bf16[4,512], index: 1, kind: input, shape index: {}]
  %s2 = inlined_call_operand.hbm [shape: bf16[128,512], index: 2, kind: input, shape index: {}]
  %s3 = inlined_call_operand.hbm [shape: bf16[256,512], index: 3, kind: input, shape index: {}]
  %s4 = inlined_call_operand.vmem [shape: bf16[128,16], index: 4, kind: input, shape index: {}]
  %s5 = inlined_call_operand.vmem [shape: f32[9,512], index: 5, kind: input, shape index: {}]
  %s6 = inlined_call_operand.vmem [shape: f32[2,1], index: 6, kind: output, shape index: {}]
  %s7 = sld [smem:[#allocation0]]
  $region42: #{tpu_custom_call.1} parent=0
    _
  %s9 = ssub.s32 1, %s7
  %s10 = scalar_select 0, %s9, %s7
  $region1: #{tpu_custom_call.1} parent=0
    #allocation2 [shape = 'u8[131072]{0}', space=vmem, size = 0x20000, scoped, tag = 'input window, operand 2, single buffered']
    #allocation3 [shape = 's32[1]{0}', space=sflag, size = 0x4, scoped, tag = 'scoped memory for tpu_custom_call.1']
    #allocation4 [shape = 'u8[262144]{0}', space=vmem, size = 0x40000, scoped, tag = 'input window, operand 3, single buffered']
    #allocation5 [shape = 's32[1]{0}', space=sflag, size = 0x4, scoped, tag = 'scoped memory for tpu_custom_call.1']
    %11 = vsyncpa [#allocation3], 0
    %12 = vsyncpa [#allocation5], 0
    // Predicated region
    $region2: #{tpu_custom_call.1} parent=1 // pred_check
      _
    $region3: #{tpu_custom_call.1} parent=1 // pred_check_branch
      %14 = sbr.rel (0) target = $region5
    $region4: #{tpu_custom_call.1} parent=1 // pred_region
      _
    $region5: #{tpu_custom_call.1} parent=1 // pred_fallthru
      _
    // Predicated region
    $region6: #{tpu_custom_call.1} parent=1 // pred_check
      _
    $region7: #{tpu_custom_call.1} parent=1 // pred_check_branch
      %16 = sbr.rel (0) target = $region9
    $region8: #{tpu_custom_call.1} parent=1 // pred_region
      _
    $region9: #{tpu_custom_call.1} parent=1 // pred_fallthru
      _
    // Predicated region
    $region10: #{tpu_custom_call.1} parent=1 // pred_check
      _
    $region11: #{tpu_custom_call.1} parent=1 // pred_check_branch
      %18 = sbr.rel (0) target = $region13
    $region12: #{tpu_custom_call.1} parent=1 // pred_region
      %s20 = ssub.s32 4096, 4096
      %21 = vsyncadd [#allocation3], %s20
      %s22 = sshll.u32 [#allocation2], 4
      %s23 = int_to_ptr.vmem [resolvable:$true] %s22
      %28 = dma.hbm_to_vmem [thread:$0]  %s2, 4096, %s23, [#allocation3], 256, 256, 16
    $region13: #{tpu_custom_call.1} parent=1 // pred_fallthru
      _
    // Predicated region
    $region14: #{tpu_custom_call.1} parent=1 // pred_check
      _
    $region15: #{tpu_custom_call.1} parent=1 // pred_check_branch
      %30 = sbr.rel (0) target = $region17
    $region16: #{tpu_custom_call.1} parent=1 // pred_region
      %s32 = ssub.s32 8192, 8192
      %33 = vsyncadd [#allocation5], %s32
      %s34 = sshll.u32 [#allocation4], 4
      %s35 = int_to_ptr.vmem [resolvable:$true] %s34
      %40 = dma.hbm_to_vmem [thread:$0]  %s3, 8192, %s35, [#allocation5], 256, 256, 16
    $region17: #{tpu_custom_call.1} parent=1 // pred_fallthru
      _
    // Predicated region
    $region18: #{tpu_custom_call.1} parent=1 // pred_check
      _
    $region19: #{tpu_custom_call.1} parent=1 // pred_check_branch
      %42 = sbr.rel (0) target = $region21
    $region20: #{tpu_custom_call.1} parent=1 // pred_region
      _
    $region21: #{tpu_custom_call.1} parent=1 // pred_fallthru
      _
    // Predicated region
    $region22: #{tpu_custom_call.1} parent=1 // pred_check
      _
    $region23: #{tpu_custom_call.1} parent=1 // pred_check_branch
      %44 = sbr.rel (0) target = $region25
    $region24: #{tpu_custom_call.1} parent=1 // pred_region
      _
    $region25: #{tpu_custom_call.1} parent=1 // pred_fallthru
      _
    // Predicated region
    $region26: #{tpu_custom_call.1} parent=1 // pred_check
      _
    $region27: #{tpu_custom_call.1} parent=1 // pred_check_branch
      %46 = sbr.rel (0) target = $region29
    $region28: #{tpu_custom_call.1} parent=1 // pred_region
      %47 = dma.done [#allocation3], 4096
    $region29: #{tpu_custom_call.1} parent=1 // pred_fallthru
      _
    // Predicated region
    $region30: #{tpu_custom_call.1} parent=1 // pred_check
      _
    $region31: #{tpu_custom_call.1} parent=1 // pred_check_branch
      %49 = sbr.rel (0) target = $region33
    $region32: #{tpu_custom_call.1} parent=1 // pred_region
      %50 = dma.done [#allocation5], 8192
    $region33: #{tpu_custom_call.1} parent=1 // pred_fallthru
      _
    %v52 = vld [vmem:[%s5] ss:$8 sm:$0xf]
    %s53 = scalar_lea.vmem %s5, 1
    %v54 = vld [vmem:[%s53] ss:$8 sm:$0xf]
    %v55 = vld [vmem:[%s5 + $0x2] ss:$0 sm:$0xff]
    %v56 = vld [vmem:[%s5 + $0x3] ss:$0 sm:$0xff]
    %v57 = vld [vmem:[%s5 + $0x4] ss:$0 sm:$0xff]
    %v58 = vld [vmem:[%s5 + $0x5] ss:$0 sm:$0xff]
    %v59 = vld [vmem:[%s5 + $0x6] ss:$0 sm:$0xff]
    %v60 = vld [vmem:[%s5 + $0x7] ss:$0 sm:$0xff]
    %v61 = vld [vmem:[%s5 + $0x20] ss:$0 sm:$0xff]
    %v62 = vld [vmem:[%s0] sm:$0xf]
    %v63 = vld [vmem:[%s0 + $0x4] sm:$0xf]
    %v64 = vld [vmem:[%s1] sm:$0xff]
    %v66 = vlaneseq
    %v67 = vshrl.u32 %v66, 7
    %v68 = vsub.s32 0, %v67
    %v69 = vrot.slane %v52, %v68
    %v70 = vlaneseq
    %v71 = vshrl.u32 %v70, 7
    %v72 = vsub.s32 1, %v71
    %v73 = vrot.slane %v52, %v72
    %v74 = vlaneseq
    %v75 = vshrl.u32 %v74, 7
    %v76 = vsub.s32 2, %v75
    %v77 = vrot.slane %v52, %v76
    %v78 = vlaneseq
    %v79 = vshrl.u32 %v78, 7
    %v80 = vsub.s32 3, %v79
    %v81 = vrot.slane %v52, %v80
    %v88 = vunpack.c.l.b16 %v62
    %v89 = vunpack.c.l.b16 %v63
    %v90 = vpack.c.b16 %v89, %v88
    %v92 = vcombine.high %v64, %v64
    %v94 = vunpack.c.l.s4 1983009808
    %v95 = vunpack.c.0.s8 %v94
    %v96 = vlaneseq
    %v97 = vshrl.u32 %v96, 7
    %v98 = vsub.s32 %v95, %v97
    %v99 = vrot.slane %v64, %v98
    %v101 = vunpack.c.l.s4 1983009808
    %v102 = vunpack.c.0.s8 %v101
    %v103 = vlaneseq
    %v104 = vshrl.u32 %v103, 7
    %v105 = vsub.s32 %v102, %v104
    %v106 = vrot.slane %v92, %v105
    %v107 = vcombine.high %v99, %v99
    %v108 = vcombine.high %v106, %v106
    %vm109 = vcmask 31744
    %v111 = vsel %vm109, %v90, 0
    %vm113 = vcmask 1041408
    %v115 = vsel %vm113, %v99, 0
    %v118 = vsel %vm113, %v107, 0
    %v121 = vsel %vm113, %v106, 0
    %v124 = vsel %vm113, %v108, 0
    %126 = vmatprep.subr.bf16.mxu0 0
    %127 = vmatpush1.bf16.msra.mxu0 0
    %128 = vmatprep.subr.bf16.mxu0 0
    %129 = vmatpush1.bf16.msra.mxu0 0
    %130 = vmatprep.subr.bf16.mxu0 0
    %131 = vmatpush1.bf16.msra.mxu0 0
    %132 = vmatprep.subr.bf16.mxu0 0
    %133 = vmatpush1.bf16.msra.mxu0 0
    %134 = vmatprep.subr.bf16.mxu0 0
    %135 = vmatpush1.bf16.msra.mxu0 0
    %136 = vmatprep.subr.bf16.mxu0 0
    %137 = vmatpush1.bf16.msra.mxu0 0
    %138 = vmatprep.subr.bf16.mxu0 0
    %139 = vmatpush1.bf16.msra.mxu0 0
    %140 = vmatprep.subr.bf16.mxu0 %v118
    %141 = vmatpush1.bf16.msra.mxu0 %v115
    %142 = vmatprep.subr.bf16.mxu0 0
    %143 = vmatpush2.bf16.msra.mxu0 0
    %144 = vmatprep.subr.bf16.mxu0 0
    %145 = vmatpush2.bf16.msra.mxu0 0
    %146 = vmatprep.subr.bf16.mxu0 0
    %147 = vmatpush2.bf16.msra.mxu0 0
    %148 = vmatprep.subr.bf16.mxu0 0
    %149 = vmatpush2.bf16.msra.mxu0 0
    %150 = vmatprep.subr.bf16.mxu0 0
    %151 = vmatpush2.bf16.msra.mxu0 0
    %152 = vmatprep.subr.bf16.mxu0 0
    %153 = vmatpush2.bf16.msra.mxu0 0
    %154 = vmatprep.subr.bf16.mxu0 0
    %155 = vmatpush2.bf16.msra.mxu0 0
    %156 = vmatprep.subr.bf16.mxu0 0
    %157 = vmatpush2.bf16.msra.mxu0 0
    %158 = vmatprep.mubr.bf16.mxu0 0
    %159 = vmatmul.mubr.bf16.gmra.mxu0 %v111
    %v160 = vpop.f32.mrf.mxu0
    %v161 = vadd.f32 %v69, %v160
    %v162 = vpop.f32.mrf.mxu0
    %v163 = vadd.f32 %v73, %v162
    %v164 = vpop.f32.mrf.mxu0
    %v165 = vadd.f32 %v69, %v164
    %v166 = vpop.f32.mrf.mxu0
    %v167 = vadd.f32 %v73, %v166
    %168 = vdwg.mxu0
    %169 = vmatprep.subr.bf16.mxu0 0
    %170 = vmatpush1.bf16.msra.mxu0 0
    %171 = vmatprep.subr.bf16.mxu0 0
    %172 = vmatpush1.bf16.msra.mxu0 0
    %173 = vmatprep.subr.bf16.mxu0 0
    %174 = vmatpush1.bf16.msra.mxu0 0
    %175 = vmatprep.subr.bf16.mxu0 0
    %176 = vmatpush1.bf16.msra.mxu0 0
    %177 = vmatprep.subr.bf16.mxu0 0
    %178 = vmatpush1.bf16.msra.mxu0 0
    %179 = vmatprep.subr.bf16.mxu0 0
    %180 = vmatpush1.bf16.msra.mxu0 0
    %181 = vmatprep.subr.bf16.mxu0 0
    %182 = vmatpush1.bf16.msra.mxu0 0
    %183 = vmatprep.subr.bf16.mxu0 %v124
    %184 = vmatpush1.bf16.msra.mxu0 %v121
    %185 = vmatprep.subr.bf16.mxu0 0
    %186 = vmatpush2.bf16.msra.mxu0 0
    %187 = vmatprep.subr.bf16.mxu0 0
    %188 = vmatpush2.bf16.msra.mxu0 0
    %189 = vmatprep.subr.bf16.mxu0 0
    %190 = vmatpush2.bf16.msra.mxu0 0
    %191 = vmatprep.subr.bf16.mxu0 0
    %192 = vmatpush2.bf16.msra.mxu0 0
    %193 = vmatprep.subr.bf16.mxu0 0
    %194 = vmatpush2.bf16.msra.mxu0 0
    %195 = vmatprep.subr.bf16.mxu0 0
    %196 = vmatpush2.bf16.msra.mxu0 0
    %197 = vmatprep.subr.bf16.mxu0 0
    %198 = vmatpush2.bf16.msra.mxu0 0
    %199 = vmatprep.subr.bf16.mxu0 0
    %200 = vmatpush2.bf16.msra.mxu0 0
    %201 = vmatprep.mubr.bf16.mxu0 0
    %202 = vmatmul.mubr.bf16.gmra.mxu0 %v111
    %v203 = vpop.f32.mrf.mxu0
    %v204 = vadd.f32 %v77, %v203
    %v205 = vpop.f32.mrf.mxu0
    %v206 = vadd.f32 %v81, %v205
    %v207 = vpop.f32.mrf.mxu0
    %v208 = vadd.f32 %v77, %v207
    %v209 = vpop.f32.mrf.mxu0
    %v210 = vadd.f32 %v81, %v209
    %211 = vdwg.mxu0
    %v212 = vld [vmem:[#allocation2] sm:$0xff]
    %v213 = vld [vmem:[#allocation2 + $0x8] sm:$0xff]
    %v214 = vld [vmem:[#allocation2 + $0x10] sm:$0xff]
    %v215 = vld [vmem:[#allocation2 + $0x18] sm:$0xff]
    %v216 = vld [vmem:[#allocation2 + $0x20] sm:$0xff]
    %v217 = vld [vmem:[#allocation2 + $0x28] sm:$0xff]
    %v218 = vld [vmem:[#allocation2 + $0x30] sm:$0xff]
    %v219 = vld [vmem:[#allocation2 + $0x38] sm:$0xff]
    %v220 = vld [vmem:[#allocation2 + $0x40] sm:$0xff]
    %v221 = vld [vmem:[#allocation2 + $0x48] sm:$0xff]
    %v222 = vld [vmem:[#allocation2 + $0x50] sm:$0xff]
    %v223 = vld [vmem:[#allocation2 + $0x58] sm:$0xff]
    %v224 = vld [vmem:[#allocation2 + $0x60] sm:$0xff]
    %v225 = vld [vmem:[#allocation2 + $0x68] sm:$0xff]
    %v226 = vld [vmem:[#allocation2 + $0x70] sm:$0xff]
    %v227 = vld [vmem:[#allocation2 + $0x78] sm:$0xff]
    %v228 = vld [vmem:[#allocation2 + $0x80] sm:$0xff]
    %v229 = vld [vmem:[#allocation2 + $0x88] sm:$0xff]
    %v230 = vld [vmem:[#allocation2 + $0x90] sm:$0xff]
    %v231 = vld [vmem:[#allocation2 + $0x98] sm:$0xff]
    %v232 = vld [vmem:[#allocation2 + $0xa0] sm:$0xff]
    %v233 = vld [vmem:[#allocation2 + $0xa8] sm:$0xff]
    %v234 = vld [vmem:[#allocation2 + $0xb0] sm:$0xff]
    %v235 = vld [vmem:[#allocation2 + $0xb8] sm:$0xff]
    %v236 = vld [vmem:[#allocation2 + $0xc0] sm:$0xff]
    %v237 = vld [vmem:[#allocation2 + $0xc8] sm:$0xff]
    %v238 = vld [vmem:[#allocation2 + $0xd0] sm:$0xff]
    %v239 = vld [vmem:[#allocation2 + $0xd8] sm:$0xff]
    %v240 = vld [vmem:[#allocation2 + $0xe0] sm:$0xff]
    %v241 = vld [vmem:[#allocation2 + $0xe8] sm:$0xff]
    %v242 = vld [vmem:[#allocation2 + $0xf0] sm:$0xff]
    %v243 = vld [vmem:[#allocation2 + $0xf8] sm:$0xff]
    %v276 = vunpack.c.l.b16 %v212
    %v277 = vunpack.c.h.b16 %v212
    %v278 = vunpack.c.l.b16 %v213
    %v279 = vunpack.c.h.b16 %v213
    %v280 = vunpack.c.l.b16 %v214
    %v281 = vunpack.c.h.b16 %v214
    %v282 = vunpack.c.l.b16 %v215
    %v283 = vunpack.c.h.b16 %v215
    %v284 = vunpack.c.l.b16 %v216
    %v285 = vunpack.c.h.b16 %v216
    %v286 = vunpack.c.l.b16 %v217
    %v287 = vunpack.c.h.b16 %v217
    %v288 = vunpack.c.l.b16 %v218
    %v289 = vunpack.c.h.b16 %v218
    %v290 = vunpack.c.l.b16 %v219
    %v291 = vunpack.c.h.b16 %v219
    %v292 = vunpack.c.l.b16 %v220
    %v293 = vunpack.c.h.b16 %v220
    %v294 = vunpack.c.l.b16 %v221
    %v295 = vunpack.c.h.b16 %v221
    %v296 = vunpack.c.l.b16 %v222
    %v297 = vunpack.c.h.b16 %v222
    %v298 = vunpack.c.l.b16 %v223
    %v299 = vunpack.c.h.b16 %v223
    %v300 = vunpack.c.l.b16 %v224
    %v301 = vunpack.c.h.b16 %v224
    %v302 = vunpack.c.l.b16 %v225
    %v303 = vunpack.c.h.b16 %v225
    %v304 = vunpack.c.l.b16 %v226
    %v305 = vunpack.c.h.b16 %v226
    %v306 = vunpack.c.l.b16 %v227
    %v307 = vunpack.c.h.b16 %v227
    %v308 = vunpack.c.l.b16 %v228
    %v309 = vunpack.c.h.b16 %v228
    %v310 = vunpack.c.l.b16 %v229
    %v311 = vunpack.c.h.b16 %v229
    %v312 = vunpack.c.l.b16 %v230
    %v313 = vunpack.c.h.b16 %v230
    %v314 = vunpack.c.l.b16 %v231
    %v315 = vunpack.c.h.b16 %v231
    %v316 = vunpack.c.l.b16 %v232
    %v317 = vunpack.c.h.b16 %v232
    %v318 = vunpack.c.l.b16 %v233
    %v319 = vunpack.c.h.b16 %v233
    %v320 = vunpack.c.l.b16 %v234
    %v321 = vunpack.c.h.b16 %v234
    %v322 = vunpack.c.l.b16 %v235
    %v323 = vunpack.c.h.b16 %v235
    %v324 = vunpack.c.l.b16 %v236
    %v325 = vunpack.c.h.b16 %v236
    %v326 = vunpack.c.l.b16 %v237
    %v327 = vunpack.c.h.b16 %v237
    %v328 = vunpack.c.l.b16 %v238
    %v329 = vunpack.c.h.b16 %v238
    %v330 = vunpack.c.l.b16 %v239
    %v331 = vunpack.c.h.b16 %v239
    %v332 = vunpack.c.l.b16 %v240
    %v333 = vunpack.c.h.b16 %v240
    %v334 = vunpack.c.l.b16 %v241
    %v335 = vunpack.c.h.b16 %v241
    %v336 = vunpack.c.l.b16 %v242
    %v337 = vunpack.c.h.b16 %v242
    %v338 = vunpack.c.l.b16 %v243
    %v339 = vunpack.c.h.b16 %v243
    %v340 = vpack.c.b16 %v280, %v276
    %v341 = vpack.c.b16 %v281, %v277
    %v342 = vpack.c.b16 %v282, %v278
    %v343 = vpack.c.b16 %v283, %v279
    %v344 = vpack.c.b16 %v288, %v284
    %v345 = vpack.c.b16 %v289, %v285
    %v346 = vpack.c.b16 %v290, %v286
    %v347 = vpack.c.b16 %v291, %v287
    %v348 = vpack.c.b16 %v296, %v292
    %v349 = vpack.c.b16 %v297, %v293
    %v350 = vpack.c.b16 %v298, %v294
    %v351 = vpack.c.b16 %v299, %v295
    %v352 = vpack.c.b16 %v304, %v300
    %v353 = vpack.c.b16 %v305, %v301
    %v354 = vpack.c.b16 %v306, %v302
    %v355 = vpack.c.b16 %v307, %v303
    %v356 = vpack.c.b16 %v312, %v308
    %v357 = vpack.c.b16 %v313, %v309
    %v358 = vpack.c.b16 %v314, %v310
    %v359 = vpack.c.b16 %v315, %v311
    %v360 = vpack.c.b16 %v320, %v316
    %v361 = vpack.c.b16 %v321, %v317
    %v362 = vpack.c.b16 %v322, %v318
    %v363 = vpack.c.b16 %v323, %v319
    %v364 = vpack.c.b16 %v328, %v324
    %v365 = vpack.c.b16 %v329, %v325
    %v366 = vpack.c.b16 %v330, %v326
    %v367 = vpack.c.b16 %v331, %v327
    %v368 = vpack.c.b16 %v336, %v332
    %v369 = vpack.c.b16 %v337, %v333
    %v370 = vpack.c.b16 %v338, %v334
    %v371 = vpack.c.b16 %v339, %v335
    %404 = vmatprep.subr.bf16.mxu0 %v369
    %405 = vmatpush1.bf16.msra.mxu0 %v368
    %406 = vmatprep.subr.bf16.mxu0 %v365
    %407 = vmatpush1.bf16.msra.mxu0 %v364
    %408 = vmatprep.subr.bf16.mxu0 %v361
    %409 = vmatpush1.bf16.msra.mxu0 %v360
    %410 = vmatprep.subr.bf16.mxu0 %v357
    %411 = vmatpush1.bf16.msra.mxu0 %v356
    %412 = vmatprep.subr.bf16.mxu0 %v353
    %413 = vmatpush1.bf16.msra.mxu0 %v352
    %414 = vmatprep.subr.bf16.mxu0 %v349
    %415 = vmatpush1.bf16.msra.mxu0 %v348
    %416 = vmatprep.subr.bf16.mxu0 %v345
    %417 = vmatpush1.bf16.msra.mxu0 %v344
    %418 = vmatprep.subr.bf16.mxu0 %v341
    %419 = vmatpush1.bf16.msra.mxu0 %v340
    %420 = vmatprep.subr.bf16.mxu0 0
    %421 = vmatpush2.bf16.msra.mxu0 0
    %422 = vmatprep.subr.bf16.mxu0 0
    %423 = vmatpush2.bf16.msra.mxu0 0
    %424 = vmatprep.subr.bf16.mxu0 0
    %425 = vmatpush2.bf16.msra.mxu0 0
    %426 = vmatprep.subr.bf16.mxu0 0
    %427 = vmatpush2.bf16.msra.mxu0 0
    %428 = vmatprep.subr.bf16.mxu0 0
    %429 = vmatpush2.bf16.msra.mxu0 0
    %430 = vmatprep.subr.bf16.mxu0 0
    %431 = vmatpush2.bf16.msra.mxu0 0
    %432 = vmatprep.subr.bf16.mxu0 0
    %433 = vmatpush2.bf16.msra.mxu0 0
    %434 = vmatprep.subr.bf16.mxu0 0
    %435 = vmatpush2.bf16.msra.mxu0 0
    %436 = vmatprep.mubr.bf16.mxu0 0
    %437 = vmatmul.mubr.bf16.gmra.mxu0 0
    %v438 = vpop.f32.mrf.mxu0
    %v439 = vadd.f32 0.0, %v438
    %v440 = vpop.f32.mrf.mxu0
    %v441 = vadd.f32 0.0, %v440
    %v442 = vpop.f32.mrf.mxu0
    %v443 = vpop.f32.mrf.mxu0
    %444 = vdwg.mxu0
    %445 = vmatprep.subr.bf16.mxu0 %v371
    %446 = vmatpush1.bf16.msra.mxu0 %v370
    %447 = vmatprep.subr.bf16.mxu0 %v367
    %448 = vmatpush1.bf16.msra.mxu0 %v366
    %449 = vmatprep.subr.bf16.mxu0 %v363
    %450 = vmatpush1.bf16.msra.mxu0 %v362
    %451 = vmatprep.subr.bf16.mxu0 %v359
    %452 = vmatpush1.bf16.msra.mxu0 %v358
    %453 = vmatprep.subr.bf16.mxu0 %v355
    %454 = vmatpush1.bf16.msra.mxu0 %v354
    %455 = vmatprep.subr.bf16.mxu0 %v351
    %456 = vmatpush1.bf16.msra.mxu0 %v350
    %457 = vmatprep.subr.bf16.mxu0 %v347
    %458 = vmatpush1.bf16.msra.mxu0 %v346
    %459 = vmatprep.subr.bf16.mxu0 %v343
    %460 = vmatpush1.bf16.msra.mxu0 %v342
    %461 = vmatprep.subr.bf16.mxu0 0
    %462 = vmatpush2.bf16.msra.mxu0 0
    %463 = vmatprep.subr.bf16.mxu0 0
    %464 = vmatpush2.bf16.msra.mxu0 0
    %465 = vmatprep.subr.bf16.mxu0 0
    %466 = vmatpush2.bf16.msra.mxu0 0
    %467 = vmatprep.subr.bf16.mxu0 0
    %468 = vmatpush2.bf16.msra.mxu0 0
    %469 = vmatprep.subr.bf16.mxu0 0
    %470 = vmatpush2.bf16.msra.mxu0 0
    %471 = vmatprep.subr.bf16.mxu0 0
    %472 = vmatpush2.bf16.msra.mxu0 0
    %473 = vmatprep.subr.bf16.mxu0 0
    %474 = vmatpush2.bf16.msra.mxu0 0
    %475 = vmatprep.subr.bf16.mxu0 0
    %476 = vmatpush2.bf16.msra.mxu0 0
    %477 = vmatprep.mubr.bf16.mxu0 0
    %478 = vmatmul.mubr.bf16.gmra.mxu0 0
    %v479 = vpop.f32.mrf.mxu0
    %v480 = vadd.f32 0.0, %v479
    %v481 = vpop.f32.mrf.mxu0
    %v482 = vadd.f32 0.0, %v481
    %v483 = vpop.f32.mrf.mxu0
    %v484 = vpop.f32.mrf.mxu0
    %485 = vdwg.mxu0
    %v486 = vadd.f32 %v161, %v439
    %v487 = vadd.f32 %v163, %v441
    %v488 = vadd.f32 %v204, %v480
    %v489 = vadd.f32 %v206, %v482
    %v490 = vxor.u32 %v486, 2147483648
    %v491 = vxor.u32 %v487, 2147483648
    %v492 = vxor.u32 %v488, 2147483648
    %v493 = vmul.f32 %v490, 1.442695
    %v494 = vpow.pop %v493
    %v495 = vmul.f32 %v491, 1.442695
    %v496 = vpow.pop %v495
    %v497 = vmul.f32 %v492, 1.442695
    %v498 = vpow.pop %v497
    %v499 = vadd.f32 %v494, 1.0
    %v500 = vadd.f32 %v496, 1.0
    %v501 = vadd.f32 %v498, 1.0
    %v502 = vrcp.pop %v499
    %v503 = vmul.f32 1.0, %v502
    %v504 = vrcp.pop %v500
    %v505 = vmul.f32 1.0, %v504
    %v506 = vrcp.pop %v501
    %v507 = vmul.f32 1.0, %v506
    %v508 = vtanh.pop %v489
    %v509 = vmul.f32 %v505, 0.0
    %v510 = vmul.f32 %v503, %v508
    %v511 = vadd.f32 %v509, %v510
    %v512 = vtanh.pop %v511
    %v513 = vmul.f32 %v507, %v512
    %v514 = vsel %vm113, %v513, 0.0
    %515 = vadd.xlane.f32.xlu0 %v514
    %v516 = vpop.xlane.xlu0 %515
    %v517 = vmul.f32 %v516, 0.03125
    %v518 = vsub.f32 %v513, %v517
    %v519 = vmul.f32 %v518, %v518
    %v520 = vsel %vm113, %v519, 0.0
    %521 = vadd.xlane.f32.xlu0 %v520
    %v522 = vpop.xlane.xlu0 %521
    %v523 = vmul.f32 %v517, %v517
    %v524 = vmul.f32 %v523, 96.0
    %v525 = vsub.f32 %v522, %v524
    %v526 = vmul.f32 %v525, 0.03125
    %v527 = vadd.f32 %v526, 1e-05
    %v528 = vrsqrt.pop %v527
    %v529 = vmul.f32 %v518, %v528
    %v530 = vmul.f32 %v529, %v55
    %v531 = vadd.f32 %v530, %v56
    %v532 = vpack.c.bf16 %v531, %v531
    %v533 = vld [vmem:[#allocation4] sm:$0xff]
    %v534 = vld [vmem:[#allocation4 + $0x8] sm:$0xff]
    %v535 = vld [vmem:[#allocation4 + $0x10] sm:$0xff]
    %v536 = vld [vmem:[#allocation4 + $0x18] sm:$0xff]
    %v537 = vld [vmem:[#allocation4 + $0x20] sm:$0xff]
    %v538 = vld [vmem:[#allocation4 + $0x28] sm:$0xff]
    %v539 = vld [vmem:[#allocation4 + $0x30] sm:$0xff]
    %v540 = vld [vmem:[#allocation4 + $0x38] sm:$0xff]
    %v541 = vld [vmem:[#allocation4 + $0x40] sm:$0xff]
    %v542 = vld [vmem:[#allocation4 + $0x48] sm:$0xff]
    %v543 = vld [vmem:[#allocation4 + $0x50] sm:$0xff]
    %v544 = vld [vmem:[#allocation4 + $0x58] sm:$0xff]
    %v545 = vld [vmem:[#allocation4 + $0x60] sm:$0xff]
    %v546 = vld [vmem:[#allocation4 + $0x68] sm:$0xff]
    %v547 = vld [vmem:[#allocation4 + $0x70] sm:$0xff]
    %v548 = vld [vmem:[#allocation4 + $0x78] sm:$0xff]
    %v549 = vld [vmem:[#allocation4 + $0x80] sm:$0xff]
    %v550 = vld [vmem:[#allocation4 + $0x88] sm:$0xff]
    %v551 = vld [vmem:[#allocation4 + $0x90] sm:$0xff]
    %v552 = vld [vmem:[#allocation4 + $0x98] sm:$0xff]
    %v553 = vld [vmem:[#allocation4 + $0xa0] sm:$0xff]
    %v554 = vld [vmem:[#allocation4 + $0xa8] sm:$0xff]
    %v555 = vld [vmem:[#allocation4 + $0xb0] sm:$0xff]
    %v556 = vld [vmem:[#allocation4 + $0xb8] sm:$0xff]
    %v557 = vld [vmem:[#allocation4 + $0xc0] sm:$0xff]
    %v558 = vld [vmem:[#allocation4 + $0xc8] sm:$0xff]
    %v559 = vld [vmem:[#allocation4 + $0xd0] sm:$0xff]
    %v560 = vld [vmem:[#allocation4 + $0xd8] sm:$0xff]
    %v561 = vld [vmem:[#allocation4 + $0xe0] sm:$0xff]
    %v562 = vld [vmem:[#allocation4 + $0xe8] sm:$0xff]
    %v563 = vld [vmem:[#allocation4 + $0xf0] sm:$0xff]
    %v564 = vld [vmem:[#allocation4 + $0xf8] sm:$0xff]
    %v565 = vld [vmem:[#allocation4 + $0x100] sm:$0xff]
    %v566 = vld [vmem:[#allocation4 + $0x108] sm:$0xff]
    %v567 = vld [vmem:[#allocation4 + $0x110] sm:$0xff]
    %v568 = vld [vmem:[#allocation4 + $0x118] sm:$0xff]
    %v569 = vld [vmem:[#allocation4 + $0x120] sm:$0xff]
    %v570 = vld [vmem:[#allocation4 + $0x128] sm:$0xff]
    %v571 = vld [vmem:[#allocation4 + $0x130] sm:$0xff]
    %v572 = vld [vmem:[#allocation4 + $0x138] sm:$0xff]
    %v573 = vld [vmem:[#allocation4 + $0x140] sm:$0xff]
    %v574 = vld [vmem:[#allocation4 + $0x148] sm:$0xff]
    %v575 = vld [vmem:[#allocation4 + $0x150] sm:$0xff]
    %v576 = vld [vmem:[#allocation4 + $0x158] sm:$0xff]
    %v577 = vld [vmem:[#allocation4 + $0x160] sm:$0xff]
    %v578 = vld [vmem:[#allocation4 + $0x168] sm:$0xff]
    %v579 = vld [vmem:[#allocation4 + $0x170] sm:$0xff]
    %v580 = vld [vmem:[#allocation4 + $0x178] sm:$0xff]
    %v581 = vld [vmem:[#allocation4 + $0x180] sm:$0xff]
    %v582 = vld [vmem:[#allocation4 + $0x188] sm:$0xff]
    %v583 = vld [vmem:[#allocation4 + $0x190] sm:$0xff]
    %v584 = vld [vmem:[#allocation4 + $0x198] sm:$0xff]
    %v585 = vld [vmem:[#allocation4 + $0x1a0] sm:$0xff]
    %v586 = vld [vmem:[#allocation4 + $0x1a8] sm:$0xff]
    %v587 = vld [vmem:[#allocation4 + $0x1b0] sm:$0xff]
    %v588 = vld [vmem:[#allocation4 + $0x1b8] sm:$0xff]
    %v589 = vld [vmem:[#allocation4 + $0x1c0] sm:$0xff]
    %v590 = vld [vmem:[#allocation4 + $0x1c8] sm:$0xff]
    %v591 = vld [vmem:[#allocation4 + $0x1d0] sm:$0xff]
    %v592 = vld [vmem:[#allocation4 + $0x1d8] sm:$0xff]
    %v593 = vld [vmem:[#allocation4 + $0x1e0] sm:$0xff]
    %v594 = vld [vmem:[#allocation4 + $0x1e8] sm:$0xff]
    %v595 = vld [vmem:[#allocation4 + $0x1f0] sm:$0xff]
    %v596 = vld [vmem:[#allocation4 + $0x1f8] sm:$0xff]
    %v598 = vlaneseq
    %v599 = vshrl.u32 %v598, 7
    %v600 = vsub.s32 0, %v599
    %v601 = vrot.slane %v54, %v600
    %v602 = vlaneseq
    %v603 = vshrl.u32 %v602, 7
    %v604 = vsub.s32 1, %v603
    %v605 = vrot.slane %v54, %v604
    %v606 = vlaneseq
    %v607 = vshrl.u32 %v606, 7
    %v608 = vsub.s32 2, %v607
    %v609 = vrot.slane %v54, %v608
    %v610 = vlaneseq
    %v611 = vshrl.u32 %v610, 7
    %v612 = vsub.s32 3, %v611
    %v613 = vrot.slane %v54, %v612
    %v682 = vunpack.c.l.b16 %v533
    %v683 = vunpack.c.h.b16 %v533
    %v684 = vunpack.c.l.b16 %v534
    %v685 = vunpack.c.h.b16 %v534
    %v686 = vunpack.c.l.b16 %v535
    %v687 = vunpack.c.h.b16 %v535
    %v688 = vunpack.c.l.b16 %v536
    %v689 = vunpack.c.h.b16 %v536
    %v690 = vunpack.c.l.b16 %v537
    %v691 = vunpack.c.h.b16 %v537
    %v692 = vunpack.c.l.b16 %v538
    %v693 = vunpack.c.h.b16 %v538
    %v694 = vunpack.c.l.b16 %v539
    %v695 = vunpack.c.h.b16 %v539
    %v696 = vunpack.c.l.b16 %v540
    %v697 = vunpack.c.h.b16 %v540
    %v698 = vunpack.c.l.b16 %v541
    %v699 = vunpack.c.h.b16 %v541
    %v700 = vunpack.c.l.b16 %v542
    %v701 = vunpack.c.h.b16 %v542
    %v702 = vunpack.c.l.b16 %v543
    %v703 = vunpack.c.h.b16 %v543
    %v704 = vunpack.c.l.b16 %v544
    %v705 = vunpack.c.h.b16 %v544
    %v706 = vunpack.c.l.b16 %v545
    %v707 = vunpack.c.h.b16 %v545
    %v708 = vunpack.c.l.b16 %v546
    %v709 = vunpack.c.h.b16 %v546
    %v710 = vunpack.c.l.b16 %v547
    %v711 = vunpack.c.h.b16 %v547
    %v712 = vunpack.c.l.b16 %v548
    %v713 = vunpack.c.h.b16 %v548
    %v714 = vunpack.c.l.b16 %v549
    %v715 = vunpack.c.h.b16 %v549
    %v716 = vunpack.c.l.b16 %v550
    %v717 = vunpack.c.h.b16 %v550
    %v718 = vunpack.c.l.b16 %v551
    %v719 = vunpack.c.h.b16 %v551
    %v720 = vunpack.c.l.b16 %v552
    %v721 = vunpack.c.h.b16 %v552
    %v722 = vunpack.c.l.b16 %v553
    %v723 = vunpack.c.h.b16 %v553
    %v724 = vunpack.c.l.b16 %v554
    %v725 = vunpack.c.h.b16 %v554
    %v726 = vunpack.c.l.b16 %v555
    %v727 = vunpack.c.h.b16 %v555
    %v728 = vunpack.c.l.b16 %v556
    %v729 = vunpack.c.h.b16 %v556
    %v730 = vunpack.c.l.b16 %v557
    %v731 = vunpack.c.h.b16 %v557
    %v732 = vunpack.c.l.b16 %v558
    %v733 = vunpack.c.h.b16 %v558
    %v734 = vunpack.c.l.b16 %v559
    %v735 = vunpack.c.h.b16 %v559
    %v736 = vunpack.c.l.b16 %v560
    %v737 = vunpack.c.h.b16 %v560
    %v738 = vunpack.c.l.b16 %v561
    %v739 = vunpack.c.h.b16 %v561
    %v740 = vunpack.c.l.b16 %v562
    %v741 = vunpack.c.h.b16 %v562
    %v742 = vunpack.c.l.b16 %v563
    %v743 = vunpack.c.h.b16 %v563
    %v744 = vunpack.c.l.b16 %v564
    %v745 = vunpack.c.h.b16 %v564
    %v746 = vunpack.c.l.b16 %v565
    %v747 = vunpack.c.h.b16 %v565
    %v748 = vunpack.c.l.b16 %v566
    %v749 = vunpack.c.h.b16 %v566
    %v750 = vunpack.c.l.b16 %v567
    %v751 = vunpack.c.h.b16 %v567
    %v752 = vunpack.c.l.b16 %v568
    %v753 = vunpack.c.h.b16 %v568
    %v754 = vunpack.c.l.b16 %v569
    %v755 = vunpack.c.h.b16 %v569
    %v756 = vunpack.c.l.b16 %v570
    %v757 = vunpack.c.h.b16 %v570
    %v758 = vunpack.c.l.b16 %v571
    %v759 = vunpack.c.h.b16 %v571
    %v760 = vunpack.c.l.b16 %v572
    %v761 = vunpack.c.h.b16 %v572
    %v762 = vunpack.c.l.b16 %v573
    %v763 = vunpack.c.h.b16 %v573
    %v764 = vunpack.c.l.b16 %v574
    %v765 = vunpack.c.h.b16 %v574
    %v766 = vunpack.c.l.b16 %v575
    %v767 = vunpack.c.h.b16 %v575
    %v768 = vunpack.c.l.b16 %v576
    %v769 = vunpack.c.h.b16 %v576
    %v770 = vunpack.c.l.b16 %v577
    %v771 = vunpack.c.h.b16 %v577
    %v772 = vunpack.c.l.b16 %v578
    %v773 = vunpack.c.h.b16 %v578
    %v774 = vunpack.c.l.b16 %v579
    %v775 = vunpack.c.h.b16 %v579
    %v776 = vunpack.c.l.b16 %v580
    %v777 = vunpack.c.h.b16 %v580
    %v778 = vunpack.c.l.b16 %v581
    %v779 = vunpack.c.h.b16 %v581
    %v780 = vunpack.c.l.b16 %v582
    %v781 = vunpack.c.h.b16 %v582
    %v782 = vunpack.c.l.b16 %v583
    %v783 = vunpack.c.h.b16 %v583
    %v784 = vunpack.c.l.b16 %v584
    %v785 = vunpack.c.h.b16 %v584
    %v786 = vunpack.c.l.b16 %v585
    %v787 = vunpack.c.h.b16 %v585
    %v788 = vunpack.c.l.b16 %v586
    %v789 = vunpack.c.h.b16 %v586
    %v790 = vunpack.c.l.b16 %v587
    %v791 = vunpack.c.h.b16 %v587
    %v792 = vunpack.c.l.b16 %v588
    %v793 = vunpack.c.h.b16 %v588
    %v794 = vunpack.c.l.b16 %v589
    %v795 = vunpack.c.h.b16 %v589
    %v796 = vunpack.c.l.b16 %v590
    %v797 = vunpack.c.h.b16 %v590
    %v798 = vunpack.c.l.b16 %v591
    %v799 = vunpack.c.h.b16 %v591
    %v800 = vunpack.c.l.b16 %v592
    %v801 = vunpack.c.h.b16 %v592
    %v802 = vunpack.c.l.b16 %v593
    %v803 = vunpack.c.h.b16 %v593
    %v804 = vunpack.c.l.b16 %v594
    %v805 = vunpack.c.h.b16 %v594
    %v806 = vunpack.c.l.b16 %v595
    %v807 = vunpack.c.h.b16 %v595
    %v808 = vunpack.c.l.b16 %v596
    %v809 = vunpack.c.h.b16 %v596
    %v810 = vpack.c.b16 %v686, %v682
    %v811 = vpack.c.b16 %v687, %v683
    %v812 = vpack.c.b16 %v688, %v684
    %v813 = vpack.c.b16 %v689, %v685
    %v814 = vpack.c.b16 %v694, %v690
    %v815 = vpack.c.b16 %v695, %v691
    %v816 = vpack.c.b16 %v696, %v692
    %v817 = vpack.c.b16 %v697, %v693
    %v818 = vpack.c.b16 %v702, %v698
    %v819 = vpack.c.b16 %v703, %v699
    %v820 = vpack.c.b16 %v704, %v700
    %v821 = vpack.c.b16 %v705, %v701
    %v822 = vpack.c.b16 %v710, %v706
    %v823 = vpack.c.b16 %v711, %v707
    %v824 = vpack.c.b16 %v712, %v708
    %v825 = vpack.c.b16 %v713, %v709
    %v826 = vpack.c.b16 %v718, %v714
    %v827 = vpack.c.b16 %v719, %v715
    %v828 = vpack.c.b16 %v720, %v716
    %v829 = vpack.c.b16 %v721, %v717
    %v830 = vpack.c.b16 %v726, %v722
    %v831 = vpack.c.b16 %v727, %v723
    %v832 = vpack.c.b16 %v728, %v724
    %v833 = vpack.c.b16 %v729, %v725
    %v834 = vpack.c.b16 %v734, %v730
    %v835 = vpack.c.b16 %v735, %v731
    %v836 = vpack.c.b16 %v736, %v732
    %v837 = vpack.c.b16 %v737, %v733
    %v838 = vpack.c.b16 %v742, %v738
    %v839 = vpack.c.b16 %v743, %v739
    %v840 = vpack.c.b16 %v744, %v740
    %v841 = vpack.c.b16 %v745, %v741
    %v842 = vpack.c.b16 %v750, %v746
    %v843 = vpack.c.b16 %v751, %v747
    %v844 = vpack.c.b16 %v752, %v748
    %v845 = vpack.c.b16 %v753, %v749
    %v846 = vpack.c.b16 %v758, %v754
    %v847 = vpack.c.b16 %v759, %v755
    %v848 = vpack.c.b16 %v760, %v756
    %v849 = vpack.c.b16 %v761, %v757
    %v850 = vpack.c.b16 %v766, %v762
    %v851 = vpack.c.b16 %v767, %v763
    %v852 = vpack.c.b16 %v768, %v764
    %v853 = vpack.c.b16 %v769, %v765
    %v854 = vpack.c.b16 %v774, %v770
    %v855 = vpack.c.b16 %v775, %v771
    %v856 = vpack.c.b16 %v776, %v772
    %v857 = vpack.c.b16 %v777, %v773
    %v858 = vpack.c.b16 %v782, %v778
    %v859 = vpack.c.b16 %v783, %v779
    %v860 = vpack.c.b16 %v784, %v780
    %v861 = vpack.c.b16 %v785, %v781
    %v862 = vpack.c.b16 %v790, %v786
    %v863 = vpack.c.b16 %v791, %v787
    %v864 = vpack.c.b16 %v792, %v788
    %v865 = vpack.c.b16 %v793, %v789
    %v866 = vpack.c.b16 %v798, %v794
    %v867 = vpack.c.b16 %v799, %v795
    %v868 = vpack.c.b16 %v800, %v796
    %v869 = vpack.c.b16 %v801, %v797
    %v870 = vpack.c.b16 %v806, %v802
    %v871 = vpack.c.b16 %v807, %v803
    %v872 = vpack.c.b16 %v808, %v804
    %v873 = vpack.c.b16 %v809, %v805
    %938 = vmatprep.subr.bf16.mxu0 %v839
    %939 = vmatpush1.bf16.msra.mxu0 %v838
    %940 = vmatprep.subr.bf16.mxu0 %v835
    %941 = vmatpush1.bf16.msra.mxu0 %v834
    %942 = vmatprep.subr.bf16.mxu0 %v831
    %943 = vmatpush1.bf16.msra.mxu0 %v830
    %944 = vmatprep.subr.bf16.mxu0 %v827
    %945 = vmatpush1.bf16.msra.mxu0 %v826
    %946 = vmatprep.subr.bf16.mxu0 %v823
    %947 = vmatpush1.bf16.msra.mxu0 %v822
    %948 = vmatprep.subr.bf16.mxu0 %v819
    %949 = vmatpush1.bf16.msra.mxu0 %v818
    %950 = vmatprep.subr.bf16.mxu0 %v815
    %951 = vmatpush1.bf16.msra.mxu0 %v814
    %952 = vmatprep.subr.bf16.mxu0 %v811
    %953 = vmatpush1.bf16.msra.mxu0 %v810
    %954 = vmatprep.subr.bf16.mxu0 %v871
    %955 = vmatpush2.bf16.msra.mxu0 %v870
    %956 = vmatprep.subr.bf16.mxu0 %v867
    %957 = vmatpush2.bf16.msra.mxu0 %v866
    %958 = vmatprep.subr.bf16.mxu0 %v863
    %959 = vmatpush2.bf16.msra.mxu0 %v862
    %960 = vmatprep.subr.bf16.mxu0 %v859
    %961 = vmatpush2.bf16.msra.mxu0 %v858
    %962 = vmatprep.subr.bf16.mxu0 %v855
    %963 = vmatpush2.bf16.msra.mxu0 %v854
    %964 = vmatprep.subr.bf16.mxu0 %v851
    %965 = vmatpush2.bf16.msra.mxu0 %v850
    %966 = vmatprep.subr.bf16.mxu0 %v847
    %967 = vmatpush2.bf16.msra.mxu0 %v846
    %968 = vmatprep.subr.bf16.mxu0 %v843
    %969 = vmatpush2.bf16.msra.mxu0 %v842
    %970 = vmatprep.mubr.bf16.mxu0 0
    %971 = vmatmul.mubr.bf16.gmra.mxu0 %v532
    %v972 = vpop.f32.mrf.mxu0
    %v973 = vadd.f32 %v601, %v972
    %v974 = vpop.f32.mrf.mxu0
    %v975 = vadd.f32 %v605, %v974
    %v976 = vpop.f32.mrf.mxu0
    %v977 = vpop.f32.mrf.mxu0
    %978 = vdwg.mxu0
    %979 = vmatprep.subr.bf16.mxu0 %v841
    %980 = vmatpush1.bf16.msra.mxu0 %v840
    %981 = vmatprep.subr.bf16.mxu0 %v837
    %982 = vmatpush1.bf16.msra.mxu0 %v836
    %983 = vmatprep.subr.bf16.mxu0 %v833
    %984 = vmatpush1.bf16.msra.mxu0 %v832
    %985 = vmatprep.subr.bf16.mxu0 %v829
    %986 = vmatpush1.bf16.msra.mxu0 %v828
    %987 = vmatprep.subr.bf16.mxu0 %v825
    %988 = vmatpush1.bf16.msra.mxu0 %v824
    %989 = vmatprep.subr.bf16.mxu0 %v821
    %990 = vmatpush1.bf16.msra.mxu0 %v820
    %991 = vmatprep.subr.bf16.mxu0 %v817
    %992 = vmatpush1.bf16.msra.mxu0 %v816
    %993 = vmatprep.subr.bf16.mxu0 %v813
    %994 = vmatpush1.bf16.msra.mxu0 %v812
    %995 = vmatprep.subr.bf16.mxu0 %v873
    %996 = vmatpush2.bf16.msra.mxu0 %v872
    %997 = vmatprep.subr.bf16.mxu0 %v869
    %998 = vmatpush2.bf16.msra.mxu0 %v868
    %999 = vmatprep.subr.bf16.mxu0 %v865
    %1000 = vmatpush2.bf16.msra.mxu0 %v864
    %1001 = vmatprep.subr.bf16.mxu0 %v861
    %1002 = vmatpush2.bf16.msra.mxu0 %v860
    %1003 = vmatprep.subr.bf16.mxu0 %v857
    %1004 = vmatpush2.bf16.msra.mxu0 %v856
    %1005 = vmatprep.subr.bf16.mxu0 %v853
    %1006 = vmatpush2.bf16.msra.mxu0 %v852
    %1007 = vmatprep.subr.bf16.mxu0 %v849
    %1008 = vmatpush2.bf16.msra.mxu0 %v848
    %1009 = vmatprep.subr.bf16.mxu0 %v845
    %1010 = vmatpush2.bf16.msra.mxu0 %v844
    %1011 = vmatprep.mubr.bf16.mxu0 0
    %1012 = vmatmul.mubr.bf16.gmra.mxu0 %v532
    %v1013 = vpop.f32.mrf.mxu0
    %v1014 = vadd.f32 %v609, %v1013
    %v1015 = vpop.f32.mrf.mxu0
    %v1016 = vadd.f32 %v613, %v1015
    %v1017 = vpop.f32.mrf.mxu0
    %v1018 = vpop.f32.mrf.mxu0
    %1019 = vdwg.mxu0
    %v1020 = vxor.u32 %v973, 2147483648
    %v1021 = vxor.u32 %v975, 2147483648
    %v1022 = vxor.u32 %v1014, 2147483648
    %v1023 = vmul.f32 %v1020, 1.442695
    %v1024 = vpow.pop %v1023
    %v1025 = vmul.f32 %v1021, 1.442695
    %v1026 = vpow.pop %v1025
    %v1027 = vmul.f32 %v1022, 1.442695
    %v1028 = vpow.pop %v1027
    %v1029 = vadd.f32 %v1024, 1.0
    %v1030 = vadd.f32 %v1026, 1.0
    %v1031 = vadd.f32 %v1028, 1.0
    %v1032 = vrcp.pop %v1029
    %v1033 = vmul.f32 1.0, %v1032
    %v1034 = vrcp.pop %v1030
    %v1035 = vmul.f32 1.0, %v1034
    %v1036 = vrcp.pop %v1031
    %v1037 = vmul.f32 1.0, %v1036
    %v1038 = vtanh.pop %v1016
    %v1039 = vmul.f32 %v1035, 0.0
    %v1040 = vmul.f32 %v1033, %v1038
    %v1041 = vadd.f32 %v1039, %v1040
    %v1042 = vtanh.pop %v1041
    %v1043 = vmul.f32 %v1037, %v1042
    %v1044 = vpack.c.bf16 %v513, %v513
    %1045 = vmatprep.subr.bf16.mxu0 %v369
    %1046 = vmatpush1.bf16.msra.mxu0 %v368
    %1047 = vmatprep.subr.bf16.mxu0 %v365
    %1048 = vmatpush1.bf16.msra.mxu0 %v364
    %1049 = vmatprep.subr.bf16.mxu0 %v361
    %1050 = vmatpush1.bf16.msra.mxu0 %v360
    %1051 = vmatprep.subr.bf16.mxu0 %v357
    %1052 = vmatpush1.bf16.msra.mxu0 %v356
    %1053 = vmatprep.subr.bf16.mxu0 %v353
    %1054 = vmatpush1.bf16.msra.mxu0 %v352
    %1055 = vmatprep.subr.bf16.mxu0 %v349
    %1056 = vmatpush1.bf16.msra.mxu0 %v348
    %1057 = vmatprep.subr.bf16.mxu0 %v345
    %1058 = vmatpush1.bf16.msra.mxu0 %v344
    %1059 = vmatprep.subr.bf16.mxu0 %v341
    %1060 = vmatpush1.bf16.msra.mxu0 %v340
    %1061 = vmatprep.subr.bf16.mxu0 0
    %1062 = vmatpush2.bf16.msra.mxu0 0
    %1063 = vmatprep.subr.bf16.mxu0 0
    %1064 = vmatpush2.bf16.msra.mxu0 0
    %1065 = vmatprep.subr.bf16.mxu0 0
    %1066 = vmatpush2.bf16.msra.mxu0 0
    %1067 = vmatprep.subr.bf16.mxu0 0
    %1068 = vmatpush2.bf16.msra.mxu0 0
    %1069 = vmatprep.subr.bf16.mxu0 0
    %1070 = vmatpush2.bf16.msra.mxu0 0
    %1071 = vmatprep.subr.bf16.mxu0 0
    %1072 = vmatpush2.bf16.msra.mxu0 0
    %1073 = vmatprep.subr.bf16.mxu0 0
    %1074 = vmatpush2.bf16.msra.mxu0 0
    %1075 = vmatprep.subr.bf16.mxu0 0
    %1076 = vmatpush2.bf16.msra.mxu0 0
    %1077 = vmatprep.mubr.bf16.mxu0 0
    %1078 = vmatmul.mubr.bf16.gmra.mxu0 %v1044
    %v1079 = vpop.f32.mrf.mxu0
    %v1080 = vadd.f32 0.0, %v1079
    %v1081 = vpop.f32.mrf.mxu0
    %v1082 = vadd.f32 0.0, %v1081
    %v1083 = vpop.f32.mrf.mxu0
    %v1084 = vpop.f32.mrf.mxu0
    %1085 = vdwg.mxu0
    %1086 = vmatprep.subr.bf16.mxu0 %v371
    %1087 = vmatpush1.bf16.msra.mxu0 %v370
    %1088 = vmatprep.subr.bf16.mxu0 %v367
    %1089 = vmatpush1.bf16.msra.mxu0 %v366
    %1090 = vmatprep.subr.bf16.mxu0 %v363
    %1091 = vmatpush1.bf16.msra.mxu0 %v362
    %1092 = vmatprep.subr.bf16.mxu0 %v359
    %1093 = vmatpush1.bf16.msra.mxu0 %v358
    %1094 = vmatprep.subr.bf16.mxu0 %v355
    %1095 = vmatpush1.bf16.msra.mxu0 %v354
    %1096 = vmatprep.subr.bf16.mxu0 %v351
    %1097 = vmatpush1.bf16.msra.mxu0 %v350
    %1098 = vmatprep.subr.bf16.mxu0 %v347
    %1099 = vmatpush1.bf16.msra.mxu0 %v346
    %1100 = vmatprep.subr.bf16.mxu0 %v343
    %1101 = vmatpush1.bf16.msra.mxu0 %v342
    %1102 = vmatprep.subr.bf16.mxu0 0
    %1103 = vmatpush2.bf16.msra.mxu0 0
    %1104 = vmatprep.subr.bf16.mxu0 0
    %1105 = vmatpush2.bf16.msra.mxu0 0
    %1106 = vmatprep.subr.bf16.mxu0 0
    %1107 = vmatpush2.bf16.msra.mxu0 0
    %1108 = vmatprep.subr.bf16.mxu0 0
    %1109 = vmatpush2.bf16.msra.mxu0 0
    %1110 = vmatprep.subr.bf16.mxu0 0
    %1111 = vmatpush2.bf16.msra.mxu0 0
    %1112 = vmatprep.subr.bf16.mxu0 0
    %1113 = vmatpush2.bf16.msra.mxu0 0
    %1114 = vmatprep.subr.bf16.mxu0 0
    %1115 = vmatpush2.bf16.msra.mxu0 0
    %1116 = vmatprep.subr.bf16.mxu0 0
    %1117 = vmatpush2.bf16.msra.mxu0 0
    %1118 = vmatprep.mubr.bf16.mxu0 0
    %1119 = vmatmul.mubr.bf16.gmra.mxu0 %v1044
    %v1120 = vpop.f32.mrf.mxu0
    %v1121 = vadd.f32 0.0, %v1120
    %v1122 = vpop.f32.mrf.mxu0
    %v1123 = vadd.f32 0.0, %v1122
    %v1124 = vpop.f32.mrf.mxu0
    %v1125 = vpop.f32.mrf.mxu0
    %1126 = vdwg.mxu0
    %v1131 = vrot.slane %v1080, 6
    %v1132 = vrot.slane %v1082, 6
    %v1133 = vrot.slane %v1121, 6
    %v1134 = vrot.slane %v1123, 6
    %v1139 = vadd.f32 %v161, %v1131
    %v1140 = vadd.f32 %v163, %v1132
    %v1141 = vadd.f32 %v204, %v1133
    %v1142 = vadd.f32 %v206, %v1134
    %v1143 = vxor.u32 %v1139, 2147483648
    %v1144 = vxor.u32 %v1140, 2147483648
    %v1145 = vxor.u32 %v1141, 2147483648
    %v1146 = vmul.f32 %v1143, 1.442695
    %v1147 = vpow.pop %v1146
    %v1148 = vmul.f32 %v1144, 1.442695
    %v1149 = vpow.pop %v1148
    %v1150 = vmul.f32 %v1145, 1.442695
    %v1151 = vpow.pop %v1150
    %v1152 = vadd.f32 %v1147, 1.0
    %v1153 = vadd.f32 %v1149, 1.0
    %v1154 = vadd.f32 %v1151, 1.0
    %v1155 = vrcp.pop %v1152
    %v1156 = vmul.f32 1.0, %v1155
    %v1157 = vrcp.pop %v1153
    %v1158 = vmul.f32 1.0, %v1157
    %v1159 = vrcp.pop %v1154
    %v1160 = vmul.f32 1.0, %v1159
    %v1161 = vtanh.pop %v1142
    %v1163 = vrot.slane %v511, 6
    %v1165 = vmul.f32 %v1158, %v1163
    %v1166 = vmul.f32 %v1156, %v1161
    %v1167 = vadd.f32 %v1165, %v1166
    %v1168 = vtanh.pop %v1167
    %v1169 = vmul.f32 %v1160, %v1168
    %vm1170 = vcmask 1043458
    %v1171 = vsel %vm1170, %v1169, 0.0
    %1172 = vadd.xlane.f32.xlu0 %v1171
    %v1173 = vpop.xlane.xlu0 %1172
    %v1174 = vmul.f32 %v1173, 0.03125
    %v1175 = vsub.f32 %v1169, %v1174
    %v1176 = vmul.f32 %v1175, %v1175
    %v1177 = vsel %vm1170, %v1176, 0.0
    %1178 = vadd.xlane.f32.xlu0 %v1177
    %v1179 = vpop.xlane.xlu0 %1178
    %v1180 = vmul.f32 %v1174, %v1174
    %v1181 = vmul.f32 %v1180, 96.0
    %v1182 = vsub.f32 %v1179, %v1181
    %v1183 = vmul.f32 %v1182, 0.03125
    %v1184 = vadd.f32 %v1183, 1e-05
    %v1185 = vrsqrt.pop %v1184
    %v1186 = vmul.f32 %v1175, %v1185
    %v1187 = vmul.f32 %v1186, %v55
    %v1188 = vadd.f32 %v1187, %v56
    %v1189 = vpack.c.bf16 %v1188, %v1188
    %v1190 = vpack.c.bf16 %v1043, %v1043
    %v1192 = vrot.slane %v1190, 7
    %v1194 = vrot.slane %v1189, 1
    %v1195 = vrot.slane %v1192, 1
    %1198 = vmatprep.subr.bf16.mxu0 %v839
    %1199 = vmatpush1.bf16.msra.mxu0 %v838
    %1200 = vmatprep.subr.bf16.mxu0 %v835
    %1201 = vmatpush1.bf16.msra.mxu0 %v834
    %1202 = vmatprep.subr.bf16.mxu0 %v831
    %1203 = vmatpush1.bf16.msra.mxu0 %v830
    %1204 = vmatprep.subr.bf16.mxu0 %v827
    %1205 = vmatpush1.bf16.msra.mxu0 %v826
    %1206 = vmatprep.subr.bf16.mxu0 %v823
    %1207 = vmatpush1.bf16.msra.mxu0 %v822
    %1208 = vmatprep.subr.bf16.mxu0 %v819
    %1209 = vmatpush1.bf16.msra.mxu0 %v818
    %1210 = vmatprep.subr.bf16.mxu0 %v815
    %1211 = vmatpush1.bf16.msra.mxu0 %v814
    %1212 = vmatprep.subr.bf16.mxu0 %v811
    %1213 = vmatpush1.bf16.msra.mxu0 %v810
    %1214 = vmatprep.subr.bf16.mxu0 %v871
    %1215 = vmatpush2.bf16.msra.mxu0 %v870
    %1216 = vmatprep.subr.bf16.mxu0 %v867
    %1217 = vmatpush2.bf16.msra.mxu0 %v866
    %1218 = vmatprep.subr.bf16.mxu0 %v863
    %1219 = vmatpush2.bf16.msra.mxu0 %v862
    %1220 = vmatprep.subr.bf16.mxu0 %v859
    %1221 = vmatpush2.bf16.msra.mxu0 %v858
    %1222 = vmatprep.subr.bf16.mxu0 %v855
    %1223 = vmatpush2.bf16.msra.mxu0 %v854
    %1224 = vmatprep.subr.bf16.mxu0 %v851
    %1225 = vmatpush2.bf16.msra.mxu0 %v850
    %1226 = vmatprep.subr.bf16.mxu0 %v847
    %1227 = vmatpush2.bf16.msra.mxu0 %v846
    %1228 = vmatprep.subr.bf16.mxu0 %v843
    %1229 = vmatpush2.bf16.msra.mxu0 %v842
    %1230 = vmatprep.mubr.bf16.mxu0 %v1195
    %1231 = vmatmul.mubr.bf16.gmra.mxu0 %v1194
    %v1232 = vpop.f32.mrf.mxu0
    %v1233 = vadd.f32 %v601, %v1232
    %v1234 = vpop.f32.mrf.mxu0
    %v1235 = vadd.f32 %v605, %v1234
    %v1236 = vpop.f32.mrf.mxu0
    %v1237 = vpop.f32.mrf.mxu0
    %1238 = vdwg.mxu0
    %1239 = vmatprep.subr.bf16.mxu0 %v841
    %1240 = vmatpush1.bf16.msra.mxu0 %v840
    %1241 = vmatprep.subr.bf16.mxu0 %v837
    %1242 = vmatpush1.bf16.msra.mxu0 %v836
    %1243 = vmatprep.subr.bf16.mxu0 %v833
    %1244 = vmatpush1.bf16.msra.mxu0 %v832
    %1245 = vmatprep.subr.bf16.mxu0 %v829
    %1246 = vmatpush1.bf16.msra.mxu0 %v828
    %1247 = vmatprep.subr.bf16.mxu0 %v825
    %1248 = vmatpush1.bf16.msra.mxu0 %v824
    %1249 = vmatprep.subr.bf16.mxu0 %v821
    %1250 = vmatpush1.bf16.msra.mxu0 %v820
    %1251 = vmatprep.subr.bf16.mxu0 %v817
    %1252 = vmatpush1.bf16.msra.mxu0 %v816
    %1253 = vmatprep.subr.bf16.mxu0 %v813
    %1254 = vmatpush1.bf16.msra.mxu0 %v812
    %1255 = vmatprep.subr.bf16.mxu0 %v873
    %1256 = vmatpush2.bf16.msra.mxu0 %v872
    %1257 = vmatprep.subr.bf16.mxu0 %v869
    %1258 = vmatpush2.bf16.msra.mxu0 %v868
    %1259 = vmatprep.subr.bf16.mxu0 %v865
    %1260 = vmatpush2.bf16.msra.mxu0 %v864
    %1261 = vmatprep.subr.bf16.mxu0 %v861
    %1262 = vmatpush2.bf16.msra.mxu0 %v860
    %1263 = vmatprep.subr.bf16.mxu0 %v857
    %1264 = vmatpush2.bf16.msra.mxu0 %v856
    %1265 = vmatprep.subr.bf16.mxu0 %v853
    %1266 = vmatpush2.bf16.msra.mxu0 %v852
    %1267 = vmatprep.subr.bf16.mxu0 %v849
    %1268 = vmatpush2.bf16.msra.mxu0 %v848
    %1269 = vmatprep.subr.bf16.mxu0 %v845
    %1270 = vmatpush2.bf16.msra.mxu0 %v844
    %1271 = vmatprep.mubr.bf16.mxu0 %v1195
    %1272 = vmatmul.mubr.bf16.gmra.mxu0 %v1194
    %v1273 = vpop.f32.mrf.mxu0
    %v1274 = vadd.f32 %v609, %v1273
    %v1275 = vpop.f32.mrf.mxu0
    %v1276 = vadd.f32 %v613, %v1275
    %v1277 = vpop.f32.mrf.mxu0
    %v1278 = vpop.f32.mrf.mxu0
    %1279 = vdwg.mxu0
    %v1280 = vxor.u32 %v1233, 2147483648
    %v1281 = vxor.u32 %v1235, 2147483648
    %v1282 = vxor.u32 %v1274, 2147483648
    %v1283 = vmul.f32 %v1280, 1.442695
    %v1284 = vpow.pop %v1283
    %v1285 = vmul.f32 %v1281, 1.442695
    %v1286 = vpow.pop %v1285
    %v1287 = vmul.f32 %v1282, 1.442695
    %v1288 = vpow.pop %v1287
    %v1289 = vadd.f32 %v1284, 1.0
    %v1290 = vadd.f32 %v1286, 1.0
    %v1291 = vadd.f32 %v1288, 1.0
    %v1292 = vrcp.pop %v1289
    %v1293 = vmul.f32 1.0, %v1292
    %v1294 = vrcp.pop %v1290
    %v1295 = vmul.f32 1.0, %v1294
    %v1296 = vrcp.pop %v1291
    %v1297 = vmul.f32 1.0, %v1296
    %v1298 = vtanh.pop %v1276
    %v1299 = vmul.f32 %v1295, %v1041
    %v1300 = vmul.f32 %v1293, %v1298
    %v1301 = vadd.f32 %v1299, %v1300
    %v1302 = vtanh.pop %v1301
    %v1303 = vmul.f32 %v1297, %v1302
    %v1304 = vpack.c.bf16 %v1169, %v1169
    %v1306 = vrot.slane %v1304, 1
    %1308 = vmatprep.subr.bf16.mxu0 %v369
    %1309 = vmatpush1.bf16.msra.mxu0 %v368
    %1310 = vmatprep.subr.bf16.mxu0 %v365
    %1311 = vmatpush1.bf16.msra.mxu0 %v364
    %1312 = vmatprep.subr.bf16.mxu0 %v361
    %1313 = vmatpush1.bf16.msra.mxu0 %v360
    %1314 = vmatprep.subr.bf16.mxu0 %v357
    %1315 = vmatpush1.bf16.msra.mxu0 %v356
    %1316 = vmatprep.subr.bf16.mxu0 %v353
    %1317 = vmatpush1.bf16.msra.mxu0 %v352
    %1318 = vmatprep.subr.bf16.mxu0 %v349
    %1319 = vmatpush1.bf16.msra.mxu0 %v348
    %1320 = vmatprep.subr.bf16.mxu0 %v345
    %1321 = vmatpush1.bf16.msra.mxu0 %v344
    %1322 = vmatprep.subr.bf16.mxu0 %v341
    %1323 = vmatpush1.bf16.msra.mxu0 %v340
    %1324 = vmatprep.subr.bf16.mxu0 0
    %1325 = vmatpush2.bf16.msra.mxu0 0
    %1326 = vmatprep.subr.bf16.mxu0 0
    %1327 = vmatpush2.bf16.msra.mxu0 0
    %1328 = vmatprep.subr.bf16.mxu0 0
    %1329 = vmatpush2.bf16.msra.mxu0 0
    %1330 = vmatprep.subr.bf16.mxu0 0
    %1331 = vmatpush2.bf16.msra.mxu0 0
    %1332 = vmatprep.subr.bf16.mxu0 0
    %1333 = vmatpush2.bf16.msra.mxu0 0
    %1334 = vmatprep.subr.bf16.mxu0 0
    %1335 = vmatpush2.bf16.msra.mxu0 0
    %1336 = vmatprep.subr.bf16.mxu0 0
    %1337 = vmatpush2.bf16.msra.mxu0 0
    %1338 = vmatprep.subr.bf16.mxu0 0
    %1339 = vmatpush2.bf16.msra.mxu0 0
    %1340 = vmatprep.mubr.bf16.mxu0 0
    %1341 = vmatmul.mubr.bf16.gmra.mxu0 %v1306
    %v1342 = vpop.f32.mrf.mxu0
    %v1343 = vadd.f32 0.0, %v1342
    %v1344 = vpop.f32.mrf.mxu0
    %v1345 = vadd.f32 0.0, %v1344
    %v1346 = vpop.f32.mrf.mxu0
    %v1347 = vpop.f32.mrf.mxu0
    %1348 = vdwg.mxu0
    %1349 = vmatprep.subr.bf16.mxu0 %v371
    %1350 = vmatpush1.bf16.msra.mxu0 %v370
    %1351 = vmatprep.subr.bf16.mxu0 %v367
    %1352 = vmatpush1.bf16.msra.mxu0 %v366
    %1353 = vmatprep.subr.bf16.mxu0 %v363
    %1354 = vmatpush1.bf16.msra.mxu0 %v362
    %1355 = vmatprep.subr.bf16.mxu0 %v359
    %1356 = vmatpush1.bf16.msra.mxu0 %v358
    %1357 = vmatprep.subr.bf16.mxu0 %v355
    %1358 = vmatpush1.bf16.msra.mxu0 %v354
    %1359 = vmatprep.subr.bf16.mxu0 %v351
    %1360 = vmatpush1.bf16.msra.mxu0 %v350
    %1361 = vmatprep.subr.bf16.mxu0 %v347
    %1362 = vmatpush1.bf16.msra.mxu0 %v346
    %1363 = vmatprep.subr.bf16.mxu0 %v343
    %1364 = vmatpush1.bf16.msra.mxu0 %v342
    %1365 = vmatprep.subr.bf16.mxu0 0
    %1366 = vmatpush2.bf16.msra.mxu0 0
    %1367 = vmatprep.subr.bf16.mxu0 0
    %1368 = vmatpush2.bf16.msra.mxu0 0
    %1369 = vmatprep.subr.bf16.mxu0 0
    %1370 = vmatpush2.bf16.msra.mxu0 0
    %1371 = vmatprep.subr.bf16.mxu0 0
    %1372 = vmatpush2.bf16.msra.mxu0 0
    %1373 = vmatprep.subr.bf16.mxu0 0
    %1374 = vmatpush2.bf16.msra.mxu0 0
    %1375 = vmatprep.subr.bf16.mxu0 0
    %1376 = vmatpush2.bf16.msra.mxu0 0
    %1377 = vmatprep.subr.bf16.mxu0 0
    %1378 = vmatpush2.bf16.msra.mxu0 0
    %1379 = vmatprep.subr.bf16.mxu0 0
    %1380 = vmatpush2.bf16.msra.mxu0 0
    %1381 = vmatprep.mubr.bf16.mxu0 0
    %1382 = vmatmul.mubr.bf16.gmra.mxu0 %v1306
    %v1383 = vpop.f32.mrf.mxu0
    %v1384 = vadd.f32 0.0, %v1383
    %v1385 = vpop.f32.mrf.mxu0
    %v1386 = vadd.f32 0.0, %v1385
    %v1387 = vpop.f32.mrf.mxu0
    %v1388 = vpop.f32.mrf.mxu0
    %1389 = vdwg.mxu0
    %v1394 = vrot.slane %v1343, 4
    %v1395 = vrot.slane %v1345, 4
    %v1396 = vrot.slane %v1384, 4
    %v1397 = vrot.slane %v1386, 4
    %v1402 = vadd.f32 %v161, %v1394
    %v1403 = vadd.f32 %v163, %v1395
    %v1404 = vadd.f32 %v204, %v1396
    %v1405 = vadd.f32 %v206, %v1397
    %v1406 = vxor.u32 %v1402, 2147483648
    %v1407 = vxor.u32 %v1403, 2147483648
    %v1408 = vxor.u32 %v1404, 2147483648
    %v1409 = vmul.f32 %v1406, 1.442695
    %v1410 = vpow.pop %v1409
    %v1411 = vmul.f32 %v1407, 1.442695
    %v1412 = vpow.pop %v1411
    %v1413 = vmul.f32 %v1408, 1.442695
    %v1414 = vpow.pop %v1413
    %v1415 = vadd.f32 %v1410, 1.0
    %v1416 = vadd.f32 %v1412, 1.0
    %v1417 = vadd.f32 %v1414, 1.0
    %v1418 = vrcp.pop %v1415
    %v1419 = vmul.f32 1.0, %v1418
    %v1420 = vrcp.pop %v1416
    %v1421 = vmul.f32 1.0, %v1420
    %v1422 = vrcp.pop %v1417
    %v1423 = vmul.f32 1.0, %v1422
    %v1424 = vtanh.pop %v1405
    %v1426 = vrot.slane %v1167, 6
    %v1428 = vmul.f32 %v1421, %v1426
    %v1429 = vmul.f32 %v1419, %v1424
    %v1430 = vadd.f32 %v1428, %v1429
    %v1431 = vtanh.pop %v1430
    %v1432 = vmul.f32 %v1423, %v1431
    %vm1433 = vcmask 1045508
    %v1434 = vsel %vm1433, %v1432, 0.0
    %1435 = vadd.xlane.f32.xlu0 %v1434
    %v1436 = vpop.xlane.xlu0 %1435
    %v1437 = vmul.f32 %v1436, 0.03125
    %v1438 = vsub.f32 %v1432, %v1437
    %v1439 = vmul.f32 %v1438, %v1438
    %v1440 = vsel %vm1433, %v1439, 0.0
    %1441 = vadd.xlane.f32.xlu0 %v1440
    %v1442 = vpop.xlane.xlu0 %1441
    %v1443 = vmul.f32 %v1437, %v1437
    %v1444 = vmul.f32 %v1443, 96.0
    %v1445 = vsub.f32 %v1442, %v1444
    %v1446 = vmul.f32 %v1445, 0.03125
    %v1447 = vadd.f32 %v1446, 1e-05
    %v1448 = vrsqrt.pop %v1447
    %v1449 = vmul.f32 %v1438, %v1448
    %v1450 = vmul.f32 %v1449, %v55
    %v1451 = vadd.f32 %v1450, %v56
    %v1452 = vpack.c.bf16 %v1451, %v1451
    %v1453 = vpack.c.bf16 %v1303, %v1303
    %v1455 = vrot.slane %v1453, 6
    %v1457 = vrot.slane %v1452, 2
    %v1458 = vrot.slane %v1455, 2
    %1461 = vmatprep.subr.bf16.mxu0 %v839
    %1462 = vmatpush1.bf16.msra.mxu0 %v838
    %1463 = vmatprep.subr.bf16.mxu0 %v835
    %1464 = vmatpush1.bf16.msra.mxu0 %v834
    %1465 = vmatprep.subr.bf16.mxu0 %v831
    %1466 = vmatpush1.bf16.msra.mxu0 %v830
    %1467 = vmatprep.subr.bf16.mxu0 %v827
    %1468 = vmatpush1.bf16.msra.mxu0 %v826
    %1469 = vmatprep.subr.bf16.mxu0 %v823
    %1470 = vmatpush1.bf16.msra.mxu0 %v822
    %1471 = vmatprep.subr.bf16.mxu0 %v819
    %1472 = vmatpush1.bf16.msra.mxu0 %v818
    %1473 = vmatprep.subr.bf16.mxu0 %v815
    %1474 = vmatpush1.bf16.msra.mxu0 %v814
    %1475 = vmatprep.subr.bf16.mxu0 %v811
    %1476 = vmatpush1.bf16.msra.mxu0 %v810
    %1477 = vmatprep.subr.bf16.mxu0 %v871
    %1478 = vmatpush2.bf16.msra.mxu0 %v870
    %1479 = vmatprep.subr.bf16.mxu0 %v867
    %1480 = vmatpush2.bf16.msra.mxu0 %v866
    %1481 = vmatprep.subr.bf16.mxu0 %v863
    %1482 = vmatpush2.bf16.msra.mxu0 %v862
    %1483 = vmatprep.subr.bf16.mxu0 %v859
    %1484 = vmatpush2.bf16.msra.mxu0 %v858
    %1485 = vmatprep.subr.bf16.mxu0 %v855
    %1486 = vmatpush2.bf16.msra.mxu0 %v854
    %1487 = vmatprep.subr.bf16.mxu0 %v851
    %1488 = vmatpush2.bf16.msra.mxu0 %v850
    %1489 = vmatprep.subr.bf16.mxu0 %v847
    %1490 = vmatpush2.bf16.msra.mxu0 %v846
    %1491 = vmatprep.subr.bf16.mxu0 %v843
    %1492 = vmatpush2.bf16.msra.mxu0 %v842
    %1493 = vmatprep.mubr.bf16.mxu0 %v1458
    %1494 = vmatmul.mubr.bf16.gmra.mxu0 %v1457
    %v1495 = vpop.f32.mrf.mxu0
    %v1496 = vadd.f32 %v601, %v1495
    %v1497 = vpop.f32.mrf.mxu0
    %v1498 = vadd.f32 %v605, %v1497
    %v1499 = vpop.f32.mrf.mxu0
    %v1500 = vpop.f32.mrf.mxu0
    %1501 = vdwg.mxu0
    %1502 = vmatprep.subr.bf16.mxu0 %v841
    %1503 = vmatpush1.bf16.msra.mxu0 %v840
    %1504 = vmatprep.subr.bf16.mxu0 %v837
    %1505 = vmatpush1.bf16.msra.mxu0 %v836
    %1506 = vmatprep.subr.bf16.mxu0 %v833
    %1507 = vmatpush1.bf16.msra.mxu0 %v832
    %1508 = vmatprep.subr.bf16.mxu0 %v829
    %1509 = vmatpush1.bf16.msra.mxu0 %v828
    %1510 = vmatprep.subr.bf16.mxu0 %v825
    %1511 = vmatpush1.bf16.msra.mxu0 %v824
    %1512 = vmatprep.subr.bf16.mxu0 %v821
    %1513 = vmatpush1.bf16.msra.mxu0 %v820
    %1514 = vmatprep.subr.bf16.mxu0 %v817
    %1515 = vmatpush1.bf16.msra.mxu0 %v816
    %1516 = vmatprep.subr.bf16.mxu0 %v813
    %1517 = vmatpush1.bf16.msra.mxu0 %v812
    %1518 = vmatprep.subr.bf16.mxu0 %v873
    %1519 = vmatpush2.bf16.msra.mxu0 %v872
    %1520 = vmatprep.subr.bf16.mxu0 %v869
    %1521 = vmatpush2.bf16.msra.mxu0 %v868
    %1522 = vmatprep.subr.bf16.mxu0 %v865
    %1523 = vmatpush2.bf16.msra.mxu0 %v864
    %1524 = vmatprep.subr.bf16.mxu0 %v861
    %1525 = vmatpush2.bf16.msra.mxu0 %v860
    %1526 = vmatprep.subr.bf16.mxu0 %v857
    %1527 = vmatpush2.bf16.msra.mxu0 %v856
    %1528 = vmatprep.subr.bf16.mxu0 %v853
    %1529 = vmatpush2.bf16.msra.mxu0 %v852
    %1530 = vmatprep.subr.bf16.mxu0 %v849
    %1531 = vmatpush2.bf16.msra.mxu0 %v848
    %1532 = vmatprep.subr.bf16.mxu0 %v845
    %1533 = vmatpush2.bf16.msra.mxu0 %v844
    %1534 = vmatprep.mubr.bf16.mxu0 %v1458
    %1535 = vmatmul.mubr.bf16.gmra.mxu0 %v1457
    %v1536 = vpop.f32.mrf.mxu0
    %v1537 = vadd.f32 %v609, %v1536
    %v1538 = vpop.f32.mrf.mxu0
    %v1539 = vadd.f32 %v613, %v1538
    %v1540 = vpop.f32.mrf.mxu0
    %v1541 = vpop.f32.mrf.mxu0
    %1542 = vdwg.mxu0
    %v1543 = vxor.u32 %v1496, 2147483648
    %v1544 = vxor.u32 %v1498, 2147483648
    %v1545 = vxor.u32 %v1537, 2147483648
    %v1546 = vmul.f32 %v1543, 1.442695
    %v1547 = vpow.pop %v1546
    %v1548 = vmul.f32 %v1544, 1.442695
    %v1549 = vpow.pop %v1548
    %v1550 = vmul.f32 %v1545, 1.442695
    %v1551 = vpow.pop %v1550
    %v1552 = vadd.f32 %v1547, 1.0
    %v1553 = vadd.f32 %v1549, 1.0
    %v1554 = vadd.f32 %v1551, 1.0
    %v1555 = vrcp.pop %v1552
    %v1556 = vmul.f32 1.0, %v1555
    %v1557 = vrcp.pop %v1553
    %v1558 = vmul.f32 1.0, %v1557
    %v1559 = vrcp.pop %v1554
    %v1560 = vmul.f32 1.0, %v1559
    %v1561 = vtanh.pop %v1539
    %v1562 = vmul.f32 %v1558, %v1301
    %v1563 = vmul.f32 %v1556, %v1561
    %v1564 = vadd.f32 %v1562, %v1563
    %v1565 = vtanh.pop %v1564
    %v1566 = vmul.f32 %v1560, %v1565
    %v1567 = vpack.c.bf16 %v1432, %v1432
    %v1569 = vrot.slane %v1567, 2
    %1571 = vmatprep.subr.bf16.mxu0 %v369
    %1572 = vmatpush1.bf16.msra.mxu0 %v368
    %1573 = vmatprep.subr.bf16.mxu0 %v365
    %1574 = vmatpush1.bf16.msra.mxu0 %v364
    %1575 = vmatprep.subr.bf16.mxu0 %v361
    %1576 = vmatpush1.bf16.msra.mxu0 %v360
    %1577 = vmatprep.subr.bf16.mxu0 %v357
    %1578 = vmatpush1.bf16.msra.mxu0 %v356
    %1579 = vmatprep.subr.bf16.mxu0 %v353
    %1580 = vmatpush1.bf16.msra.mxu0 %v352
    %1581 = vmatprep.subr.bf16.mxu0 %v349
    %1582 = vmatpush1.bf16.msra.mxu0 %v348
    %1583 = vmatprep.subr.bf16.mxu0 %v345
    %1584 = vmatpush1.bf16.msra.mxu0 %v344
    %1585 = vmatprep.subr.bf16.mxu0 %v341
    %1586 = vmatpush1.bf16.msra.mxu0 %v340
    %1587 = vmatprep.subr.bf16.mxu0 0
    %1588 = vmatpush2.bf16.msra.mxu0 0
    %1589 = vmatprep.subr.bf16.mxu0 0
    %1590 = vmatpush2.bf16.msra.mxu0 0
    %1591 = vmatprep.subr.bf16.mxu0 0
    %1592 = vmatpush2.bf16.msra.mxu0 0
    %1593 = vmatprep.subr.bf16.mxu0 0
    %1594 = vmatpush2.bf16.msra.mxu0 0
    %1595 = vmatprep.subr.bf16.mxu0 0
    %1596 = vmatpush2.bf16.msra.mxu0 0
    %1597 = vmatprep.subr.bf16.mxu0 0
    %1598 = vmatpush2.bf16.msra.mxu0 0
    %1599 = vmatprep.subr.bf16.mxu0 0
    %1600 = vmatpush2.bf16.msra.mxu0 0
    %1601 = vmatprep.subr.bf16.mxu0 0
    %1602 = vmatpush2.bf16.msra.mxu0 0
    %1603 = vmatprep.mubr.bf16.mxu0 0
    %1604 = vmatmul.mubr.bf16.gmra.mxu0 %v1569
    %v1605 = vpop.f32.mrf.mxu0
    %v1606 = vadd.f32 0.0, %v1605
    %v1607 = vpop.f32.mrf.mxu0
    %v1608 = vadd.f32 0.0, %v1607
    %v1609 = vpop.f32.mrf.mxu0
    %v1610 = vpop.f32.mrf.mxu0
    %1611 = vdwg.mxu0
    %1612 = vmatprep.subr.bf16.mxu0 %v371
    %1613 = vmatpush1.bf16.msra.mxu0 %v370
    %1614 = vmatprep.subr.bf16.mxu0 %v367
    %1615 = vmatpush1.bf16.msra.mxu0 %v366
    %1616 = vmatprep.subr.bf16.mxu0 %v363
    %1617 = vmatpush1.bf16.msra.mxu0 %v362
    %1618 = vmatprep.subr.bf16.mxu0 %v359
    %1619 = vmatpush1.bf16.msra.mxu0 %v358
    %1620 = vmatprep.subr.bf16.mxu0 %v355
    %1621 = vmatpush1.bf16.msra.mxu0 %v354
    %1622 = vmatprep.subr.bf16.mxu0 %v351
    %1623 = vmatpush1.bf16.msra.mxu0 %v350
    %1624 = vmatprep.subr.bf16.mxu0 %v347
    %1625 = vmatpush1.bf16.msra.mxu0 %v346
    %1626 = vmatprep.subr.bf16.mxu0 %v343
    %1627 = vmatpush1.bf16.msra.mxu0 %v342
    %1628 = vmatprep.subr.bf16.mxu0 0
    %1629 = vmatpush2.bf16.msra.mxu0 0
    %1630 = vmatprep.subr.bf16.mxu0 0
    %1631 = vmatpush2.bf16.msra.mxu0 0
    %1632 = vmatprep.subr.bf16.mxu0 0
    %1633 = vmatpush2.bf16.msra.mxu0 0
    %1634 = vmatprep.subr.bf16.mxu0 0
    %1635 = vmatpush2.bf16.msra.mxu0 0
    %1636 = vmatprep.subr.bf16.mxu0 0
    %1637 = vmatpush2.bf16.msra.mxu0 0
    %1638 = vmatprep.subr.bf16.mxu0 0
    %1639 = vmatpush2.bf16.msra.mxu0 0
    %1640 = vmatprep.subr.bf16.mxu0 0
    %1641 = vmatpush2.bf16.msra.mxu0 0
    %1642 = vmatprep.subr.bf16.mxu0 0
    %1643 = vmatpush2.bf16.msra.mxu0 0
    %1644 = vmatprep.mubr.bf16.mxu0 0
    %1645 = vmatmul.mubr.bf16.gmra.mxu0 %v1569
    %v1646 = vpop.f32.mrf.mxu0
    %v1647 = vadd.f32 0.0, %v1646
    %v1648 = vpop.f32.mrf.mxu0
    %v1649 = vadd.f32 0.0, %v1648
    %v1650 = vpop.f32.mrf.mxu0
    %v1651 = vpop.f32.mrf.mxu0
    %1652 = vdwg.mxu0
    %v1657 = vrot.slane %v1606, 2
    %v1658 = vrot.slane %v1608, 2
    %v1659 = vrot.slane %v1647, 2
    %v1660 = vrot.slane %v1649, 2
    %v1665 = vadd.f32 %v161, %v1657
    %v1666 = vadd.f32 %v163, %v1658
    %v1667 = vadd.f32 %v204, %v1659
    %v1668 = vadd.f32 %v206, %v1660
    %v1669 = vxor.u32 %v1665, 2147483648
    %v1670 = vxor.u32 %v1666, 2147483648
    %v1671 = vxor.u32 %v1667, 2147483648
    %v1672 = vmul.f32 %v1669, 1.442695
    %v1673 = vpow.pop %v1672
    %v1674 = vmul.f32 %v1670, 1.442695
    %v1675 = vpow.pop %v1674
    %v1676 = vmul.f32 %v1671, 1.442695
    %v1677 = vpow.pop %v1676
    %v1678 = vadd.f32 %v1673, 1.0
    %v1679 = vadd.f32 %v1675, 1.0
    %v1680 = vadd.f32 %v1677, 1.0
    %v1681 = vrcp.pop %v1678
    %v1682 = vmul.f32 1.0, %v1681
    %v1683 = vrcp.pop %v1679
    %v1684 = vmul.f32 1.0, %v1683
    %v1685 = vrcp.pop %v1680
    %v1686 = vmul.f32 1.0, %v1685
    %v1687 = vtanh.pop %v1668
    %v1689 = vrot.slane %v1430, 6
    %v1691 = vmul.f32 %v1684, %v1689
    %v1692 = vmul.f32 %v1682, %v1687
    %v1693 = vadd.f32 %v1691, %v1692
    %v1694 = vtanh.pop %v1693
    %v1695 = vmul.f32 %v1686, %v1694
    %vm1696 = vcmask 1047558
    %v1697 = vsel %vm1696, %v1695, 0.0
    %1698 = vadd.xlane.f32.xlu0 %v1697
    %v1699 = vpop.xlane.xlu0 %1698
    %v1700 = vmul.f32 %v1699, 0.03125
    %v1701 = vsub.f32 %v1695, %v1700
    %v1702 = vmul.f32 %v1701, %v1701
    %v1703 = vsel %vm1696, %v1702, 0.0
    %1704 = vadd.xlane.f32.xlu0 %v1703
    %v1705 = vpop.xlane.xlu0 %1704
    %v1706 = vmul.f32 %v1700, %v1700
    %v1707 = vmul.f32 %v1706, 96.0
    %v1708 = vsub.f32 %v1705, %v1707
    %v1709 = vmul.f32 %v1708, 0.03125
    %v1710 = vadd.f32 %v1709, 1e-05
    %v1711 = vrsqrt.pop %v1710
    %v1712 = vmul.f32 %v1701, %v1711
    %v1713 = vmul.f32 %v1712, %v55
    %v1714 = vadd.f32 %v1713, %v56
    %v1715 = vpack.c.bf16 %v1714, %v1714
    %v1716 = vpack.c.bf16 %v1566, %v1566
    %v1718 = vrot.slane %v1716, 5
    %v1720 = vrot.slane %v1715, 3
    %v1721 = vrot.slane %v1718, 3
    %1724 = vmatprep.subr.bf16.mxu0 %v839
    %1725 = vmatpush1.bf16.msra.mxu0 %v838
    %1726 = vmatprep.subr.bf16.mxu0 %v835
    %1727 = vmatpush1.bf16.msra.mxu0 %v834
    %1728 = vmatprep.subr.bf16.mxu0 %v831
    %1729 = vmatpush1.bf16.msra.mxu0 %v830
    %1730 = vmatprep.subr.bf16.mxu0 %v827
    %1731 = vmatpush1.bf16.msra.mxu0 %v826
    %1732 = vmatprep.subr.bf16.mxu0 %v823
    %1733 = vmatpush1.bf16.msra.mxu0 %v822
    %1734 = vmatprep.subr.bf16.mxu0 %v819
    %1735 = vmatpush1.bf16.msra.mxu0 %v818
    %1736 = vmatprep.subr.bf16.mxu0 %v815
    %1737 = vmatpush1.bf16.msra.mxu0 %v814
    %1738 = vmatprep.subr.bf16.mxu0 %v811
    %1739 = vmatpush1.bf16.msra.mxu0 %v810
    %1740 = vmatprep.subr.bf16.mxu0 %v871
    %1741 = vmatpush2.bf16.msra.mxu0 %v870
    %1742 = vmatprep.subr.bf16.mxu0 %v867
    %1743 = vmatpush2.bf16.msra.mxu0 %v866
    %1744 = vmatprep.subr.bf16.mxu0 %v863
    %1745 = vmatpush2.bf16.msra.mxu0 %v862
    %1746 = vmatprep.subr.bf16.mxu0 %v859
    %1747 = vmatpush2.bf16.msra.mxu0 %v858
    %1748 = vmatprep.subr.bf16.mxu0 %v855
    %1749 = vmatpush2.bf16.msra.mxu0 %v854
    %1750 = vmatprep.subr.bf16.mxu0 %v851
    %1751 = vmatpush2.bf16.msra.mxu0 %v850
    %1752 = vmatprep.subr.bf16.mxu0 %v847
    %1753 = vmatpush2.bf16.msra.mxu0 %v846
    %1754 = vmatprep.subr.bf16.mxu0 %v843
    %1755 = vmatpush2.bf16.msra.mxu0 %v842
    %1756 = vmatprep.mubr.bf16.mxu0 %v1721
    %1757 = vmatmul.mubr.bf16.gmra.mxu0 %v1720
    %v1758 = vpop.f32.mrf.mxu0
    %v1759 = vadd.f32 %v601, %v1758
    %v1760 = vpop.f32.mrf.mxu0
    %v1761 = vadd.f32 %v605, %v1760
    %v1762 = vpop.f32.mrf.mxu0
    %v1763 = vpop.f32.mrf.mxu0
    %1764 = vdwg.mxu0
    %1765 = vmatprep.subr.bf16.mxu0 %v841
    %1766 = vmatpush1.bf16.msra.mxu0 %v840
    %1767 = vmatprep.subr.bf16.mxu0 %v837
    %1768 = vmatpush1.bf16.msra.mxu0 %v836
    %1769 = vmatprep.subr.bf16.mxu0 %v833
    %1770 = vmatpush1.bf16.msra.mxu0 %v832
    %1771 = vmatprep.subr.bf16.mxu0 %v829
    %1772 = vmatpush1.bf16.msra.mxu0 %v828
    %1773 = vmatprep.subr.bf16.mxu0 %v825
    %1774 = vmatpush1.bf16.msra.mxu0 %v824
    %1775 = vmatprep.subr.bf16.mxu0 %v821
    %1776 = vmatpush1.bf16.msra.mxu0 %v820
    %1777 = vmatprep.subr.bf16.mxu0 %v817
    %1778 = vmatpush1.bf16.msra.mxu0 %v816
    %1779 = vmatprep.subr.bf16.mxu0 %v813
    %1780 = vmatpush1.bf16.msra.mxu0 %v812
    %1781 = vmatprep.subr.bf16.mxu0 %v873
    %1782 = vmatpush2.bf16.msra.mxu0 %v872
    %1783 = vmatprep.subr.bf16.mxu0 %v869
    %1784 = vmatpush2.bf16.msra.mxu0 %v868
    %1785 = vmatprep.subr.bf16.mxu0 %v865
    %1786 = vmatpush2.bf16.msra.mxu0 %v864
    %1787 = vmatprep.subr.bf16.mxu0 %v861
    %1788 = vmatpush2.bf16.msra.mxu0 %v860
    %1789 = vmatprep.subr.bf16.mxu0 %v857
    %1790 = vmatpush2.bf16.msra.mxu0 %v856
    %1791 = vmatprep.subr.bf16.mxu0 %v853
    %1792 = vmatpush2.bf16.msra.mxu0 %v852
    %1793 = vmatprep.subr.bf16.mxu0 %v849
    %1794 = vmatpush2.bf16.msra.mxu0 %v848
    %1795 = vmatprep.subr.bf16.mxu0 %v845
    %1796 = vmatpush2.bf16.msra.mxu0 %v844
    %1797 = vmatprep.mubr.bf16.mxu0 %v1721
    %1798 = vmatmul.mubr.bf16.gmra.mxu0 %v1720
    %v1799 = vpop.f32.mrf.mxu0
    %v1800 = vadd.f32 %v609, %v1799
    %v1801 = vpop.f32.mrf.mxu0
    %v1802 = vadd.f32 %v613, %v1801
    %v1803 = vpop.f32.mrf.mxu0
    %v1804 = vpop.f32.mrf.mxu0
    %1805 = vdwg.mxu0
    %v1806 = vxor.u32 %v1759, 2147483648
    %v1807 = vxor.u32 %v1761, 2147483648
    %v1808 = vxor.u32 %v1800, 2147483648
    %v1809 = vmul.f32 %v1806, 1.442695
    %v1810 = vpow.pop %v1809
    %v1811 = vmul.f32 %v1807, 1.442695
    %v1812 = vpow.pop %v1811
    %v1813 = vmul.f32 %v1808, 1.442695
    %v1814 = vpow.pop %v1813
    %v1815 = vadd.f32 %v1810, 1.0
    %v1816 = vadd.f32 %v1812, 1.0
    %v1817 = vadd.f32 %v1814, 1.0
    %v1818 = vrcp.pop %v1815
    %v1819 = vmul.f32 1.0, %v1818
    %v1820 = vrcp.pop %v1816
    %v1821 = vmul.f32 1.0, %v1820
    %v1822 = vrcp.pop %v1817
    %v1823 = vmul.f32 1.0, %v1822
    %v1824 = vtanh.pop %v1802
    %v1825 = vmul.f32 %v1821, %v1564
    %v1826 = vmul.f32 %v1819, %v1824
    %v1827 = vadd.f32 %v1825, %v1826
    %v1828 = vtanh.pop %v1827
    %v1829 = vmul.f32 %v1823, %v1828
    %v1830 = vpack.c.bf16 %v1695, %v1695
    %v1832 = vrot.slane %v1830, 3
    %1834 = vmatprep.subr.bf16.mxu0 %v369
    %1835 = vmatpush1.bf16.msra.mxu0 %v368
    %1836 = vmatprep.subr.bf16.mxu0 %v365
    %1837 = vmatpush1.bf16.msra.mxu0 %v364
    %1838 = vmatprep.subr.bf16.mxu0 %v361
    %1839 = vmatpush1.bf16.msra.mxu0 %v360
    %1840 = vmatprep.subr.bf16.mxu0 %v357
    %1841 = vmatpush1.bf16.msra.mxu0 %v356
    %1842 = vmatprep.subr.bf16.mxu0 %v353
    %1843 = vmatpush1.bf16.msra.mxu0 %v352
    %1844 = vmatprep.subr.bf16.mxu0 %v349
    %1845 = vmatpush1.bf16.msra.mxu0 %v348
    %1846 = vmatprep.subr.bf16.mxu0 %v345
    %1847 = vmatpush1.bf16.msra.mxu0 %v344
    %1848 = vmatprep.subr.bf16.mxu0 %v341
    %1849 = vmatpush1.bf16.msra.mxu0 %v340
    %1850 = vmatprep.subr.bf16.mxu0 0
    %1851 = vmatpush2.bf16.msra.mxu0 0
    %1852 = vmatprep.subr.bf16.mxu0 0
    %1853 = vmatpush2.bf16.msra.mxu0 0
    %1854 = vmatprep.subr.bf16.mxu0 0
    %1855 = vmatpush2.bf16.msra.mxu0 0
    %1856 = vmatprep.subr.bf16.mxu0 0
    %1857 = vmatpush2.bf16.msra.mxu0 0
    %1858 = vmatprep.subr.bf16.mxu0 0
    %1859 = vmatpush2.bf16.msra.mxu0 0
    %1860 = vmatprep.subr.bf16.mxu0 0
    %1861 = vmatpush2.bf16.msra.mxu0 0
    %1862 = vmatprep.subr.bf16.mxu0 0
    %1863 = vmatpush2.bf16.msra.mxu0 0
    %1864 = vmatprep.subr.bf16.mxu0 0
    %1865 = vmatpush2.bf16.msra.mxu0 0
    %1866 = vmatprep.mubr.bf16.mxu0 0
    %1867 = vmatmul.mubr.bf16.gmra.mxu0 %v1832
    %v1868 = vpop.f32.mrf.mxu0
    %v1869 = vadd.f32 0.0, %v1868
    %v1870 = vpop.f32.mrf.mxu0
    %v1871 = vadd.f32 0.0, %v1870
    %v1872 = vpop.f32.mrf.mxu0
    %v1873 = vpop.f32.mrf.mxu0
    %1874 = vdwg.mxu0
    %1875 = vmatprep.subr.bf16.mxu0 %v371
    %1876 = vmatpush1.bf16.msra.mxu0 %v370
    %1877 = vmatprep.subr.bf16.mxu0 %v367
    %1878 = vmatpush1.bf16.msra.mxu0 %v366
    %1879 = vmatprep.subr.bf16.mxu0 %v363
    %1880 = vmatpush1.bf16.msra.mxu0 %v362
    %1881 = vmatprep.subr.bf16.mxu0 %v359
    %1882 = vmatpush1.bf16.msra.mxu0 %v358
    %1883 = vmatprep.subr.bf16.mxu0 %v355
    %1884 = vmatpush1.bf16.msra.mxu0 %v354
    %1885 = vmatprep.subr.bf16.mxu0 %v351
    %1886 = vmatpush1.bf16.msra.mxu0 %v350
    %1887 = vmatprep.subr.bf16.mxu0 %v347
    %1888 = vmatpush1.bf16.msra.mxu0 %v346
    %1889 = vmatprep.subr.bf16.mxu0 %v343
    %1890 = vmatpush1.bf16.msra.mxu0 %v342
    %1891 = vmatprep.subr.bf16.mxu0 0
    %1892 = vmatpush2.bf16.msra.mxu0 0
    %1893 = vmatprep.subr.bf16.mxu0 0
    %1894 = vmatpush2.bf16.msra.mxu0 0
    %1895 = vmatprep.subr.bf16.mxu0 0
    %1896 = vmatpush2.bf16.msra.mxu0 0
    %1897 = vmatprep.subr.bf16.mxu0 0
    %1898 = vmatpush2.bf16.msra.mxu0 0
    %1899 = vmatprep.subr.bf16.mxu0 0
    %1900 = vmatpush2.bf16.msra.mxu0 0
    %1901 = vmatprep.subr.bf16.mxu0 0
    %1902 = vmatpush2.bf16.msra.mxu0 0
    %1903 = vmatprep.subr.bf16.mxu0 0
    %1904 = vmatpush2.bf16.msra.mxu0 0
    %1905 = vmatprep.subr.bf16.mxu0 0
    %1906 = vmatpush2.bf16.msra.mxu0 0
    %1907 = vmatprep.mubr.bf16.mxu0 0
    %1908 = vmatmul.mubr.bf16.gmra.mxu0 %v1832
    %v1909 = vpop.f32.mrf.mxu0
    %v1910 = vadd.f32 0.0, %v1909
    %v1911 = vpop.f32.mrf.mxu0
    %v1912 = vadd.f32 0.0, %v1911
    %v1913 = vpop.f32.mrf.mxu0
    %v1914 = vpop.f32.mrf.mxu0
    %1915 = vdwg.mxu0
    %v1916 = vadd.f32 %v165, %v1869
    %v1917 = vadd.f32 %v167, %v1871
    %v1918 = vadd.f32 %v208, %v1910
    %v1919 = vadd.f32 %v210, %v1912
    %v1920 = vxor.u32 %v1916, 2147483648
    %v1921 = vxor.u32 %v1917, 2147483648
    %v1922 = vxor.u32 %v1918, 2147483648
    %v1923 = vmul.f32 %v1920, 1.442695
    %v1924 = vpow.pop %v1923
    %v1925 = vmul.f32 %v1921, 1.442695
    %v1926 = vpow.pop %v1925
    %v1927 = vmul.f32 %v1922, 1.442695
    %v1928 = vpow.pop %v1927
    %v1929 = vadd.f32 %v1924, 1.0
    %v1930 = vadd.f32 %v1926, 1.0
    %v1931 = vadd.f32 %v1928, 1.0
    %v1932 = vrcp.pop %v1929
    %v1933 = vmul.f32 1.0, %v1932
    %v1934 = vrcp.pop %v1930
    %v1935 = vmul.f32 1.0, %v1934
    %v1936 = vrcp.pop %v1931
    %v1937 = vmul.f32 1.0, %v1936
    %v1938 = vtanh.pop %v1919
    %v1940 = vrot.slane %v1693, 6
    %v1942 = vmul.f32 %v1935, %v1940
    %v1943 = vmul.f32 %v1933, %v1938
    %v1944 = vadd.f32 %v1942, %v1943
    %v1945 = vtanh.pop %v1944
    %v1946 = vmul.f32 %v1937, %v1945
    %v1947 = vsel %vm113, %v1946, 0.0
    %1948 = vadd.xlane.f32.xlu0 %v1947
    %v1949 = vpop.xlane.xlu0 %1948
    %v1950 = vmul.f32 %v1949, 0.03125
    %v1951 = vsub.f32 %v1946, %v1950
    %v1952 = vmul.f32 %v1951, %v1951
    %v1953 = vsel %vm113, %v1952, 0.0
    %1954 = vadd.xlane.f32.xlu0 %v1953
    %v1955 = vpop.xlane.xlu0 %1954
    %v1956 = vmul.f32 %v1950, %v1950
    %v1957 = vmul.f32 %v1956, 96.0
    %v1958 = vsub.f32 %v1955, %v1957
    %v1959 = vmul.f32 %v1958, 0.03125
    %v1960 = vadd.f32 %v1959, 1e-05
    %v1961 = vrsqrt.pop %v1960
    %v1962 = vmul.f32 %v1951, %v1961
    %v1963 = vmul.f32 %v1962, %v55
    %v1964 = vadd.f32 %v1963, %v56
    %v1965 = vpack.c.bf16 %v1964, %v1964
    %v1966 = vpack.c.bf16 %v1829, %v1829
    %1967 = vmatprep.subr.bf16.mxu0 %v839
    %1968 = vmatpush1.bf16.msra.mxu0 %v838
    %1969 = vmatprep.subr.bf16.mxu0 %v835
    %1970 = vmatpush1.bf16.msra.mxu0 %v834
    %1971 = vmatprep.subr.bf16.mxu0 %v831
    %1972 = vmatpush1.bf16.msra.mxu0 %v830
    %1973 = vmatprep.subr.bf16.mxu0 %v827
    %1974 = vmatpush1.bf16.msra.mxu0 %v826
    %1975 = vmatprep.subr.bf16.mxu0 %v823
    %1976 = vmatpush1.bf16.msra.mxu0 %v822
    %1977 = vmatprep.subr.bf16.mxu0 %v819
    %1978 = vmatpush1.bf16.msra.mxu0 %v818
    %1979 = vmatprep.subr.bf16.mxu0 %v815
    %1980 = vmatpush1.bf16.msra.mxu0 %v814
    %1981 = vmatprep.subr.bf16.mxu0 %v811
    %1982 = vmatpush1.bf16.msra.mxu0 %v810
    %1983 = vmatprep.subr.bf16.mxu0 %v871
    %1984 = vmatpush2.bf16.msra.mxu0 %v870
    %1985 = vmatprep.subr.bf16.mxu0 %v867
    %1986 = vmatpush2.bf16.msra.mxu0 %v866
    %1987 = vmatprep.subr.bf16.mxu0 %v863
    %1988 = vmatpush2.bf16.msra.mxu0 %v862
    %1989 = vmatprep.subr.bf16.mxu0 %v859
    %1990 = vmatpush2.bf16.msra.mxu0 %v858
    %1991 = vmatprep.subr.bf16.mxu0 %v855
    %1992 = vmatpush2.bf16.msra.mxu0 %v854
    %1993 = vmatprep.subr.bf16.mxu0 %v851
    %1994 = vmatpush2.bf16.msra.mxu0 %v850
    %1995 = vmatprep.subr.bf16.mxu0 %v847
    %1996 = vmatpush2.bf16.msra.mxu0 %v846
    %1997 = vmatprep.subr.bf16.mxu0 %v843
    %1998 = vmatpush2.bf16.msra.mxu0 %v842
    %1999 = vmatprep.mubr.bf16.mxu0 %v1966
    %2000 = vmatmul.mubr.bf16.gmra.mxu0 %v1965
    %v2001 = vpop.f32.mrf.mxu0
    %v2002 = vadd.f32 %v601, %v2001
    %v2003 = vpop.f32.mrf.mxu0
    %v2004 = vadd.f32 %v605, %v2003
    %v2005 = vpop.f32.mrf.mxu0
    %v2006 = vpop.f32.mrf.mxu0
    %2007 = vdwg.mxu0
    %2008 = vmatprep.subr.bf16.mxu0 %v841
    %2009 = vmatpush1.bf16.msra.mxu0 %v840
    %2010 = vmatprep.subr.bf16.mxu0 %v837
    %2011 = vmatpush1.bf16.msra.mxu0 %v836
    %2012 = vmatprep.subr.bf16.mxu0 %v833
    %2013 = vmatpush1.bf16.msra.mxu0 %v832
    %2014 = vmatprep.subr.bf16.mxu0 %v829
    %2015 = vmatpush1.bf16.msra.mxu0 %v828
    %2016 = vmatprep.subr.bf16.mxu0 %v825
    %2017 = vmatpush1.bf16.msra.mxu0 %v824
    %2018 = vmatprep.subr.bf16.mxu0 %v821
    %2019 = vmatpush1.bf16.msra.mxu0 %v820
    %2020 = vmatprep.subr.bf16.mxu0 %v817
    %2021 = vmatpush1.bf16.msra.mxu0 %v816
    %2022 = vmatprep.subr.bf16.mxu0 %v813
    %2023 = vmatpush1.bf16.msra.mxu0 %v812
    %2024 = vmatprep.subr.bf16.mxu0 %v873
    %2025 = vmatpush2.bf16.msra.mxu0 %v872
    %2026 = vmatprep.subr.bf16.mxu0 %v869
    %2027 = vmatpush2.bf16.msra.mxu0 %v868
    %2028 = vmatprep.subr.bf16.mxu0 %v865
    %2029 = vmatpush2.bf16.msra.mxu0 %v864
    %2030 = vmatprep.subr.bf16.mxu0 %v861
    %2031 = vmatpush2.bf16.msra.mxu0 %v860
    %2032 = vmatprep.subr.bf16.mxu0 %v857
    %2033 = vmatpush2.bf16.msra.mxu0 %v856
    %2034 = vmatprep.subr.bf16.mxu0 %v853
    %2035 = vmatpush2.bf16.msra.mxu0 %v852
    %2036 = vmatprep.subr.bf16.mxu0 %v849
    %2037 = vmatpush2.bf16.msra.mxu0 %v848
    %2038 = vmatprep.subr.bf16.mxu0 %v845
    %2039 = vmatpush2.bf16.msra.mxu0 %v844
    %2040 = vmatprep.mubr.bf16.mxu0 %v1966
    %2041 = vmatmul.mubr.bf16.gmra.mxu0 %v1965
    %v2042 = vpop.f32.mrf.mxu0
    %v2043 = vadd.f32 %v609, %v2042
    %v2044 = vpop.f32.mrf.mxu0
    %v2045 = vadd.f32 %v613, %v2044
    %v2046 = vpop.f32.mrf.mxu0
    %v2047 = vpop.f32.mrf.mxu0
    %2048 = vdwg.mxu0
    %v2049 = vxor.u32 %v2002, 2147483648
    %v2050 = vxor.u32 %v2004, 2147483648
    %v2051 = vxor.u32 %v2043, 2147483648
    %v2052 = vmul.f32 %v2049, 1.442695
    %v2053 = vpow.pop %v2052
    %v2054 = vmul.f32 %v2050, 1.442695
    %v2055 = vpow.pop %v2054
    %v2056 = vmul.f32 %v2051, 1.442695
    %v2057 = vpow.pop %v2056
    %v2058 = vadd.f32 %v2053, 1.0
    %v2059 = vadd.f32 %v2055, 1.0
    %v2060 = vadd.f32 %v2057, 1.0
    %v2061 = vrcp.pop %v2058
    %v2062 = vmul.f32 1.0, %v2061
    %v2063 = vrcp.pop %v2059
    %v2064 = vmul.f32 1.0, %v2063
    %v2065 = vrcp.pop %v2060
    %v2066 = vmul.f32 1.0, %v2065
    %v2067 = vtanh.pop %v2045
    %v2068 = vmul.f32 %v2064, %v1827
    %v2069 = vmul.f32 %v2062, %v2067
    %v2070 = vadd.f32 %v2068, %v2069
    %v2071 = vtanh.pop %v2070
    %v2072 = vmul.f32 %v2066, %v2071
    %v2073 = vpack.c.bf16 %v1946, %v1946
    %2074 = vmatprep.subr.bf16.mxu0 %v369
    %2075 = vmatpush1.bf16.msra.mxu0 %v368
    %2076 = vmatprep.subr.bf16.mxu0 %v365
    %2077 = vmatpush1.bf16.msra.mxu0 %v364
    %2078 = vmatprep.subr.bf16.mxu0 %v361
    %2079 = vmatpush1.bf16.msra.mxu0 %v360
    %2080 = vmatprep.subr.bf16.mxu0 %v357
    %2081 = vmatpush1.bf16.msra.mxu0 %v356
    %2082 = vmatprep.subr.bf16.mxu0 %v353
    %2083 = vmatpush1.bf16.msra.mxu0 %v352
    %2084 = vmatprep.subr.bf16.mxu0 %v349
    %2085 = vmatpush1.bf16.msra.mxu0 %v348
    %2086 = vmatprep.subr.bf16.mxu0 %v345
    %2087 = vmatpush1.bf16.msra.mxu0 %v344
    %2088 = vmatprep.subr.bf16.mxu0 %v341
    %2089 = vmatpush1.bf16.msra.mxu0 %v340
    %2090 = vmatprep.subr.bf16.mxu0 0
    %2091 = vmatpush2.bf16.msra.mxu0 0
    %2092 = vmatprep.subr.bf16.mxu0 0
    %2093 = vmatpush2.bf16.msra.mxu0 0
    %2094 = vmatprep.subr.bf16.mxu0 0
    %2095 = vmatpush2.bf16.msra.mxu0 0
    %2096 = vmatprep.subr.bf16.mxu0 0
    %2097 = vmatpush2.bf16.msra.mxu0 0
    %2098 = vmatprep.subr.bf16.mxu0 0
    %2099 = vmatpush2.bf16.msra.mxu0 0
    %2100 = vmatprep.subr.bf16.mxu0 0
    %2101 = vmatpush2.bf16.msra.mxu0 0
    %2102 = vmatprep.subr.bf16.mxu0 0
    %2103 = vmatpush2.bf16.msra.mxu0 0
    %2104 = vmatprep.subr.bf16.mxu0 0
    %2105 = vmatpush2.bf16.msra.mxu0 0
    %2106 = vmatprep.mubr.bf16.mxu0 0
    %2107 = vmatmul.mubr.bf16.gmra.mxu0 %v2073
    %v2108 = vpop.f32.mrf.mxu0
    %v2109 = vadd.f32 0.0, %v2108
    %v2110 = vpop.f32.mrf.mxu0
    %v2111 = vadd.f32 0.0, %v2110
    %v2112 = vpop.f32.mrf.mxu0
    %v2113 = vpop.f32.mrf.mxu0
    %2114 = vdwg.mxu0
    %2115 = vmatprep.subr.bf16.mxu0 %v371
    %2116 = vmatpush1.bf16.msra.mxu0 %v370
    %2117 = vmatprep.subr.bf16.mxu0 %v367
    %2118 = vmatpush1.bf16.msra.mxu0 %v366
    %2119 = vmatprep.subr.bf16.mxu0 %v363
    %2120 = vmatpush1.bf16.msra.mxu0 %v362
    %2121 = vmatprep.subr.bf16.mxu0 %v359
    %2122 = vmatpush1.bf16.msra.mxu0 %v358
    %2123 = vmatprep.subr.bf16.mxu0 %v355
    %2124 = vmatpush1.bf16.msra.mxu0 %v354
    %2125 = vmatprep.subr.bf16.mxu0 %v351
    %2126 = vmatpush1.bf16.msra.mxu0 %v350
    %2127 = vmatprep.subr.bf16.mxu0 %v347
    %2128 = vmatpush1.bf16.msra.mxu0 %v346
    %2129 = vmatprep.subr.bf16.mxu0 %v343
    %2130 = vmatpush1.bf16.msra.mxu0 %v342
    %2131 = vmatprep.subr.bf16.mxu0 0
    %2132 = vmatpush2.bf16.msra.mxu0 0
    %2133 = vmatprep.subr.bf16.mxu0 0
    %2134 = vmatpush2.bf16.msra.mxu0 0
    %2135 = vmatprep.subr.bf16.mxu0 0
    %2136 = vmatpush2.bf16.msra.mxu0 0
    %2137 = vmatprep.subr.bf16.mxu0 0
    %2138 = vmatpush2.bf16.msra.mxu0 0
    %2139 = vmatprep.subr.bf16.mxu0 0
    %2140 = vmatpush2.bf16.msra.mxu0 0
    %2141 = vmatprep.subr.bf16.mxu0 0
    %2142 = vmatpush2.bf16.msra.mxu0 0
    %2143 = vmatprep.subr.bf16.mxu0 0
    %2144 = vmatpush2.bf16.msra.mxu0 0
    %2145 = vmatprep.subr.bf16.mxu0 0
    %2146 = vmatpush2.bf16.msra.mxu0 0
    %2147 = vmatprep.mubr.bf16.mxu0 0
    %2148 = vmatmul.mubr.bf16.gmra.mxu0 %v2073
    %v2149 = vpop.f32.mrf.mxu0
    %v2150 = vadd.f32 0.0, %v2149
    %v2151 = vpop.f32.mrf.mxu0
    %v2152 = vadd.f32 0.0, %v2151
    %v2153 = vpop.f32.mrf.mxu0
    %v2154 = vpop.f32.mrf.mxu0
    %2155 = vdwg.mxu0
    %v2160 = vrot.slane %v2109, 6
    %v2161 = vrot.slane %v2111, 6
    %v2162 = vrot.slane %v2150, 6
    %v2163 = vrot.slane %v2152, 6
    %v2168 = vadd.f32 %v165, %v2160
    %v2169 = vadd.f32 %v167, %v2161
    %v2170 = vadd.f32 %v208, %v2162
    %v2171 = vadd.f32 %v210, %v2163
    %v2172 = vxor.u32 %v2168, 2147483648
    %v2173 = vxor.u32 %v2169, 2147483648
    %v2174 = vxor.u32 %v2170, 2147483648
    %v2175 = vmul.f32 %v2172, 1.442695
    %v2176 = vpow.pop %v2175
    %v2177 = vmul.f32 %v2173, 1.442695
    %v2178 = vpow.pop %v2177
    %v2179 = vmul.f32 %v2174, 1.442695
    %v2180 = vpow.pop %v2179
    %v2181 = vadd.f32 %v2176, 1.0
    %v2182 = vadd.f32 %v2178, 1.0
    %v2183 = vadd.f32 %v2180, 1.0
    %v2184 = vrcp.pop %v2181
    %v2185 = vmul.f32 1.0, %v2184
    %v2186 = vrcp.pop %v2182
    %v2187 = vmul.f32 1.0, %v2186
    %v2188 = vrcp.pop %v2183
    %v2189 = vmul.f32 1.0, %v2188
    %v2190 = vtanh.pop %v2171
    %v2192 = vrot.slane %v1944, 6
    %v2194 = vmul.f32 %v2187, %v2192
    %v2195 = vmul.f32 %v2185, %v2190
    %v2196 = vadd.f32 %v2194, %v2195
    %v2197 = vtanh.pop %v2196
    %v2198 = vmul.f32 %v2189, %v2197
    %v2199 = vsel %vm1170, %v2198, 0.0
    %2200 = vadd.xlane.f32.xlu0 %v2199
    %v2201 = vpop.xlane.xlu0 %2200
    %v2202 = vmul.f32 %v2201, 0.03125
    %v2203 = vsub.f32 %v2198, %v2202
    %v2204 = vmul.f32 %v2203, %v2203
    %v2205 = vsel %vm1170, %v2204, 0.0
    %2206 = vadd.xlane.f32.xlu0 %v2205
    %v2207 = vpop.xlane.xlu0 %2206
    %v2208 = vmul.f32 %v2202, %v2202
    %v2209 = vmul.f32 %v2208, 96.0
    %v2210 = vsub.f32 %v2207, %v2209
    %v2211 = vmul.f32 %v2210, 0.03125
    %v2212 = vadd.f32 %v2211, 1e-05
    %v2213 = vrsqrt.pop %v2212
    %v2214 = vmul.f32 %v2203, %v2213
    %v2215 = vmul.f32 %v2214, %v55
    %v2216 = vadd.f32 %v2215, %v56
    %v2217 = vpack.c.bf16 %v2216, %v2216
    %v2218 = vpack.c.bf16 %v2072, %v2072
    %v2220 = vrot.slane %v2218, 7
    %v2222 = vrot.slane %v2217, 1
    %v2223 = vrot.slane %v2220, 1
    %2226 = vmatprep.subr.bf16.mxu0 %v839
    %2227 = vmatpush1.bf16.msra.mxu0 %v838
    %2228 = vmatprep.subr.bf16.mxu0 %v835
    %2229 = vmatpush1.bf16.msra.mxu0 %v834
    %2230 = vmatprep.subr.bf16.mxu0 %v831
    %2231 = vmatpush1.bf16.msra.mxu0 %v830
    %2232 = vmatprep.subr.bf16.mxu0 %v827
    %2233 = vmatpush1.bf16.msra.mxu0 %v826
    %2234 = vmatprep.subr.bf16.mxu0 %v823
    %2235 = vmatpush1.bf16.msra.mxu0 %v822
    %2236 = vmatprep.subr.bf16.mxu0 %v819
    %2237 = vmatpush1.bf16.msra.mxu0 %v818
    %2238 = vmatprep.subr.bf16.mxu0 %v815
    %2239 = vmatpush1.bf16.msra.mxu0 %v814
    %2240 = vmatprep.subr.bf16.mxu0 %v811
    %2241 = vmatpush1.bf16.msra.mxu0 %v810
    %2242 = vmatprep.subr.bf16.mxu0 %v871
    %2243 = vmatpush2.bf16.msra.mxu0 %v870
    %2244 = vmatprep.subr.bf16.mxu0 %v867
    %2245 = vmatpush2.bf16.msra.mxu0 %v866
    %2246 = vmatprep.subr.bf16.mxu0 %v863
    %2247 = vmatpush2.bf16.msra.mxu0 %v862
    %2248 = vmatprep.subr.bf16.mxu0 %v859
    %2249 = vmatpush2.bf16.msra.mxu0 %v858
    %2250 = vmatprep.subr.bf16.mxu0 %v855
    %2251 = vmatpush2.bf16.msra.mxu0 %v854
    %2252 = vmatprep.subr.bf16.mxu0 %v851
    %2253 = vmatpush2.bf16.msra.mxu0 %v850
    %2254 = vmatprep.subr.bf16.mxu0 %v847
    %2255 = vmatpush2.bf16.msra.mxu0 %v846
    %2256 = vmatprep.subr.bf16.mxu0 %v843
    %2257 = vmatpush2.bf16.msra.mxu0 %v842
    %2258 = vmatprep.mubr.bf16.mxu0 %v2223
    %2259 = vmatmul.mubr.bf16.gmra.mxu0 %v2222
    %v2260 = vpop.f32.mrf.mxu0
    %v2261 = vadd.f32 %v601, %v2260
    %v2262 = vpop.f32.mrf.mxu0
    %v2263 = vadd.f32 %v605, %v2262
    %v2264 = vpop.f32.mrf.mxu0
    %v2265 = vpop.f32.mrf.mxu0
    %2266 = vdwg.mxu0
    %2267 = vmatprep.subr.bf16.mxu0 %v841
    %2268 = vmatpush1.bf16.msra.mxu0 %v840
    %2269 = vmatprep.subr.bf16.mxu0 %v837
    %2270 = vmatpush1.bf16.msra.mxu0 %v836
    %2271 = vmatprep.subr.bf16.mxu0 %v833
    %2272 = vmatpush1.bf16.msra.mxu0 %v832
    %2273 = vmatprep.subr.bf16.mxu0 %v829
    %2274 = vmatpush1.bf16.msra.mxu0 %v828
    %2275 = vmatprep.subr.bf16.mxu0 %v825
    %2276 = vmatpush1.bf16.msra.mxu0 %v824
    %2277 = vmatprep.subr.bf16.mxu0 %v821
    %2278 = vmatpush1.bf16.msra.mxu0 %v820
    %2279 = vmatprep.subr.bf16.mxu0 %v817
    %2280 = vmatpush1.bf16.msra.mxu0 %v816
    %2281 = vmatprep.subr.bf16.mxu0 %v813
    %2282 = vmatpush1.bf16.msra.mxu0 %v812
    %2283 = vmatprep.subr.bf16.mxu0 %v873
    %2284 = vmatpush2.bf16.msra.mxu0 %v872
    %2285 = vmatprep.subr.bf16.mxu0 %v869
    %2286 = vmatpush2.bf16.msra.mxu0 %v868
    %2287 = vmatprep.subr.bf16.mxu0 %v865
    %2288 = vmatpush2.bf16.msra.mxu0 %v864
    %2289 = vmatprep.subr.bf16.mxu0 %v861
    %2290 = vmatpush2.bf16.msra.mxu0 %v860
    %2291 = vmatprep.subr.bf16.mxu0 %v857
    %2292 = vmatpush2.bf16.msra.mxu0 %v856
    %2293 = vmatprep.subr.bf16.mxu0 %v853
    %2294 = vmatpush2.bf16.msra.mxu0 %v852
    %2295 = vmatprep.subr.bf16.mxu0 %v849
    %2296 = vmatpush2.bf16.msra.mxu0 %v848
    %2297 = vmatprep.subr.bf16.mxu0 %v845
    %2298 = vmatpush2.bf16.msra.mxu0 %v844
    %2299 = vmatprep.mubr.bf16.mxu0 %v2223
    %2300 = vmatmul.mubr.bf16.gmra.mxu0 %v2222
    %v2301 = vpop.f32.mrf.mxu0
    %v2302 = vadd.f32 %v609, %v2301
    %v2303 = vpop.f32.mrf.mxu0
    %v2304 = vadd.f32 %v613, %v2303
    %v2305 = vpop.f32.mrf.mxu0
    %v2306 = vpop.f32.mrf.mxu0
    %2307 = vdwg.mxu0
    %v2308 = vxor.u32 %v2261, 2147483648
    %v2309 = vxor.u32 %v2263, 2147483648
    %v2310 = vxor.u32 %v2302, 2147483648
    %v2311 = vmul.f32 %v2308, 1.442695
    %v2312 = vpow.pop %v2311
    %v2313 = vmul.f32 %v2309, 1.442695
    %v2314 = vpow.pop %v2313
    %v2315 = vmul.f32 %v2310, 1.442695
    %v2316 = vpow.pop %v2315
    %v2317 = vadd.f32 %v2312, 1.0
    %v2318 = vadd.f32 %v2314, 1.0
    %v2319 = vadd.f32 %v2316, 1.0
    %v2320 = vrcp.pop %v2317
    %v2321 = vmul.f32 1.0, %v2320
    %v2322 = vrcp.pop %v2318
    %v2323 = vmul.f32 1.0, %v2322
    %v2324 = vrcp.pop %v2319
    %v2325 = vmul.f32 1.0, %v2324
    %v2326 = vtanh.pop %v2304
    %v2327 = vmul.f32 %v2323, %v2070
    %v2328 = vmul.f32 %v2321, %v2326
    %v2329 = vadd.f32 %v2327, %v2328
    %v2330 = vtanh.pop %v2329
    %v2331 = vmul.f32 %v2325, %v2330
    %v2332 = vpack.c.bf16 %v2198, %v2198
    %v2334 = vrot.slane %v2332, 1
    %2336 = vmatprep.subr.bf16.mxu0 %v369
    %2337 = vmatpush1.bf16.msra.mxu0 %v368
    %2338 = vmatprep.subr.bf16.mxu0 %v365
    %2339 = vmatpush1.bf16.msra.mxu0 %v364
    %2340 = vmatprep.subr.bf16.mxu0 %v361
    %2341 = vmatpush1.bf16.msra.mxu0 %v360
    %2342 = vmatprep.subr.bf16.mxu0 %v357
    %2343 = vmatpush1.bf16.msra.mxu0 %v356
    %2344 = vmatprep.subr.bf16.mxu0 %v353
    %2345 = vmatpush1.bf16.msra.mxu0 %v352
    %2346 = vmatprep.subr.bf16.mxu0 %v349
    %2347 = vmatpush1.bf16.msra.mxu0 %v348
    %2348 = vmatprep.subr.bf16.mxu0 %v345
    %2349 = vmatpush1.bf16.msra.mxu0 %v344
    %2350 = vmatprep.subr.bf16.mxu0 %v341
    %2351 = vmatpush1.bf16.msra.mxu0 %v340
    %2352 = vmatprep.subr.bf16.mxu0 0
    %2353 = vmatpush2.bf16.msra.mxu0 0
    %2354 = vmatprep.subr.bf16.mxu0 0
    %2355 = vmatpush2.bf16.msra.mxu0 0
    %2356 = vmatprep.subr.bf16.mxu0 0
    %2357 = vmatpush2.bf16.msra.mxu0 0
    %2358 = vmatprep.subr.bf16.mxu0 0
    %2359 = vmatpush2.bf16.msra.mxu0 0
    %2360 = vmatprep.subr.bf16.mxu0 0
    %2361 = vmatpush2.bf16.msra.mxu0 0
    %2362 = vmatprep.subr.bf16.mxu0 0
    %2363 = vmatpush2.bf16.msra.mxu0 0
    %2364 = vmatprep.subr.bf16.mxu0 0
    %2365 = vmatpush2.bf16.msra.mxu0 0
    %2366 = vmatprep.subr.bf16.mxu0 0
    %2367 = vmatpush2.bf16.msra.mxu0 0
    %2368 = vmatprep.mubr.bf16.mxu0 0
    %2369 = vmatmul.mubr.bf16.gmra.mxu0 %v2334
    %v2370 = vpop.f32.mrf.mxu0
    %v2371 = vadd.f32 0.0, %v2370
    %v2372 = vpop.f32.mrf.mxu0
    %v2373 = vadd.f32 0.0, %v2372
    %v2374 = vpop.f32.mrf.mxu0
    %v2375 = vpop.f32.mrf.mxu0
    %2376 = vdwg.mxu0
    %2377 = vmatprep.subr.bf16.mxu0 %v371
    %2378 = vmatpush1.bf16.msra.mxu0 %v370
    %2379 = vmatprep.subr.bf16.mxu0 %v367
    %2380 = vmatpush1.bf16.msra.mxu0 %v366
    %2381 = vmatprep.subr.bf16.mxu0 %v363
    %2382 = vmatpush1.bf16.msra.mxu0 %v362
    %2383 = vmatprep.subr.bf16.mxu0 %v359
    %2384 = vmatpush1.bf16.msra.mxu0 %v358
    %2385 = vmatprep.subr.bf16.mxu0 %v355
    %2386 = vmatpush1.bf16.msra.mxu0 %v354
    %2387 = vmatprep.subr.bf16.mxu0 %v351
    %2388 = vmatpush1.bf16.msra.mxu0 %v350
    %2389 = vmatprep.subr.bf16.mxu0 %v347
    %2390 = vmatpush1.bf16.msra.mxu0 %v346
    %2391 = vmatprep.subr.bf16.mxu0 %v343
    %2392 = vmatpush1.bf16.msra.mxu0 %v342
    %2393 = vmatprep.subr.bf16.mxu0 0
    %2394 = vmatpush2.bf16.msra.mxu0 0
    %2395 = vmatprep.subr.bf16.mxu0 0
    %2396 = vmatpush2.bf16.msra.mxu0 0
    %2397 = vmatprep.subr.bf16.mxu0 0
    %2398 = vmatpush2.bf16.msra.mxu0 0
    %2399 = vmatprep.subr.bf16.mxu0 0
    %2400 = vmatpush2.bf16.msra.mxu0 0
    %2401 = vmatprep.subr.bf16.mxu0 0
    %2402 = vmatpush2.bf16.msra.mxu0 0
    %2403 = vmatprep.subr.bf16.mxu0 0
    %2404 = vmatpush2.bf16.msra.mxu0 0
    %2405 = vmatprep.subr.bf16.mxu0 0
    %2406 = vmatpush2.bf16.msra.mxu0 0
    %2407 = vmatprep.subr.bf16.mxu0 0
    %2408 = vmatpush2.bf16.msra.mxu0 0
    %2409 = vmatprep.mubr.bf16.mxu0 0
    %2410 = vmatmul.mubr.bf16.gmra.mxu0 %v2334
    %v2411 = vpop.f32.mrf.mxu0
    %v2412 = vadd.f32 0.0, %v2411
    %v2413 = vpop.f32.mrf.mxu0
    %v2414 = vadd.f32 0.0, %v2413
    %v2415 = vpop.f32.mrf.mxu0
    %v2416 = vpop.f32.mrf.mxu0
    %2417 = vdwg.mxu0
    %v2422 = vrot.slane %v2371, 4
    %v2423 = vrot.slane %v2373, 4
    %v2424 = vrot.slane %v2412, 4
    %v2425 = vrot.slane %v2414, 4
    %v2430 = vadd.f32 %v165, %v2422
    %v2431 = vadd.f32 %v167, %v2423
    %v2432 = vadd.f32 %v208, %v2424
    %v2433 = vadd.f32 %v210, %v2425
    %v2434 = vxor.u32 %v2430, 2147483648
    %v2435 = vxor.u32 %v2431, 2147483648
    %v2436 = vxor.u32 %v2432, 2147483648
    %v2437 = vmul.f32 %v2434, 1.442695
    %v2438 = vpow.pop %v2437
    %v2439 = vmul.f32 %v2435, 1.442695
    %v2440 = vpow.pop %v2439
    %v2441 = vmul.f32 %v2436, 1.442695
    %v2442 = vpow.pop %v2441
    %v2443 = vadd.f32 %v2438, 1.0
    %v2444 = vadd.f32 %v2440, 1.0
    %v2445 = vadd.f32 %v2442, 1.0
    %v2446 = vrcp.pop %v2443
    %v2447 = vmul.f32 1.0, %v2446
    %v2448 = vrcp.pop %v2444
    %v2449 = vmul.f32 1.0, %v2448
    %v2450 = vrcp.pop %v2445
    %v2451 = vmul.f32 1.0, %v2450
    %v2452 = vtanh.pop %v2433
    %v2454 = vrot.slane %v2196, 6
    %v2456 = vmul.f32 %v2449, %v2454
    %v2457 = vmul.f32 %v2447, %v2452
    %v2458 = vadd.f32 %v2456, %v2457
    %v2459 = vtanh.pop %v2458
    %v2460 = vmul.f32 %v2451, %v2459
    %v2461 = vsel %vm1433, %v2460, 0.0
    %2462 = vadd.xlane.f32.xlu0 %v2461
    %v2463 = vpop.xlane.xlu0 %2462
    %v2464 = vmul.f32 %v2463, 0.03125
    %v2465 = vsub.f32 %v2460, %v2464
    %v2466 = vmul.f32 %v2465, %v2465
    %v2467 = vsel %vm1433, %v2466, 0.0
    %2468 = vadd.xlane.f32.xlu0 %v2467
    %v2469 = vpop.xlane.xlu0 %2468
    %v2470 = vmul.f32 %v2464, %v2464
    %v2471 = vmul.f32 %v2470, 96.0
    %v2472 = vsub.f32 %v2469, %v2471
    %v2473 = vmul.f32 %v2472, 0.03125
    %v2474 = vadd.f32 %v2473, 1e-05
    %v2475 = vrsqrt.pop %v2474
    %v2476 = vmul.f32 %v2465, %v2475
    %v2477 = vmul.f32 %v2476, %v55
    %v2478 = vadd.f32 %v2477, %v56
    %v2479 = vpack.c.bf16 %v2478, %v2478
    %v2480 = vpack.c.bf16 %v2331, %v2331
    %v2482 = vrot.slane %v2480, 6
    %v2484 = vrot.slane %v2479, 2
    %v2485 = vrot.slane %v2482, 2
    %2488 = vmatprep.subr.bf16.mxu0 %v839
    %2489 = vmatpush1.bf16.msra.mxu0 %v838
    %2490 = vmatprep.subr.bf16.mxu0 %v835
    %2491 = vmatpush1.bf16.msra.mxu0 %v834
    %2492 = vmatprep.subr.bf16.mxu0 %v831
    %2493 = vmatpush1.bf16.msra.mxu0 %v830
    %2494 = vmatprep.subr.bf16.mxu0 %v827
    %2495 = vmatpush1.bf16.msra.mxu0 %v826
    %2496 = vmatprep.subr.bf16.mxu0 %v823
    %2497 = vmatpush1.bf16.msra.mxu0 %v822
    %2498 = vmatprep.subr.bf16.mxu0 %v819
    %2499 = vmatpush1.bf16.msra.mxu0 %v818
    %2500 = vmatprep.subr.bf16.mxu0 %v815
    %2501 = vmatpush1.bf16.msra.mxu0 %v814
    %2502 = vmatprep.subr.bf16.mxu0 %v811
    %2503 = vmatpush1.bf16.msra.mxu0 %v810
    %2504 = vmatprep.subr.bf16.mxu0 %v871
    %2505 = vmatpush2.bf16.msra.mxu0 %v870
    %2506 = vmatprep.subr.bf16.mxu0 %v867
    %2507 = vmatpush2.bf16.msra.mxu0 %v866
    %2508 = vmatprep.subr.bf16.mxu0 %v863
    %2509 = vmatpush2.bf16.msra.mxu0 %v862
    %2510 = vmatprep.subr.bf16.mxu0 %v859
    %2511 = vmatpush2.bf16.msra.mxu0 %v858
    %2512 = vmatprep.subr.bf16.mxu0 %v855
    %2513 = vmatpush2.bf16.msra.mxu0 %v854
    %2514 = vmatprep.subr.bf16.mxu0 %v851
    %2515 = vmatpush2.bf16.msra.mxu0 %v850
    %2516 = vmatprep.subr.bf16.mxu0 %v847
    %2517 = vmatpush2.bf16.msra.mxu0 %v846
    %2518 = vmatprep.subr.bf16.mxu0 %v843
    %2519 = vmatpush2.bf16.msra.mxu0 %v842
    %2520 = vmatprep.mubr.bf16.mxu0 %v2485
    %2521 = vmatmul.mubr.bf16.gmra.mxu0 %v2484
    %v2522 = vpop.f32.mrf.mxu0
    %v2523 = vadd.f32 %v601, %v2522
    %v2524 = vpop.f32.mrf.mxu0
    %v2525 = vadd.f32 %v605, %v2524
    %v2526 = vpop.f32.mrf.mxu0
    %v2527 = vpop.f32.mrf.mxu0
    %2528 = vdwg.mxu0
    %2529 = vmatprep.subr.bf16.mxu0 %v841
    %2530 = vmatpush1.bf16.msra.mxu0 %v840
    %2531 = vmatprep.subr.bf16.mxu0 %v837
    %2532 = vmatpush1.bf16.msra.mxu0 %v836
    %2533 = vmatprep.subr.bf16.mxu0 %v833
    %2534 = vmatpush1.bf16.msra.mxu0 %v832
    %2535 = vmatprep.subr.bf16.mxu0 %v829
    %2536 = vmatpush1.bf16.msra.mxu0 %v828
    %2537 = vmatprep.subr.bf16.mxu0 %v825
    %2538 = vmatpush1.bf16.msra.mxu0 %v824
    %2539 = vmatprep.subr.bf16.mxu0 %v821
    %2540 = vmatpush1.bf16.msra.mxu0 %v820
    %2541 = vmatprep.subr.bf16.mxu0 %v817
    %2542 = vmatpush1.bf16.msra.mxu0 %v816
    %2543 = vmatprep.subr.bf16.mxu0 %v813
    %2544 = vmatpush1.bf16.msra.mxu0 %v812
    %2545 = vmatprep.subr.bf16.mxu0 %v873
    %2546 = vmatpush2.bf16.msra.mxu0 %v872
    %2547 = vmatprep.subr.bf16.mxu0 %v869
    %2548 = vmatpush2.bf16.msra.mxu0 %v868
    %2549 = vmatprep.subr.bf16.mxu0 %v865
    %2550 = vmatpush2.bf16.msra.mxu0 %v864
    %2551 = vmatprep.subr.bf16.mxu0 %v861
    %2552 = vmatpush2.bf16.msra.mxu0 %v860
    %2553 = vmatprep.subr.bf16.mxu0 %v857
    %2554 = vmatpush2.bf16.msra.mxu0 %v856
    %2555 = vmatprep.subr.bf16.mxu0 %v853
    %2556 = vmatpush2.bf16.msra.mxu0 %v852
    %2557 = vmatprep.subr.bf16.mxu0 %v849
    %2558 = vmatpush2.bf16.msra.mxu0 %v848
    %2559 = vmatprep.subr.bf16.mxu0 %v845
    %2560 = vmatpush2.bf16.msra.mxu0 %v844
    %2561 = vmatprep.mubr.bf16.mxu0 %v2485
    %2562 = vmatmul.mubr.bf16.gmra.mxu0 %v2484
    %v2563 = vpop.f32.mrf.mxu0
    %v2564 = vadd.f32 %v609, %v2563
    %v2565 = vpop.f32.mrf.mxu0
    %v2566 = vadd.f32 %v613, %v2565
    %v2567 = vpop.f32.mrf.mxu0
    %v2568 = vpop.f32.mrf.mxu0
    %2569 = vdwg.mxu0
    %v2570 = vxor.u32 %v2523, 2147483648
    %v2571 = vxor.u32 %v2525, 2147483648
    %v2572 = vxor.u32 %v2564, 2147483648
    %v2573 = vmul.f32 %v2570, 1.442695
    %v2574 = vpow.pop %v2573
    %v2575 = vmul.f32 %v2571, 1.442695
    %v2576 = vpow.pop %v2575
    %v2577 = vmul.f32 %v2572, 1.442695
    %v2578 = vpow.pop %v2577
    %v2579 = vadd.f32 %v2574, 1.0
    %v2580 = vadd.f32 %v2576, 1.0
    %v2581 = vadd.f32 %v2578, 1.0
    %v2582 = vrcp.pop %v2579
    %v2583 = vmul.f32 1.0, %v2582
    %v2584 = vrcp.pop %v2580
    %v2585 = vmul.f32 1.0, %v2584
    %v2586 = vrcp.pop %v2581
    %v2587 = vmul.f32 1.0, %v2586
    %v2588 = vtanh.pop %v2566
    %v2589 = vmul.f32 %v2585, %v2329
    %v2590 = vmul.f32 %v2583, %v2588
    %v2591 = vadd.f32 %v2589, %v2590
    %v2592 = vtanh.pop %v2591
    %v2593 = vmul.f32 %v2587, %v2592
    %v2594 = vpack.c.bf16 %v2460, %v2460
    %v2596 = vrot.slane %v2594, 2
    %2598 = vmatprep.subr.bf16.mxu0 %v369
    %2599 = vmatpush1.bf16.msra.mxu0 %v368
    %2600 = vmatprep.subr.bf16.mxu0 %v365
    %2601 = vmatpush1.bf16.msra.mxu0 %v364
    %2602 = vmatprep.subr.bf16.mxu0 %v361
    %2603 = vmatpush1.bf16.msra.mxu0 %v360
    %2604 = vmatprep.subr.bf16.mxu0 %v357
    %2605 = vmatpush1.bf16.msra.mxu0 %v356
    %2606 = vmatprep.subr.bf16.mxu0 %v353
    %2607 = vmatpush1.bf16.msra.mxu0 %v352
    %2608 = vmatprep.subr.bf16.mxu0 %v349
    %2609 = vmatpush1.bf16.msra.mxu0 %v348
    %2610 = vmatprep.subr.bf16.mxu0 %v345
    %2611 = vmatpush1.bf16.msra.mxu0 %v344
    %2612 = vmatprep.subr.bf16.mxu0 %v341
    %2613 = vmatpush1.bf16.msra.mxu0 %v340
    %2614 = vmatprep.subr.bf16.mxu0 0
    %2615 = vmatpush2.bf16.msra.mxu0 0
    %2616 = vmatprep.subr.bf16.mxu0 0
    %2617 = vmatpush2.bf16.msra.mxu0 0
    %2618 = vmatprep.subr.bf16.mxu0 0
    %2619 = vmatpush2.bf16.msra.mxu0 0
    %2620 = vmatprep.subr.bf16.mxu0 0
    %2621 = vmatpush2.bf16.msra.mxu0 0
    %2622 = vmatprep.subr.bf16.mxu0 0
    %2623 = vmatpush2.bf16.msra.mxu0 0
    %2624 = vmatprep.subr.bf16.mxu0 0
    %2625 = vmatpush2.bf16.msra.mxu0 0
    %2626 = vmatprep.subr.bf16.mxu0 0
    %2627 = vmatpush2.bf16.msra.mxu0 0
    %2628 = vmatprep.subr.bf16.mxu0 0
    %2629 = vmatpush2.bf16.msra.mxu0 0
    %2630 = vmatprep.mubr.bf16.mxu0 0
    %2631 = vmatmul.mubr.bf16.gmra.mxu0 %v2596
    %v2632 = vpop.f32.mrf.mxu0
    %v2633 = vadd.f32 0.0, %v2632
    %v2634 = vpop.f32.mrf.mxu0
    %v2635 = vadd.f32 0.0, %v2634
    %v2636 = vpop.f32.mrf.mxu0
    %v2637 = vpop.f32.mrf.mxu0
    %2638 = vdwg.mxu0
    %2639 = vmatprep.subr.bf16.mxu0 %v371
    %2640 = vmatpush1.bf16.msra.mxu0 %v370
    %2641 = vmatprep.subr.bf16.mxu0 %v367
    %2642 = vmatpush1.bf16.msra.mxu0 %v366
    %2643 = vmatprep.subr.bf16.mxu0 %v363
    %2644 = vmatpush1.bf16.msra.mxu0 %v362
    %2645 = vmatprep.subr.bf16.mxu0 %v359
    %2646 = vmatpush1.bf16.msra.mxu0 %v358
    %2647 = vmatprep.subr.bf16.mxu0 %v355
    %2648 = vmatpush1.bf16.msra.mxu0 %v354
    %2649 = vmatprep.subr.bf16.mxu0 %v351
    %2650 = vmatpush1.bf16.msra.mxu0 %v350
    %2651 = vmatprep.subr.bf16.mxu0 %v347
    %2652 = vmatpush1.bf16.msra.mxu0 %v346
    %2653 = vmatprep.subr.bf16.mxu0 %v343
    %2654 = vmatpush1.bf16.msra.mxu0 %v342
    %2655 = vmatprep.subr.bf16.mxu0 0
    %2656 = vmatpush2.bf16.msra.mxu0 0
    %2657 = vmatprep.subr.bf16.mxu0 0
    %2658 = vmatpush2.bf16.msra.mxu0 0
    %2659 = vmatprep.subr.bf16.mxu0 0
    %2660 = vmatpush2.bf16.msra.mxu0 0
    %2661 = vmatprep.subr.bf16.mxu0 0
    %2662 = vmatpush2.bf16.msra.mxu0 0
    %2663 = vmatprep.subr.bf16.mxu0 0
    %2664 = vmatpush2.bf16.msra.mxu0 0
    %2665 = vmatprep.subr.bf16.mxu0 0
    %2666 = vmatpush2.bf16.msra.mxu0 0
    %2667 = vmatprep.subr.bf16.mxu0 0
    %2668 = vmatpush2.bf16.msra.mxu0 0
    %2669 = vmatprep.subr.bf16.mxu0 0
    %2670 = vmatpush2.bf16.msra.mxu0 0
    %2671 = vmatprep.mubr.bf16.mxu0 0
    %2672 = vmatmul.mubr.bf16.gmra.mxu0 %v2596
    %v2673 = vpop.f32.mrf.mxu0
    %v2674 = vadd.f32 0.0, %v2673
    %v2675 = vpop.f32.mrf.mxu0
    %v2676 = vadd.f32 0.0, %v2675
    %v2677 = vpop.f32.mrf.mxu0
    %v2678 = vpop.f32.mrf.mxu0
    %2679 = vdwg.mxu0
    %v2684 = vrot.slane %v2633, 2
    %v2685 = vrot.slane %v2635, 2
    %v2686 = vrot.slane %v2674, 2
    %v2687 = vrot.slane %v2676, 2
    %v2692 = vadd.f32 %v165, %v2684
    %v2693 = vadd.f32 %v167, %v2685
    %v2694 = vadd.f32 %v208, %v2686
    %v2695 = vadd.f32 %v210, %v2687
    %v2696 = vxor.u32 %v2692, 2147483648
    %v2697 = vxor.u32 %v2693, 2147483648
    %v2698 = vxor.u32 %v2694, 2147483648
    %v2699 = vmul.f32 %v2696, 1.442695
    %v2700 = vpow.pop %v2699
    %v2701 = vmul.f32 %v2697, 1.442695
    %v2702 = vpow.pop %v2701
    %v2703 = vmul.f32 %v2698, 1.442695
    %v2704 = vpow.pop %v2703
    %v2705 = vadd.f32 %v2700, 1.0
    %v2706 = vadd.f32 %v2702, 1.0
    %v2707 = vadd.f32 %v2704, 1.0
    %v2708 = vrcp.pop %v2705
    %v2709 = vmul.f32 1.0, %v2708
    %v2710 = vrcp.pop %v2706
    %v2711 = vmul.f32 1.0, %v2710
    %v2712 = vrcp.pop %v2707
    %v2713 = vmul.f32 1.0, %v2712
    %v2714 = vtanh.pop %v2695
    %v2716 = vrot.slane %v2458, 6
    %v2718 = vmul.f32 %v2711, %v2716
    %v2719 = vmul.f32 %v2709, %v2714
    %v2720 = vadd.f32 %v2718, %v2719
    %v2721 = vtanh.pop %v2720
    %v2722 = vmul.f32 %v2713, %v2721
    %v2723 = vsel %vm1696, %v2722, 0.0
    %2724 = vadd.xlane.f32.xlu0 %v2723
    %v2725 = vpop.xlane.xlu0 %2724
    %v2726 = vmul.f32 %v2725, 0.03125
    %v2727 = vsub.f32 %v2722, %v2726
    %v2728 = vmul.f32 %v2727, %v2727
    %v2729 = vsel %vm1696, %v2728, 0.0
    %2730 = vadd.xlane.f32.xlu0 %v2729
    %v2731 = vpop.xlane.xlu0 %2730
    %v2732 = vmul.f32 %v2726, %v2726
    %v2733 = vmul.f32 %v2732, 96.0
    %v2734 = vsub.f32 %v2731, %v2733
    %v2735 = vmul.f32 %v2734, 0.03125
    %v2736 = vadd.f32 %v2735, 1e-05
    %v2737 = vrsqrt.pop %v2736
    %v2738 = vmul.f32 %v2727, %v2737
    %v2739 = vmul.f32 %v2738, %v55
    %v2740 = vadd.f32 %v2739, %v56
    %v2741 = vpack.c.bf16 %v2740, %v2740
    %v2742 = vpack.c.bf16 %v2593, %v2593
    %v2744 = vrot.slane %v2742, 5
    %v2746 = vrot.slane %v2741, 3
    %v2747 = vrot.slane %v2744, 3
    %2750 = vmatprep.subr.bf16.mxu0 %v839
    %2751 = vmatpush1.bf16.msra.mxu0 %v838
    %2752 = vmatprep.subr.bf16.mxu0 %v835
    %2753 = vmatpush1.bf16.msra.mxu0 %v834
    %2754 = vmatprep.subr.bf16.mxu0 %v831
    %2755 = vmatpush1.bf16.msra.mxu0 %v830
    %2756 = vmatprep.subr.bf16.mxu0 %v827
    %2757 = vmatpush1.bf16.msra.mxu0 %v826
    %2758 = vmatprep.subr.bf16.mxu0 %v823
    %2759 = vmatpush1.bf16.msra.mxu0 %v822
    %2760 = vmatprep.subr.bf16.mxu0 %v819
    %2761 = vmatpush1.bf16.msra.mxu0 %v818
    %2762 = vmatprep.subr.bf16.mxu0 %v815
    %2763 = vmatpush1.bf16.msra.mxu0 %v814
    %2764 = vmatprep.subr.bf16.mxu0 %v811
    %2765 = vmatpush1.bf16.msra.mxu0 %v810
    %2766 = vmatprep.subr.bf16.mxu0 %v871
    %2767 = vmatpush2.bf16.msra.mxu0 %v870
    %2768 = vmatprep.subr.bf16.mxu0 %v867
    %2769 = vmatpush2.bf16.msra.mxu0 %v866
    %2770 = vmatprep.subr.bf16.mxu0 %v863
    %2771 = vmatpush2.bf16.msra.mxu0 %v862
    %2772 = vmatprep.subr.bf16.mxu0 %v859
    %2773 = vmatpush2.bf16.msra.mxu0 %v858
    %2774 = vmatprep.subr.bf16.mxu0 %v855
    %2775 = vmatpush2.bf16.msra.mxu0 %v854
    %2776 = vmatprep.subr.bf16.mxu0 %v851
    %2777 = vmatpush2.bf16.msra.mxu0 %v850
    %2778 = vmatprep.subr.bf16.mxu0 %v847
    %2779 = vmatpush2.bf16.msra.mxu0 %v846
    %2780 = vmatprep.subr.bf16.mxu0 %v843
    %2781 = vmatpush2.bf16.msra.mxu0 %v842
    %2782 = vmatprep.mubr.bf16.mxu0 %v2747
    %2783 = vmatmul.mubr.bf16.gmra.mxu0 %v2746
    %v2784 = vpop.f32.mrf.mxu0
    %v2785 = vadd.f32 %v601, %v2784
    %v2786 = vpop.f32.mrf.mxu0
    %v2787 = vadd.f32 %v605, %v2786
    %v2788 = vpop.f32.mrf.mxu0
    %v2789 = vpop.f32.mrf.mxu0
    %2790 = vdwg.mxu0
    %2791 = vmatprep.subr.bf16.mxu0 %v841
    %2792 = vmatpush1.bf16.msra.mxu0 %v840
    %2793 = vmatprep.subr.bf16.mxu0 %v837
    %2794 = vmatpush1.bf16.msra.mxu0 %v836
    %2795 = vmatprep.subr.bf16.mxu0 %v833
    %2796 = vmatpush1.bf16.msra.mxu0 %v832
    %2797 = vmatprep.subr.bf16.mxu0 %v829
    %2798 = vmatpush1.bf16.msra.mxu0 %v828
    %2799 = vmatprep.subr.bf16.mxu0 %v825
    %2800 = vmatpush1.bf16.msra.mxu0 %v824
    %2801 = vmatprep.subr.bf16.mxu0 %v821
    %2802 = vmatpush1.bf16.msra.mxu0 %v820
    %2803 = vmatprep.subr.bf16.mxu0 %v817
    %2804 = vmatpush1.bf16.msra.mxu0 %v816
    %2805 = vmatprep.subr.bf16.mxu0 %v813
    %2806 = vmatpush1.bf16.msra.mxu0 %v812
    %2807 = vmatprep.subr.bf16.mxu0 %v873
    %2808 = vmatpush2.bf16.msra.mxu0 %v872
    %2809 = vmatprep.subr.bf16.mxu0 %v869
    %2810 = vmatpush2.bf16.msra.mxu0 %v868
    %2811 = vmatprep.subr.bf16.mxu0 %v865
    %2812 = vmatpush2.bf16.msra.mxu0 %v864
    %2813 = vmatprep.subr.bf16.mxu0 %v861
    %2814 = vmatpush2.bf16.msra.mxu0 %v860
    %2815 = vmatprep.subr.bf16.mxu0 %v857
    %2816 = vmatpush2.bf16.msra.mxu0 %v856
    %2817 = vmatprep.subr.bf16.mxu0 %v853
    %2818 = vmatpush2.bf16.msra.mxu0 %v852
    %2819 = vmatprep.subr.bf16.mxu0 %v849
    %2820 = vmatpush2.bf16.msra.mxu0 %v848
    %2821 = vmatprep.subr.bf16.mxu0 %v845
    %2822 = vmatpush2.bf16.msra.mxu0 %v844
    %2823 = vmatprep.mubr.bf16.mxu0 %v2747
    %2824 = vmatmul.mubr.bf16.gmra.mxu0 %v2746
    %v2825 = vpop.f32.mrf.mxu0
    %v2826 = vadd.f32 %v609, %v2825
    %v2827 = vpop.f32.mrf.mxu0
    %v2828 = vadd.f32 %v613, %v2827
    %v2829 = vpop.f32.mrf.mxu0
    %v2830 = vpop.f32.mrf.mxu0
    %2831 = vdwg.mxu0
    %v2832 = vxor.u32 %v2785, 2147483648
    %v2833 = vxor.u32 %v2787, 2147483648
    %v2834 = vxor.u32 %v2826, 2147483648
    %v2835 = vmul.f32 %v2832, 1.442695
    %v2836 = vpow.pop %v2835
    %v2837 = vmul.f32 %v2833, 1.442695
    %v2838 = vpow.pop %v2837
    %v2839 = vmul.f32 %v2834, 1.442695
    %v2840 = vpow.pop %v2839
    %v2841 = vadd.f32 %v2836, 1.0
    %v2842 = vadd.f32 %v2838, 1.0
    %v2843 = vadd.f32 %v2840, 1.0
    %v2844 = vrcp.pop %v2841
    %v2845 = vmul.f32 1.0, %v2844
    %v2846 = vrcp.pop %v2842
    %v2847 = vmul.f32 1.0, %v2846
    %v2848 = vrcp.pop %v2843
    %v2849 = vmul.f32 1.0, %v2848
    %v2850 = vtanh.pop %v2828
    %v2851 = vmul.f32 %v2847, %v2591
    %v2852 = vmul.f32 %v2845, %v2850
    %v2853 = vadd.f32 %v2851, %v2852
    %v2854 = vtanh.pop %v2853
    %v2855 = vmul.f32 %v2849, %v2854
    %v2856 = vsel %vm113, %v2855, 0.0
    %2857 = vadd.xlane.f32.xlu0 %v2856
    %v2858 = vpop.xlane.xlu0 %2857
    %v2859 = vmul.f32 %v2858, 0.03125
    %v2860 = vsub.f32 %v2855, %v2859
    %v2861 = vmul.f32 %v2860, %v2860
    %v2862 = vsel %vm113, %v2861, 0.0
    %2863 = vadd.xlane.f32.xlu0 %v2862
    %v2864 = vpop.xlane.xlu0 %2863
    %v2865 = vmul.f32 %v2859, %v2859
    %v2866 = vmul.f32 %v2865, 96.0
    %v2867 = vsub.f32 %v2864, %v2866
    %v2868 = vmul.f32 %v2867, 0.03125
    %v2869 = vadd.f32 %v2868, 1e-05
    %v2870 = vrsqrt.pop %v2869
    %v2871 = vmul.f32 %v2860, %v2870
    %v2872 = vmul.f32 %v2871, %v57
    %v2873 = vadd.f32 %v2872, %v58
    %v2874 = vpack.c.bf16 %v2873, %v2873
    %v2875 = vld [vmem:[%s4] sm:$0xf]
    %v2876 = vld [vmem:[%s4 + $0x4] sm:$0xf]
    %v2877 = vld [vmem:[%s4 + $0x8] sm:$0xf]
    %v2878 = vld [vmem:[%s4 + $0xc] sm:$0xf]
    %v2879 = vld [vmem:[%s4 + $0x10] sm:$0xf]
    %v2880 = vld [vmem:[%s4 + $0x14] sm:$0xf]
    %v2881 = vld [vmem:[%s4 + $0x18] sm:$0xf]
    %v2882 = vld [vmem:[%s4 + $0x1c] sm:$0xf]
    %v2883 = vld [vmem:[%s4 + $0x20] sm:$0xf]
    %v2884 = vld [vmem:[%s4 + $0x24] sm:$0xf]
    %v2885 = vld [vmem:[%s4 + $0x28] sm:$0xf]
    %v2886 = vld [vmem:[%s4 + $0x2c] sm:$0xf]
    %v2887 = vld [vmem:[%s4 + $0x30] sm:$0xf]
    %v2888 = vld [vmem:[%s4 + $0x34] sm:$0xf]
    %v2889 = vld [vmem:[%s4 + $0x38] sm:$0xf]
    %v2890 = vld [vmem:[%s4 + $0x3c] sm:$0xf]
    %v2907 = vunpack.c.l.b16 %v2875
    %v2908 = vunpack.c.l.b16 %v2876
    %v2909 = vunpack.c.l.b16 %v2877
    %v2910 = vunpack.c.l.b16 %v2878
    %v2911 = vunpack.c.l.b16 %v2879
    %v2912 = vunpack.c.l.b16 %v2880
    %v2913 = vunpack.c.l.b16 %v2881
    %v2914 = vunpack.c.l.b16 %v2882
    %v2915 = vunpack.c.l.b16 %v2883
    %v2916 = vunpack.c.l.b16 %v2884
    %v2917 = vunpack.c.l.b16 %v2885
    %v2918 = vunpack.c.l.b16 %v2886
    %v2919 = vunpack.c.l.b16 %v2887
    %v2920 = vunpack.c.l.b16 %v2888
    %v2921 = vunpack.c.l.b16 %v2889
    %v2922 = vunpack.c.l.b16 %v2890
    %v2923 = vpack.c.b16 %v2908, %v2907
    %v2924 = vpack.c.b16 %v2910, %v2909
    %v2925 = vpack.c.b16 %v2912, %v2911
    %v2926 = vpack.c.b16 %v2914, %v2913
    %v2927 = vpack.c.b16 %v2916, %v2915
    %v2928 = vpack.c.b16 %v2918, %v2917
    %v2929 = vpack.c.b16 %v2920, %v2919
    %v2930 = vpack.c.b16 %v2922, %v2921
    %2939 = vmatprep.subr.bf16.mxu0 0
    %2940 = vmatpush1.bf16.msra.mxu0 %v2930
    %2941 = vmatprep.subr.bf16.mxu0 0
    %2942 = vmatpush1.bf16.msra.mxu0 %v2929
    %2943 = vmatprep.subr.bf16.mxu0 0
    %2944 = vmatpush1.bf16.msra.mxu0 %v2928
    %2945 = vmatprep.subr.bf16.mxu0 0
    %2946 = vmatpush1.bf16.msra.mxu0 %v2927
    %2947 = vmatprep.subr.bf16.mxu0 0
    %2948 = vmatpush1.bf16.msra.mxu0 %v2926
    %2949 = vmatprep.subr.bf16.mxu0 0
    %2950 = vmatpush1.bf16.msra.mxu0 %v2925
    %2951 = vmatprep.subr.bf16.mxu0 0
    %2952 = vmatpush1.bf16.msra.mxu0 %v2924
    %2953 = vmatprep.subr.bf16.mxu0 0
    %2954 = vmatpush1.bf16.msra.mxu0 %v2923
    %2955 = vmatprep.subr.bf16.mxu0 0
    %2956 = vmatpush2.bf16.msra.mxu0 0
    %2957 = vmatprep.subr.bf16.mxu0 0
    %2958 = vmatpush2.bf16.msra.mxu0 0
    %2959 = vmatprep.subr.bf16.mxu0 0
    %2960 = vmatpush2.bf16.msra.mxu0 0
    %2961 = vmatprep.subr.bf16.mxu0 0
    %2962 = vmatpush2.bf16.msra.mxu0 0
    %2963 = vmatprep.subr.bf16.mxu0 0
    %2964 = vmatpush2.bf16.msra.mxu0 0
    %2965 = vmatprep.subr.bf16.mxu0 0
    %2966 = vmatpush2.bf16.msra.mxu0 0
    %2967 = vmatprep.subr.bf16.mxu0 0
    %2968 = vmatpush2.bf16.msra.mxu0 0
    %2969 = vmatprep.subr.bf16.mxu0 0
    %2970 = vmatpush2.bf16.msra.mxu0 0
    %2971 = vmatprep.mubr.bf16.mxu0 0
    %2972 = vmatmul.mubr.bf16.gmra.mxu0 %v2874
    %v2973 = vpop.f32.mrf.mxu0
    %v2974 = vadd.f32 %v59, %v2973
    %v2975 = vpop.f32.mrf.mxu0
    %v2976 = vpop.f32.mrf.mxu0
    %v2977 = vpop.f32.mrf.mxu0
    %2978 = vdwg.mxu0
    %v2979 = vmul.f32 %v2974, %v60
    %vm2980 = vcmask 123904
    %v2981 = vsel %vm2980, %v2979, 0.0
    %2982 = vadd.xlane.f32.xlu0 %v2981
    %v2983 = vpop.xlane.xlu0 %2982
    %v2984 = vadd.f32 %v2983, %v61
    %vm2985 = vcmask 1024
    %2986 = vst.msk [vmem:[%s6] sm:$0x3] %vm2985, %v2984
    // Predicated region
    $region34: #{tpu_custom_call.1} parent=1 // pred_check
      _
    $region35: #{tpu_custom_call.1} parent=1 // pred_check_branch
      %2988 = sbr.rel (0) target = $region37
    $region36: #{tpu_custom_call.1} parent=1 // pred_region
      _
    $region37: #{tpu_custom_call.1} parent=1 // pred_fallthru
      _
    // Predicated region
    $region38: #{tpu_custom_call.1} parent=1 // pred_check
      _
    $region39: #{tpu_custom_call.1} parent=1 // pred_check_branch
      %2990 = sbr.rel (0) target = $region41
    $region40: #{tpu_custom_call.1} parent=1 // pred_region
      _
    $region41: #{tpu_custom_call.1} parent=1 // pred_fallthru
      _
    %2991 = vsyncpa [#allocation3], 1
    %2992 = vsyncpa [#allocation5], 1

</llo_original>
